<compile_context>
chip_gen: v7x
topology: tpu7x:2x2x1
jax: 0.10.0
libtpu: 0.0.40
codegen_flags: <defaults>
</compile_context>

<pallas_src>
import jax
import jax.numpy as jnp
from jax import lax
from jax.experimental import pallas as pl
from jax.experimental.pallas import tpu as pltpu


def _conv3x3_vpu_kernel(x_ref, w_ref, b_ref, o_ref):
    """3x3 conv of one (TH, W) output tile, pure-VPU formulation.

    x_ref: (1, Cin, H+2, W+2)  VMEM, full padded image (resident across h)
    w_ref: (Cout*Cin*9,)       SMEM, flat PyTorch-layout (Cout,Cin,3,3) weights
    b_ref: (Cout,)             SMEM bias
    o_ref: (1, Cout, TH, W)    VMEM, output rows [h*TH, (h+1)*TH)
    """
    cin = x_ref.shape[1]
    cout, th, w = o_ref.shape[1], o_ref.shape[2], o_ref.shape[3]

    h = pl.program_id(1)
    row0 = pl.multiple_of(h * th, th)

    # Build the 9*Cin shifted (TH, W) windows once; reuse for every output
    # channel.  dy is a sublane-offset load, dx a lane slice (XLU slot).
    shifted = []
    for ci in range(cin):
        for ky in range(3):
            rows = x_ref[0, ci, pl.ds(row0 + ky, th), :]      # (TH, W+2)
            for kx in range(3):
                shifted.append(rows[:, kx:kx + w])            # (TH, W)

    # out[co] = b[co] + sum_{ci,ky,kx} w[co,ci,ky,kx] * shifted[ci,ky,kx]
    for co in range(cout):
        acc = jnp.full((th, w), b_ref[co], dtype=jnp.float32)
        base = co * cin * 9
        for t in range(cin * 9):
            acc = acc + w_ref[base + t] * shifted[t]
        o_ref[0, co, :, :] = acc.astype(o_ref.dtype)


def _pick_tile_h(H, W, cout, itemsize=4, target_bytes=2 << 20):
    """Largest valid output-tile height.

    Valid tile heights are divisors of H that are multiples of 8 (sublane
    alignment) -- or H itself as a fallback.  Prefer a tile giving >= 2
    h-steps (feeds both v7x TensorCores) while keeping the output block at a
    couple of MiB so blocks pipeline instead of filling VMEM.
    """
    cands = [d for d in range(8, H, 8) if H % d == 0]
    good = [d for d in cands if d * W * max(cout, 8) * itemsize <= target_bytes]
    return max(good) if good else H


def conv3x3(x_nchw, weight, bias, use_refl=True):
    """Equivalent of Conv3x3.forward.

    x_nchw : (N, Cin, H, W) float32
    weight : (Cout, Cin, 3, 3)  (PyTorch layout)
    bias   : (Cout,)
    returns: (N, Cout, H, W)
    """
    N, Cin, H, W = x_nchw.shape
    Cout = weight.shape[0]

    mode = "reflect" if use_refl else "constant"
    x_pad = jnp.pad(x_nchw, ((0, 0), (0, 0), (1, 1), (1, 1)), mode=mode)
    Hp, Wp = H + 2, W + 2

    itemsize = x_nchw.dtype.itemsize
    th = _pick_tile_h(H, W, Cout, itemsize)
    n_h = H // th

    # Pre-flattened scalar tables (resident in SMEM for the whole grid).
    w_flat = weight.astype(jnp.float32).reshape(Cout * Cin * 9)
    b_flat = bias.astype(jnp.float32)

    # Explicit VMEM budget: double-buffered input + output blocks + headroom,
    # capped at 48 MiB (safe on v7x's 64 MiB as well as v5e/v6e's 128 MiB).
    in_block = Cin * Hp * Wp * itemsize
    out_block = Cout * th * W * itemsize
    vmem_limit = int(min(max(4 * (in_block + out_block) + (2 << 20), 8 << 20),
                         48 << 20))

    out = pl.pallas_call(
        _conv3x3_vpu_kernel,
        out_shape=jax.ShapeDtypeStruct((N, Cout, H, W), x_nchw.dtype),
        grid_spec=pltpu.PrefetchScalarGridSpec(
            num_scalar_prefetch=0,
            grid=(N, n_h),
            in_specs=[
                # Full padded image for this n; constant along h -> resident.
                pl.BlockSpec((1, Cin, Hp, Wp), lambda n, h: (n, 0, 0, 0)),
                # Weights / bias as scalar tables in SMEM.
                pl.BlockSpec(memory_space=pltpu.MemorySpace.SMEM),
                pl.BlockSpec(memory_space=pltpu.MemorySpace.SMEM),
            ],
            out_specs=pl.BlockSpec((1, Cout, th, W), lambda n, h: (n, 0, h, 0)),
        ),
        compiler_params=pltpu.CompilerParams(
            dimension_semantics=("parallel", "parallel"),
            vmem_limit_bytes=vmem_limit,
        ),
    )(x_pad, w_flat, b_flat)
    return out


def _reference_conv3x3(x_nchw, weight, bias, use_refl=True):
    """Pure-JAX reference (lax.conv) for correctness checking."""
    mode = "reflect" if use_refl else "constant"
    x_pad = jnp.pad(x_nchw, ((0, 0), (0, 0), (1, 1), (1, 1)), mode=mode)
    out = lax.conv_general_dilated(
        x_pad, weight,
        window_strides=(1, 1),
        padding="VALID",
        dimension_numbers=("NCHW", "OIHW", "NCHW"),
    )
    return out + bias.reshape(1, -1, 1, 1)


if __name__ == "__main__":
    key = jax.random.PRNGKey(0)
    kx, kw, kb = jax.random.split(key, 3)

    N, Cin, H, W = 2, 4, 16, 16
    Cout = 8

    x = jax.random.normal(kx, (N, Cin, H, W), dtype=jnp.float32)
    # Deterministic parameter init (mimics nn.Conv2d uniform fan-in init).
    fan_in = Cin * 3 * 3
    bound = 1.0 / (fan_in ** 0.5)
    weight = jax.random.uniform(kw, (Cout, Cin, 3, 3), jnp.float32, -bound, bound)
    bias = jax.random.uniform(kb, (Cout,), jnp.float32, -bound, bound)

    # Reflection-pad path (default in the PyTorch module).
    out_refl = jax.block_until_ready(conv3x3(x, weight, bias, use_refl=True))
    ref_refl = _reference_conv3x3(x, weight, bias, use_refl=True)
    assert out_refl.shape == (N, Cout, H, W), out_refl.shape
    assert jnp.allclose(out_refl, ref_refl, atol=1e-4, rtol=1e-4), \
        "reflect-pad mismatch vs reference"

    # Zero-pad path (use_refl=False).
    out_zero = jax.block_until_ready(conv3x3(x, weight, bias, use_refl=False))
    ref_zero = _reference_conv3x3(x, weight, bias, use_refl=False)
    assert jnp.allclose(out_zero, ref_zero, atol=1e-4, rtol=1e-4), \
        "zero-pad mismatch vs reference"

    print("KERNEL_OK")
</pallas_src>

<mosaic_0001>
module attributes {stable_mosaic.version = 11 : i64} {
  func.func @_conv3x3_vpu_kernel(%arg0: i32, %arg1: i32, %arg2: memref<1x4x18x18xf32, #tpu.memory_space<vmem>>, %arg3: memref<288xf32, #tpu.memory_space<smem>>, %arg4: memref<8xf32, #tpu.memory_space<smem>>, %arg5: memref<1x8x8x16xf32, #tpu.memory_space<vmem>>) attributes {dimension_semantics = [#tpu.dimension_semantics<parallel>, #tpu.dimension_semantics<parallel>], iteration_bounds = array<i64: 2, 2>, scalar_prefetch = 0 : i64, scratch_operands = 0 : i64, tpu.core_type = #tpu.core_type<tc>, window_params = [{transform_indices = @transform_0, window_bounds = array<i64: 1, 4, 18, 18>}, {transform_indices = @transform_1, window_bounds = array<i64: 288>}, {transform_indices = @transform_2, window_bounds = array<i64: 8>}, {transform_indices = @transform_3, window_bounds = array<i64: 1, 8, 8, 16>}]} {
    %c8_i32 = arith.constant 8 : i32
    %0 = arith.muli %arg1, %c8_i32 : i32
    %1 = tpu.assume_multiple %0, 8 : i32
    %c0_i32 = arith.constant 0 : i32
    %2 = arith.addi %1, %c0_i32 : i32
    %c0 = arith.constant 0 : index
    %c0_0 = arith.constant 0 : index
    %3 = arith.index_cast %2 : i32 to index
    %c0_1 = arith.constant 0 : index
    %4 = vector.load %arg2[%c0, %c0_0, %3, %c0_1] : memref<1x4x18x18xf32, #tpu.memory_space<vmem>>, vector<1x1x8x18xf32>
    %5 = vector.shape_cast %4 : vector<1x1x8x18xf32> to vector<8x18xf32>
    %6 = vector.extract_strided_slice %5 {offsets = [0, 0], sizes = [8, 16], strides = [1, 1]} : vector<8x18xf32> to vector<8x16xf32>
    %7 = vector.extract_strided_slice %5 {offsets = [0, 1], sizes = [8, 16], strides = [1, 1]} : vector<8x18xf32> to vector<8x16xf32>
    %8 = vector.extract_strided_slice %5 {offsets = [0, 2], sizes = [8, 16], strides = [1, 1]} : vector<8x18xf32> to vector<8x16xf32>
    %c1_i32 = arith.constant 1 : i32
    %9 = arith.addi %1, %c1_i32 : i32
    %c0_2 = arith.constant 0 : index
    %c0_3 = arith.constant 0 : index
    %10 = arith.index_cast %9 : i32 to index
    %c0_4 = arith.constant 0 : index
    %11 = vector.load %arg2[%c0_2, %c0_3, %10, %c0_4] : memref<1x4x18x18xf32, #tpu.memory_space<vmem>>, vector<1x1x8x18xf32>
    %12 = vector.shape_cast %11 : vector<1x1x8x18xf32> to vector<8x18xf32>
    %13 = vector.extract_strided_slice %12 {offsets = [0, 0], sizes = [8, 16], strides = [1, 1]} : vector<8x18xf32> to vector<8x16xf32>
    %14 = vector.extract_strided_slice %12 {offsets = [0, 1], sizes = [8, 16], strides = [1, 1]} : vector<8x18xf32> to vector<8x16xf32>
    %15 = vector.extract_strided_slice %12 {offsets = [0, 2], sizes = [8, 16], strides = [1, 1]} : vector<8x18xf32> to vector<8x16xf32>
    %c2_i32 = arith.constant 2 : i32
    %16 = arith.addi %1, %c2_i32 : i32
    %c0_5 = arith.constant 0 : index
    %c0_6 = arith.constant 0 : index
    %17 = arith.index_cast %16 : i32 to index
    %c0_7 = arith.constant 0 : index
    %18 = vector.load %arg2[%c0_5, %c0_6, %17, %c0_7] : memref<1x4x18x18xf32, #tpu.memory_space<vmem>>, vector<1x1x8x18xf32>
    %19 = vector.shape_cast %18 : vector<1x1x8x18xf32> to vector<8x18xf32>
    %20 = vector.extract_strided_slice %19 {offsets = [0, 0], sizes = [8, 16], strides = [1, 1]} : vector<8x18xf32> to vector<8x16xf32>
    %21 = vector.extract_strided_slice %19 {offsets = [0, 1], sizes = [8, 16], strides = [1, 1]} : vector<8x18xf32> to vector<8x16xf32>
    %22 = vector.extract_strided_slice %19 {offsets = [0, 2], sizes = [8, 16], strides = [1, 1]} : vector<8x18xf32> to vector<8x16xf32>
    %c0_i32_8 = arith.constant 0 : i32
    %23 = arith.addi %1, %c0_i32_8 : i32
    %c0_9 = arith.constant 0 : index
    %c1 = arith.constant 1 : index
    %24 = arith.index_cast %23 : i32 to index
    %c0_10 = arith.constant 0 : index
    %25 = vector.load %arg2[%c0_9, %c1, %24, %c0_10] : memref<1x4x18x18xf32, #tpu.memory_space<vmem>>, vector<1x1x8x18xf32>
    %26 = vector.shape_cast %25 : vector<1x1x8x18xf32> to vector<8x18xf32>
    %27 = vector.extract_strided_slice %26 {offsets = [0, 0], sizes = [8, 16], strides = [1, 1]} : vector<8x18xf32> to vector<8x16xf32>
    %28 = vector.extract_strided_slice %26 {offsets = [0, 1], sizes = [8, 16], strides = [1, 1]} : vector<8x18xf32> to vector<8x16xf32>
    %29 = vector.extract_strided_slice %26 {offsets = [0, 2], sizes = [8, 16], strides = [1, 1]} : vector<8x18xf32> to vector<8x16xf32>
    %c1_i32_11 = arith.constant 1 : i32
    %30 = arith.addi %1, %c1_i32_11 : i32
    %c0_12 = arith.constant 0 : index
    %c1_13 = arith.constant 1 : index
    %31 = arith.index_cast %30 : i32 to index
    %c0_14 = arith.constant 0 : index
    %32 = vector.load %arg2[%c0_12, %c1_13, %31, %c0_14] : memref<1x4x18x18xf32, #tpu.memory_space<vmem>>, vector<1x1x8x18xf32>
    %33 = vector.shape_cast %32 : vector<1x1x8x18xf32> to vector<8x18xf32>
    %34 = vector.extract_strided_slice %33 {offsets = [0, 0], sizes = [8, 16], strides = [1, 1]} : vector<8x18xf32> to vector<8x16xf32>
    %35 = vector.extract_strided_slice %33 {offsets = [0, 1], sizes = [8, 16], strides = [1, 1]} : vector<8x18xf32> to vector<8x16xf32>
    %36 = vector.extract_strided_slice %33 {offsets = [0, 2], sizes = [8, 16], strides = [1, 1]} : vector<8x18xf32> to vector<8x16xf32>
    %c2_i32_15 = arith.constant 2 : i32
    %37 = arith.addi %1, %c2_i32_15 : i32
    %c0_16 = arith.constant 0 : index
    %c1_17 = arith.constant 1 : index
    %38 = arith.index_cast %37 : i32 to index
    %c0_18 = arith.constant 0 : index
    %39 = vector.load %arg2[%c0_16, %c1_17, %38, %c0_18] : memref<1x4x18x18xf32, #tpu.memory_space<vmem>>, vector<1x1x8x18xf32>
    %40 = vector.shape_cast %39 : vector<1x1x8x18xf32> to vector<8x18xf32>
    %41 = vector.extract_strided_slice %40 {offsets = [0, 0], sizes = [8, 16], strides = [1, 1]} : vector<8x18xf32> to vector<8x16xf32>
    %42 = vector.extract_strided_slice %40 {offsets = [0, 1], sizes = [8, 16], strides = [1, 1]} : vector<8x18xf32> to vector<8x16xf32>
    %43 = vector.extract_strided_slice %40 {offsets = [0, 2], sizes = [8, 16], strides = [1, 1]} : vector<8x18xf32> to vector<8x16xf32>
    %c0_i32_19 = arith.constant 0 : i32
    %44 = arith.addi %1, %c0_i32_19 : i32
    %c0_20 = arith.constant 0 : index
    %c2 = arith.constant 2 : index
    %45 = arith.index_cast %44 : i32 to index
    %c0_21 = arith.constant 0 : index
    %46 = vector.load %arg2[%c0_20, %c2, %45, %c0_21] : memref<1x4x18x18xf32, #tpu.memory_space<vmem>>, vector<1x1x8x18xf32>
    %47 = vector.shape_cast %46 : vector<1x1x8x18xf32> to vector<8x18xf32>
    %48 = vector.extract_strided_slice %47 {offsets = [0, 0], sizes = [8, 16], strides = [1, 1]} : vector<8x18xf32> to vector<8x16xf32>
    %49 = vector.extract_strided_slice %47 {offsets = [0, 1], sizes = [8, 16], strides = [1, 1]} : vector<8x18xf32> to vector<8x16xf32>
    %50 = vector.extract_strided_slice %47 {offsets = [0, 2], sizes = [8, 16], strides = [1, 1]} : vector<8x18xf32> to vector<8x16xf32>
    %c1_i32_22 = arith.constant 1 : i32
    %51 = arith.addi %1, %c1_i32_22 : i32
    %c0_23 = arith.constant 0 : index
    %c2_24 = arith.constant 2 : index
    %52 = arith.index_cast %51 : i32 to index
    %c0_25 = arith.constant 0 : index
    %53 = vector.load %arg2[%c0_23, %c2_24, %52, %c0_25] : memref<1x4x18x18xf32, #tpu.memory_space<vmem>>, vector<1x1x8x18xf32>
    %54 = vector.shape_cast %53 : vector<1x1x8x18xf32> to vector<8x18xf32>
    %55 = vector.extract_strided_slice %54 {offsets = [0, 0], sizes = [8, 16], strides = [1, 1]} : vector<8x18xf32> to vector<8x16xf32>
    %56 = vector.extract_strided_slice %54 {offsets = [0, 1], sizes = [8, 16], strides = [1, 1]} : vector<8x18xf32> to vector<8x16xf32>
    %57 = vector.extract_strided_slice %54 {offsets = [0, 2], sizes = [8, 16], strides = [1, 1]} : vector<8x18xf32> to vector<8x16xf32>
    %c2_i32_26 = arith.constant 2 : i32
    %58 = arith.addi %1, %c2_i32_26 : i32
    %c0_27 = arith.constant 0 : index
    %c2_28 = arith.constant 2 : index
    %59 = arith.index_cast %58 : i32 to index
    %c0_29 = arith.constant 0 : index
    %60 = vector.load %arg2[%c0_27, %c2_28, %59, %c0_29] : memref<1x4x18x18xf32, #tpu.memory_space<vmem>>, vector<1x1x8x18xf32>
    %61 = vector.shape_cast %60 : vector<1x1x8x18xf32> to vector<8x18xf32>
    %62 = vector.extract_strided_slice %61 {offsets = [0, 0], sizes = [8, 16], strides = [1, 1]} : vector<8x18xf32> to vector<8x16xf32>
    %63 = vector.extract_strided_slice %61 {offsets = [0, 1], sizes = [8, 16], strides = [1, 1]} : vector<8x18xf32> to vector<8x16xf32>
    %64 = vector.extract_strided_slice %61 {offsets = [0, 2], sizes = [8, 16], strides = [1, 1]} : vector<8x18xf32> to vector<8x16xf32>
    %c0_i32_30 = arith.constant 0 : i32
    %65 = arith.addi %1, %c0_i32_30 : i32
    %c0_31 = arith.constant 0 : index
    %c3 = arith.constant 3 : index
    %66 = arith.index_cast %65 : i32 to index
    %c0_32 = arith.constant 0 : index
    %67 = vector.load %arg2[%c0_31, %c3, %66, %c0_32] : memref<1x4x18x18xf32, #tpu.memory_space<vmem>>, vector<1x1x8x18xf32>
    %68 = vector.shape_cast %67 : vector<1x1x8x18xf32> to vector<8x18xf32>
    %69 = vector.extract_strided_slice %68 {offsets = [0, 0], sizes = [8, 16], strides = [1, 1]} : vector<8x18xf32> to vector<8x16xf32>
    %70 = vector.extract_strided_slice %68 {offsets = [0, 1], sizes = [8, 16], strides = [1, 1]} : vector<8x18xf32> to vector<8x16xf32>
    %71 = vector.extract_strided_slice %68 {offsets = [0, 2], sizes = [8, 16], strides = [1, 1]} : vector<8x18xf32> to vector<8x16xf32>
    %c1_i32_33 = arith.constant 1 : i32
    %72 = arith.addi %1, %c1_i32_33 : i32
    %c0_34 = arith.constant 0 : index
    %c3_35 = arith.constant 3 : index
    %73 = arith.index_cast %72 : i32 to index
    %c0_36 = arith.constant 0 : index
    %74 = vector.load %arg2[%c0_34, %c3_35, %73, %c0_36] : memref<1x4x18x18xf32, #tpu.memory_space<vmem>>, vector<1x1x8x18xf32>
    %75 = vector.shape_cast %74 : vector<1x1x8x18xf32> to vector<8x18xf32>
    %76 = vector.extract_strided_slice %75 {offsets = [0, 0], sizes = [8, 16], strides = [1, 1]} : vector<8x18xf32> to vector<8x16xf32>
    %77 = vector.extract_strided_slice %75 {offsets = [0, 1], sizes = [8, 16], strides = [1, 1]} : vector<8x18xf32> to vector<8x16xf32>
    %78 = vector.extract_strided_slice %75 {offsets = [0, 2], sizes = [8, 16], strides = [1, 1]} : vector<8x18xf32> to vector<8x16xf32>
    %c2_i32_37 = arith.constant 2 : i32
    %79 = arith.addi %1, %c2_i32_37 : i32
    %c0_38 = arith.constant 0 : index
    %c3_39 = arith.constant 3 : index
    %80 = arith.index_cast %79 : i32 to index
    %c0_40 = arith.constant 0 : index
    %81 = vector.load %arg2[%c0_38, %c3_39, %80, %c0_40] : memref<1x4x18x18xf32, #tpu.memory_space<vmem>>, vector<1x1x8x18xf32>
    %82 = vector.shape_cast %81 : vector<1x1x8x18xf32> to vector<8x18xf32>
    %83 = vector.extract_strided_slice %82 {offsets = [0, 0], sizes = [8, 16], strides = [1, 1]} : vector<8x18xf32> to vector<8x16xf32>
    %84 = vector.extract_strided_slice %82 {offsets = [0, 1], sizes = [8, 16], strides = [1, 1]} : vector<8x18xf32> to vector<8x16xf32>
    %85 = vector.extract_strided_slice %82 {offsets = [0, 2], sizes = [8, 16], strides = [1, 1]} : vector<8x18xf32> to vector<8x16xf32>
    %c0_41 = arith.constant 0 : index
    %86 = memref.load %arg4[%c0_41] : memref<8xf32, #tpu.memory_space<smem>>
    %87 = vector.broadcast %86 : f32 to vector<8x16xf32>
    %c0_42 = arith.constant 0 : index
    %88 = memref.load %arg3[%c0_42] : memref<288xf32, #tpu.memory_space<smem>>
    %89 = vector.broadcast %88 : f32 to vector<8x16xf32>
    %90 = arith.mulf %89, %6 : vector<8x16xf32>
    %91 = arith.addf %87, %90 : vector<8x16xf32>
    %c1_43 = arith.constant 1 : index
    %92 = memref.load %arg3[%c1_43] : memref<288xf32, #tpu.memory_space<smem>>
    %93 = vector.broadcast %92 : f32 to vector<8x16xf32>
    %94 = arith.mulf %93, %7 : vector<8x16xf32>
    %95 = arith.addf %91, %94 : vector<8x16xf32>
    %c2_44 = arith.constant 2 : index
    %96 = memref.load %arg3[%c2_44] : memref<288xf32, #tpu.memory_space<smem>>
    %97 = vector.broadcast %96 : f32 to vector<8x16xf32>
    %98 = arith.mulf %97, %8 : vector<8x16xf32>
    %99 = arith.addf %95, %98 : vector<8x16xf32>
    %c3_45 = arith.constant 3 : index
    %100 = memref.load %arg3[%c3_45] : memref<288xf32, #tpu.memory_space<smem>>
    %101 = vector.broadcast %100 : f32 to vector<8x16xf32>
    %102 = arith.mulf %101, %13 : vector<8x16xf32>
    %103 = arith.addf %99, %102 : vector<8x16xf32>
    %c4 = arith.constant 4 : index
    %104 = memref.load %arg3[%c4] : memref<288xf32, #tpu.memory_space<smem>>
    %105 = vector.broadcast %104 : f32 to vector<8x16xf32>
    %106 = arith.mulf %105, %14 : vector<8x16xf32>
    %107 = arith.addf %103, %106 : vector<8x16xf32>
    %c5 = arith.constant 5 : index
    %108 = memref.load %arg3[%c5] : memref<288xf32, #tpu.memory_space<smem>>
    %109 = vector.broadcast %108 : f32 to vector<8x16xf32>
    %110 = arith.mulf %109, %15 : vector<8x16xf32>
    %111 = arith.addf %107, %110 : vector<8x16xf32>
    %c6 = arith.constant 6 : index
    %112 = memref.load %arg3[%c6] : memref<288xf32, #tpu.memory_space<smem>>
    %113 = vector.broadcast %112 : f32 to vector<8x16xf32>
    %114 = arith.mulf %113, %20 : vector<8x16xf32>
    %115 = arith.addf %111, %114 : vector<8x16xf32>
    %c7 = arith.constant 7 : index
    %116 = memref.load %arg3[%c7] : memref<288xf32, #tpu.memory_space<smem>>
    %117 = vector.broadcast %116 : f32 to vector<8x16xf32>
    %118 = arith.mulf %117, %21 : vector<8x16xf32>
    %119 = arith.addf %115, %118 : vector<8x16xf32>
    %c8 = arith.constant 8 : index
    %120 = memref.load %arg3[%c8] : memref<288xf32, #tpu.memory_space<smem>>
    %121 = vector.broadcast %120 : f32 to vector<8x16xf32>
    %122 = arith.mulf %121, %22 : vector<8x16xf32>
    %123 = arith.addf %119, %122 : vector<8x16xf32>
    %c9 = arith.constant 9 : index
    %124 = memref.load %arg3[%c9] : memref<288xf32, #tpu.memory_space<smem>>
    %125 = vector.broadcast %124 : f32 to vector<8x16xf32>
    %126 = arith.mulf %125, %27 : vector<8x16xf32>
    %127 = arith.addf %123, %126 : vector<8x16xf32>
    %c10 = arith.constant 10 : index
    %128 = memref.load %arg3[%c10] : memref<288xf32, #tpu.memory_space<smem>>
    %129 = vector.broadcast %128 : f32 to vector<8x16xf32>
    %130 = arith.mulf %129, %28 : vector<8x16xf32>
    %131 = arith.addf %127, %130 : vector<8x16xf32>
    %c11 = arith.constant 11 : index
    %132 = memref.load %arg3[%c11] : memref<288xf32, #tpu.memory_space<smem>>
    %133 = vector.broadcast %132 : f32 to vector<8x16xf32>
    %134 = arith.mulf %133, %29 : vector<8x16xf32>
    %135 = arith.addf %131, %134 : vector<8x16xf32>
    %c12 = arith.constant 12 : index
    %136 = memref.load %arg3[%c12] : memref<288xf32, #tpu.memory_space<smem>>
    %137 = vector.broadcast %136 : f32 to vector<8x16xf32>
    %138 = arith.mulf %137, %34 : vector<8x16xf32>
    %139 = arith.addf %135, %138 : vector<8x16xf32>
    %c13 = arith.constant 13 : index
    %140 = memref.load %arg3[%c13] : memref<288xf32, #tpu.memory_space<smem>>
    %141 = vector.broadcast %140 : f32 to vector<8x16xf32>
    %142 = arith.mulf %141, %35 : vector<8x16xf32>
    %143 = arith.addf %139, %142 : vector<8x16xf32>
    %c14 = arith.constant 14 : index
    %144 = memref.load %arg3[%c14] : memref<288xf32, #tpu.memory_space<smem>>
    %145 = vector.broadcast %144 : f32 to vector<8x16xf32>
    %146 = arith.mulf %145, %36 : vector<8x16xf32>
    %147 = arith.addf %143, %146 : vector<8x16xf32>
    %c15 = arith.constant 15 : index
    %148 = memref.load %arg3[%c15] : memref<288xf32, #tpu.memory_space<smem>>
    %149 = vector.broadcast %148 : f32 to vector<8x16xf32>
    %150 = arith.mulf %149, %41 : vector<8x16xf32>
    %151 = arith.addf %147, %150 : vector<8x16xf32>
    %c16 = arith.constant 16 : index
    %152 = memref.load %arg3[%c16] : memref<288xf32, #tpu.memory_space<smem>>
    %153 = vector.broadcast %152 : f32 to vector<8x16xf32>
    %154 = arith.mulf %153, %42 : vector<8x16xf32>
    %155 = arith.addf %151, %154 : vector<8x16xf32>
    %c17 = arith.constant 17 : index
    %156 = memref.load %arg3[%c17] : memref<288xf32, #tpu.memory_space<smem>>
    %157 = vector.broadcast %156 : f32 to vector<8x16xf32>
    %158 = arith.mulf %157, %43 : vector<8x16xf32>
    %159 = arith.addf %155, %158 : vector<8x16xf32>
    %c18 = arith.constant 18 : index
    %160 = memref.load %arg3[%c18] : memref<288xf32, #tpu.memory_space<smem>>
    %161 = vector.broadcast %160 : f32 to vector<8x16xf32>
    %162 = arith.mulf %161, %48 : vector<8x16xf32>
    %163 = arith.addf %159, %162 : vector<8x16xf32>
    %c19 = arith.constant 19 : index
    %164 = memref.load %arg3[%c19] : memref<288xf32, #tpu.memory_space<smem>>
    %165 = vector.broadcast %164 : f32 to vector<8x16xf32>
    %166 = arith.mulf %165, %49 : vector<8x16xf32>
    %167 = arith.addf %163, %166 : vector<8x16xf32>
    %c20 = arith.constant 20 : index
    %168 = memref.load %arg3[%c20] : memref<288xf32, #tpu.memory_space<smem>>
    %169 = vector.broadcast %168 : f32 to vector<8x16xf32>
    %170 = arith.mulf %169, %50 : vector<8x16xf32>
    %171 = arith.addf %167, %170 : vector<8x16xf32>
    %c21 = arith.constant 21 : index
    %172 = memref.load %arg3[%c21] : memref<288xf32, #tpu.memory_space<smem>>
    %173 = vector.broadcast %172 : f32 to vector<8x16xf32>
    %174 = arith.mulf %173, %55 : vector<8x16xf32>
    %175 = arith.addf %171, %174 : vector<8x16xf32>
    %c22 = arith.constant 22 : index
    %176 = memref.load %arg3[%c22] : memref<288xf32, #tpu.memory_space<smem>>
    %177 = vector.broadcast %176 : f32 to vector<8x16xf32>
    %178 = arith.mulf %177, %56 : vector<8x16xf32>
    %179 = arith.addf %175, %178 : vector<8x16xf32>
    %c23 = arith.constant 23 : index
    %180 = memref.load %arg3[%c23] : memref<288xf32, #tpu.memory_space<smem>>
    %181 = vector.broadcast %180 : f32 to vector<8x16xf32>
    %182 = arith.mulf %181, %57 : vector<8x16xf32>
    %183 = arith.addf %179, %182 : vector<8x16xf32>
    %c24 = arith.constant 24 : index
    %184 = memref.load %arg3[%c24] : memref<288xf32, #tpu.memory_space<smem>>
    %185 = vector.broadcast %184 : f32 to vector<8x16xf32>
    %186 = arith.mulf %185, %62 : vector<8x16xf32>
    %187 = arith.addf %183, %186 : vector<8x16xf32>
    %c25 = arith.constant 25 : index
    %188 = memref.load %arg3[%c25] : memref<288xf32, #tpu.memory_space<smem>>
    %189 = vector.broadcast %188 : f32 to vector<8x16xf32>
    %190 = arith.mulf %189, %63 : vector<8x16xf32>
    %191 = arith.addf %187, %190 : vector<8x16xf32>
    %c26 = arith.constant 26 : index
    %192 = memref.load %arg3[%c26] : memref<288xf32, #tpu.memory_space<smem>>
    %193 = vector.broadcast %192 : f32 to vector<8x16xf32>
    %194 = arith.mulf %193, %64 : vector<8x16xf32>
    %195 = arith.addf %191, %194 : vector<8x16xf32>
    %c27 = arith.constant 27 : index
    %196 = memref.load %arg3[%c27] : memref<288xf32, #tpu.memory_space<smem>>
    %197 = vector.broadcast %196 : f32 to vector<8x16xf32>
    %198 = arith.mulf %197, %69 : vector<8x16xf32>
    %199 = arith.addf %195, %198 : vector<8x16xf32>
    %c28 = arith.constant 28 : index
    %200 = memref.load %arg3[%c28] : memref<288xf32, #tpu.memory_space<smem>>
    %201 = vector.broadcast %200 : f32 to vector<8x16xf32>
    %202 = arith.mulf %201, %70 : vector<8x16xf32>
    %203 = arith.addf %199, %202 : vector<8x16xf32>
    %c29 = arith.constant 29 : index
    %204 = memref.load %arg3[%c29] : memref<288xf32, #tpu.memory_space<smem>>
    %205 = vector.broadcast %204 : f32 to vector<8x16xf32>
    %206 = arith.mulf %205, %71 : vector<8x16xf32>
    %207 = arith.addf %203, %206 : vector<8x16xf32>
    %c30 = arith.constant 30 : index
    %208 = memref.load %arg3[%c30] : memref<288xf32, #tpu.memory_space<smem>>
    %209 = vector.broadcast %208 : f32 to vector<8x16xf32>
    %210 = arith.mulf %209, %76 : vector<8x16xf32>
    %211 = arith.addf %207, %210 : vector<8x16xf32>
    %c31 = arith.constant 31 : index
    %212 = memref.load %arg3[%c31] : memref<288xf32, #tpu.memory_space<smem>>
    %213 = vector.broadcast %212 : f32 to vector<8x16xf32>
    %214 = arith.mulf %213, %77 : vector<8x16xf32>
    %215 = arith.addf %211, %214 : vector<8x16xf32>
    %c32 = arith.constant 32 : index
    %216 = memref.load %arg3[%c32] : memref<288xf32, #tpu.memory_space<smem>>
    %217 = vector.broadcast %216 : f32 to vector<8x16xf32>
    %218 = arith.mulf %217, %78 : vector<8x16xf32>
    %219 = arith.addf %215, %218 : vector<8x16xf32>
    %c33 = arith.constant 33 : index
    %220 = memref.load %arg3[%c33] : memref<288xf32, #tpu.memory_space<smem>>
    %221 = vector.broadcast %220 : f32 to vector<8x16xf32>
    %222 = arith.mulf %221, %83 : vector<8x16xf32>
    %223 = arith.addf %219, %222 : vector<8x16xf32>
    %c34 = arith.constant 34 : index
    %224 = memref.load %arg3[%c34] : memref<288xf32, #tpu.memory_space<smem>>
    %225 = vector.broadcast %224 : f32 to vector<8x16xf32>
    %226 = arith.mulf %225, %84 : vector<8x16xf32>
    %227 = arith.addf %223, %226 : vector<8x16xf32>
    %c35 = arith.constant 35 : index
    %228 = memref.load %arg3[%c35] : memref<288xf32, #tpu.memory_space<smem>>
    %229 = vector.broadcast %228 : f32 to vector<8x16xf32>
    %230 = arith.mulf %229, %85 : vector<8x16xf32>
    %231 = arith.addf %227, %230 : vector<8x16xf32>
    %c0_46 = arith.constant 0 : index
    %c0_47 = arith.constant 0 : index
    %c0_48 = arith.constant 0 : index
    %c0_49 = arith.constant 0 : index
    %232 = vector.load %arg5[%c0_46, %c0_47, %c0_48, %c0_49] : memref<1x8x8x16xf32, #tpu.memory_space<vmem>>, vector<1x1x8x16xf32>
    %233 = vector.shape_cast %232 : vector<1x1x8x16xf32> to vector<8x16xf32>
    %234 = vector.shape_cast %231 : vector<8x16xf32> to vector<1x1x8x16xf32>
    tpu.vector_store %arg5[%c0_46, %c0_47, %c0_48, %c0_49], %234 {strides = array<i32>} : memref<1x8x8x16xf32, #tpu.memory_space<vmem>>, vector<1x1x8x16xf32>,
    %c1_50 = arith.constant 1 : index
    %235 = memref.load %arg4[%c1_50] : memref<8xf32, #tpu.memory_space<smem>>
    %236 = vector.broadcast %235 : f32 to vector<8x16xf32>
    %c36 = arith.constant 36 : index
    %237 = memref.load %arg3[%c36] : memref<288xf32, #tpu.memory_space<smem>>
    %238 = vector.broadcast %237 : f32 to vector<8x16xf32>
    %239 = arith.mulf %238, %6 : vector<8x16xf32>
    %240 = arith.addf %236, %239 : vector<8x16xf32>
    %c37 = arith.constant 37 : index
    %241 = memref.load %arg3[%c37] : memref<288xf32, #tpu.memory_space<smem>>
    %242 = vector.broadcast %241 : f32 to vector<8x16xf32>
    %243 = arith.mulf %242, %7 : vector<8x16xf32>
    %244 = arith.addf %240, %243 : vector<8x16xf32>
    %c38 = arith.constant 38 : index
    %245 = memref.load %arg3[%c38] : memref<288xf32, #tpu.memory_space<smem>>
    %246 = vector.broadcast %245 : f32 to vector<8x16xf32>
    %247 = arith.mulf %246, %8 : vector<8x16xf32>
    %248 = arith.addf %244, %247 : vector<8x16xf32>
    %c39 = arith.constant 39 : index
    %249 = memref.load %arg3[%c39] : memref<288xf32, #tpu.memory_space<smem>>
    %250 = vector.broadcast %249 : f32 to vector<8x16xf32>
    %251 = arith.mulf %250, %13 : vector<8x16xf32>
    %252 = arith.addf %248, %251 : vector<8x16xf32>
    %c40 = arith.constant 40 : index
    %253 = memref.load %arg3[%c40] : memref<288xf32, #tpu.memory_space<smem>>
    %254 = vector.broadcast %253 : f32 to vector<8x16xf32>
    %255 = arith.mulf %254, %14 : vector<8x16xf32>
    %256 = arith.addf %252, %255 : vector<8x16xf32>
    %c41 = arith.constant 41 : index
    %257 = memref.load %arg3[%c41] : memref<288xf32, #tpu.memory_space<smem>>
    %258 = vector.broadcast %257 : f32 to vector<8x16xf32>
    %259 = arith.mulf %258, %15 : vector<8x16xf32>
    %260 = arith.addf %256, %259 : vector<8x16xf32>
    %c42 = arith.constant 42 : index
    %261 = memref.load %arg3[%c42] : memref<288xf32, #tpu.memory_space<smem>>
    %262 = vector.broadcast %261 : f32 to vector<8x16xf32>
    %263 = arith.mulf %262, %20 : vector<8x16xf32>
    %264 = arith.addf %260, %263 : vector<8x16xf32>
    %c43 = arith.constant 43 : index
    %265 = memref.load %arg3[%c43] : memref<288xf32, #tpu.memory_space<smem>>
    %266 = vector.broadcast %265 : f32 to vector<8x16xf32>
    %267 = arith.mulf %266, %21 : vector<8x16xf32>
    %268 = arith.addf %264, %267 : vector<8x16xf32>
    %c44 = arith.constant 44 : index
    %269 = memref.load %arg3[%c44] : memref<288xf32, #tpu.memory_space<smem>>
    %270 = vector.broadcast %269 : f32 to vector<8x16xf32>
    %271 = arith.mulf %270, %22 : vector<8x16xf32>
    %272 = arith.addf %268, %271 : vector<8x16xf32>
    %c45 = arith.constant 45 : index
    %273 = memref.load %arg3[%c45] : memref<288xf32, #tpu.memory_space<smem>>
    %274 = vector.broadcast %273 : f32 to vector<8x16xf32>
    %275 = arith.mulf %274, %27 : vector<8x16xf32>
    %276 = arith.addf %272, %275 : vector<8x16xf32>
    %c46 = arith.constant 46 : index
    %277 = memref.load %arg3[%c46] : memref<288xf32, #tpu.memory_space<smem>>
    %278 = vector.broadcast %277 : f32 to vector<8x16xf32>
    %279 = arith.mulf %278, %28 : vector<8x16xf32>
    %280 = arith.addf %276, %279 : vector<8x16xf32>
    %c47 = arith.constant 47 : index
    %281 = memref.load %arg3[%c47] : memref<288xf32, #tpu.memory_space<smem>>
    %282 = vector.broadcast %281 : f32 to vector<8x16xf32>
    %283 = arith.mulf %282, %29 : vector<8x16xf32>
    %284 = arith.addf %280, %283 : vector<8x16xf32>
    %c48 = arith.constant 48 : index
    %285 = memref.load %arg3[%c48] : memref<288xf32, #tpu.memory_space<smem>>
    %286 = vector.broadcast %285 : f32 to vector<8x16xf32>
    %287 = arith.mulf %286, %34 : vector<8x16xf32>
    %288 = arith.addf %284, %287 : vector<8x16xf32>
    %c49 = arith.constant 49 : index
    %289 = memref.load %arg3[%c49] : memref<288xf32, #tpu.memory_space<smem>>
    %290 = vector.broadcast %289 : f32 to vector<8x16xf32>
    %291 = arith.mulf %290, %35 : vector<8x16xf32>
    %292 = arith.addf %288, %291 : vector<8x16xf32>
    %c50 = arith.constant 50 : index
    %293 = memref.load %arg3[%c50] : memref<288xf32, #tpu.memory_space<smem>>
    %294 = vector.broadcast %293 : f32 to vector<8x16xf32>
    %295 = arith.mulf %294, %36 : vector<8x16xf32>
    %296 = arith.addf %292, %295 : vector<8x16xf32>
    %c51 = arith.constant 51 : index
    %297 = memref.load %arg3[%c51] : memref<288xf32, #tpu.memory_space<smem>>
    %298 = vector.broadcast %297 : f32 to vector<8x16xf32>
    %299 = arith.mulf %298, %41 : vector<8x16xf32>
    %300 = arith.addf %296, %299 : vector<8x16xf32>
    %c52 = arith.constant 52 : index
    %301 = memref.load %arg3[%c52] : memref<288xf32, #tpu.memory_space<smem>>
    %302 = vector.broadcast %301 : f32 to vector<8x16xf32>
    %303 = arith.mulf %302, %42 : vector<8x16xf32>
    %304 = arith.addf %300, %303 : vector<8x16xf32>
    %c53 = arith.constant 53 : index
    %305 = memref.load %arg3[%c53] : memref<288xf32, #tpu.memory_space<smem>>
    %306 = vector.broadcast %305 : f32 to vector<8x16xf32>
    %307 = arith.mulf %306, %43 : vector<8x16xf32>
    %308 = arith.addf %304, %307 : vector<8x16xf32>
    %c54 = arith.constant 54 : index
    %309 = memref.load %arg3[%c54] : memref<288xf32, #tpu.memory_space<smem>>
    %310 = vector.broadcast %309 : f32 to vector<8x16xf32>
    %311 = arith.mulf %310, %48 : vector<8x16xf32>
    %312 = arith.addf %308, %311 : vector<8x16xf32>
    %c55 = arith.constant 55 : index
    %313 = memref.load %arg3[%c55] : memref<288xf32, #tpu.memory_space<smem>>
    %314 = vector.broadcast %313 : f32 to vector<8x16xf32>
    %315 = arith.mulf %314, %49 : vector<8x16xf32>
    %316 = arith.addf %312, %315 : vector<8x16xf32>
    %c56 = arith.constant 56 : index
    %317 = memref.load %arg3[%c56] : memref<288xf32, #tpu.memory_space<smem>>
    %318 = vector.broadcast %317 : f32 to vector<8x16xf32>
    %319 = arith.mulf %318, %50 : vector<8x16xf32>
    %320 = arith.addf %316, %319 : vector<8x16xf32>
    %c57 = arith.constant 57 : index
    %321 = memref.load %arg3[%c57] : memref<288xf32, #tpu.memory_space<smem>>
    %322 = vector.broadcast %321 : f32 to vector<8x16xf32>
    %323 = arith.mulf %322, %55 : vector<8x16xf32>
    %324 = arith.addf %320, %323 : vector<8x16xf32>
    %c58 = arith.constant 58 : index
    %325 = memref.load %arg3[%c58] : memref<288xf32, #tpu.memory_space<smem>>
    %326 = vector.broadcast %325 : f32 to vector<8x16xf32>
    %327 = arith.mulf %326, %56 : vector<8x16xf32>
    %328 = arith.addf %324, %327 : vector<8x16xf32>
    %c59 = arith.constant 59 : index
    %329 = memref.load %arg3[%c59] : memref<288xf32, #tpu.memory_space<smem>>
    %330 = vector.broadcast %329 : f32 to vector<8x16xf32>
    %331 = arith.mulf %330, %57 : vector<8x16xf32>
    %332 = arith.addf %328, %331 : vector<8x16xf32>
    %c60 = arith.constant 60 : index
    %333 = memref.load %arg3[%c60] : memref<288xf32, #tpu.memory_space<smem>>
    %334 = vector.broadcast %333 : f32 to vector<8x16xf32>
    %335 = arith.mulf %334, %62 : vector<8x16xf32>
    %336 = arith.addf %332, %335 : vector<8x16xf32>
    %c61 = arith.constant 61 : index
    %337 = memref.load %arg3[%c61] : memref<288xf32, #tpu.memory_space<smem>>
    %338 = vector.broadcast %337 : f32 to vector<8x16xf32>
    %339 = arith.mulf %338, %63 : vector<8x16xf32>
    %340 = arith.addf %336, %339 : vector<8x16xf32>
    %c62 = arith.constant 62 : index
    %341 = memref.load %arg3[%c62] : memref<288xf32, #tpu.memory_space<smem>>
    %342 = vector.broadcast %341 : f32 to vector<8x16xf32>
    %343 = arith.mulf %342, %64 : vector<8x16xf32>
    %344 = arith.addf %340, %343 : vector<8x16xf32>
    %c63 = arith.constant 63 : index
    %345 = memref.load %arg3[%c63] : memref<288xf32, #tpu.memory_space<smem>>
    %346 = vector.broadcast %345 : f32 to vector<8x16xf32>
    %347 = arith.mulf %346, %69 : vector<8x16xf32>
    %348 = arith.addf %344, %347 : vector<8x16xf32>
    %c64 = arith.constant 64 : index
    %349 = memref.load %arg3[%c64] : memref<288xf32, #tpu.memory_space<smem>>
    %350 = vector.broadcast %349 : f32 to vector<8x16xf32>
    %351 = arith.mulf %350, %70 : vector<8x16xf32>
    %352 = arith.addf %348, %351 : vector<8x16xf32>
    %c65 = arith.constant 65 : index
    %353 = memref.load %arg3[%c65] : memref<288xf32, #tpu.memory_space<smem>>
    %354 = vector.broadcast %353 : f32 to vector<8x16xf32>
    %355 = arith.mulf %354, %71 : vector<8x16xf32>
    %356 = arith.addf %352, %355 : vector<8x16xf32>
    %c66 = arith.constant 66 : index
    %357 = memref.load %arg3[%c66] : memref<288xf32, #tpu.memory_space<smem>>
    %358 = vector.broadcast %357 : f32 to vector<8x16xf32>
    %359 = arith.mulf %358, %76 : vector<8x16xf32>
    %360 = arith.addf %356, %359 : vector<8x16xf32>
    %c67 = arith.constant 67 : index
    %361 = memref.load %arg3[%c67] : memref<288xf32, #tpu.memory_space<smem>>
    %362 = vector.broadcast %361 : f32 to vector<8x16xf32>
    %363 = arith.mulf %362, %77 : vector<8x16xf32>
    %364 = arith.addf %360, %363 : vector<8x16xf32>
    %c68 = arith.constant 68 : index
    %365 = memref.load %arg3[%c68] : memref<288xf32, #tpu.memory_space<smem>>
    %366 = vector.broadcast %365 : f32 to vector<8x16xf32>
    %367 = arith.mulf %366, %78 : vector<8x16xf32>
    %368 = arith.addf %364, %367 : vector<8x16xf32>
    %c69 = arith.constant 69 : index
    %369 = memref.load %arg3[%c69] : memref<288xf32, #tpu.memory_space<smem>>
    %370 = vector.broadcast %369 : f32 to vector<8x16xf32>
    %371 = arith.mulf %370, %83 : vector<8x16xf32>
    %372 = arith.addf %368, %371 : vector<8x16xf32>
    %c70 = arith.constant 70 : index
    %373 = memref.load %arg3[%c70] : memref<288xf32, #tpu.memory_space<smem>>
    %374 = vector.broadcast %373 : f32 to vector<8x16xf32>
    %375 = arith.mulf %374, %84 : vector<8x16xf32>
    %376 = arith.addf %372, %375 : vector<8x16xf32>
    %c71 = arith.constant 71 : index
    %377 = memref.load %arg3[%c71] : memref<288xf32, #tpu.memory_space<smem>>
    %378 = vector.broadcast %377 : f32 to vector<8x16xf32>
    %379 = arith.mulf %378, %85 : vector<8x16xf32>
    %380 = arith.addf %376, %379 : vector<8x16xf32>
    %c0_51 = arith.constant 0 : index
    %c1_52 = arith.constant 1 : index
    %c0_53 = arith.constant 0 : index
    %c0_54 = arith.constant 0 : index
    %381 = vector.load %arg5[%c0_51, %c1_52, %c0_53, %c0_54] : memref<1x8x8x16xf32, #tpu.memory_space<vmem>>, vector<1x1x8x16xf32>
    %382 = vector.shape_cast %381 : vector<1x1x8x16xf32> to vector<8x16xf32>
    %383 = vector.shape_cast %380 : vector<8x16xf32> to vector<1x1x8x16xf32>
    tpu.vector_store %arg5[%c0_51, %c1_52, %c0_53, %c0_54], %383 {strides = array<i32>} : memref<1x8x8x16xf32, #tpu.memory_space<vmem>>, vector<1x1x8x16xf32>,
    %c2_55 = arith.constant 2 : index
    %384 = memref.load %arg4[%c2_55] : memref<8xf32, #tpu.memory_space<smem>>
    %385 = vector.broadcast %384 : f32 to vector<8x16xf32>
    %c72 = arith.constant 72 : index
    %386 = memref.load %arg3[%c72] : memref<288xf32, #tpu.memory_space<smem>>
    %387 = vector.broadcast %386 : f32 to vector<8x16xf32>
    %388 = arith.mulf %387, %6 : vector<8x16xf32>
    %389 = arith.addf %385, %388 : vector<8x16xf32>
    %c73 = arith.constant 73 : index
    %390 = memref.load %arg3[%c73] : memref<288xf32, #tpu.memory_space<smem>>
    %391 = vector.broadcast %390 : f32 to vector<8x16xf32>
    %392 = arith.mulf %391, %7 : vector<8x16xf32>
    %393 = arith.addf %389, %392 : vector<8x16xf32>
    %c74 = arith.constant 74 : index
    %394 = memref.load %arg3[%c74] : memref<288xf32, #tpu.memory_space<smem>>
    %395 = vector.broadcast %394 : f32 to vector<8x16xf32>
    %396 = arith.mulf %395, %8 : vector<8x16xf32>
    %397 = arith.addf %393, %396 : vector<8x16xf32>
    %c75 = arith.constant 75 : index
    %398 = memref.load %arg3[%c75] : memref<288xf32, #tpu.memory_space<smem>>
    %399 = vector.broadcast %398 : f32 to vector<8x16xf32>
    %400 = arith.mulf %399, %13 : vector<8x16xf32>
    %401 = arith.addf %397, %400 : vector<8x16xf32>
    %c76 = arith.constant 76 : index
    %402 = memref.load %arg3[%c76] : memref<288xf32, #tpu.memory_space<smem>>
    %403 = vector.broadcast %402 : f32 to vector<8x16xf32>
    %404 = arith.mulf %403, %14 : vector<8x16xf32>
    %405 = arith.addf %401, %404 : vector<8x16xf32>
    %c77 = arith.constant 77 : index
    %406 = memref.load %arg3[%c77] : memref<288xf32, #tpu.memory_space<smem>>
    %407 = vector.broadcast %406 : f32 to vector<8x16xf32>
    %408 = arith.mulf %407, %15 : vector<8x16xf32>
    %409 = arith.addf %405, %408 : vector<8x16xf32>
    %c78 = arith.constant 78 : index
    %410 = memref.load %arg3[%c78] : memref<288xf32, #tpu.memory_space<smem>>
    %411 = vector.broadcast %410 : f32 to vector<8x16xf32>
    %412 = arith.mulf %411, %20 : vector<8x16xf32>
    %413 = arith.addf %409, %412 : vector<8x16xf32>
    %c79 = arith.constant 79 : index
    %414 = memref.load %arg3[%c79] : memref<288xf32, #tpu.memory_space<smem>>
    %415 = vector.broadcast %414 : f32 to vector<8x16xf32>
    %416 = arith.mulf %415, %21 : vector<8x16xf32>
    %417 = arith.addf %413, %416 : vector<8x16xf32>
    %c80 = arith.constant 80 : index
    %418 = memref.load %arg3[%c80] : memref<288xf32, #tpu.memory_space<smem>>
    %419 = vector.broadcast %418 : f32 to vector<8x16xf32>
    %420 = arith.mulf %419, %22 : vector<8x16xf32>
    %421 = arith.addf %417, %420 : vector<8x16xf32>
    %c81 = arith.constant 81 : index
    %422 = memref.load %arg3[%c81] : memref<288xf32, #tpu.memory_space<smem>>
    %423 = vector.broadcast %422 : f32 to vector<8x16xf32>
    %424 = arith.mulf %423, %27 : vector<8x16xf32>
    %425 = arith.addf %421, %424 : vector<8x16xf32>
    %c82 = arith.constant 82 : index
    %426 = memref.load %arg3[%c82] : memref<288xf32, #tpu.memory_space<smem>>
    %427 = vector.broadcast %426 : f32 to vector<8x16xf32>
    %428 = arith.mulf %427, %28 : vector<8x16xf32>
    %429 = arith.addf %425, %428 : vector<8x16xf32>
    %c83 = arith.constant 83 : index
    %430 = memref.load %arg3[%c83] : memref<288xf32, #tpu.memory_space<smem>>
    %431 = vector.broadcast %430 : f32 to vector<8x16xf32>
    %432 = arith.mulf %431, %29 : vector<8x16xf32>
    %433 = arith.addf %429, %432 : vector<8x16xf32>
    %c84 = arith.constant 84 : index
    %434 = memref.load %arg3[%c84] : memref<288xf32, #tpu.memory_space<smem>>
    %435 = vector.broadcast %434 : f32 to vector<8x16xf32>
    %436 = arith.mulf %435, %34 : vector<8x16xf32>
    %437 = arith.addf %433, %436 : vector<8x16xf32>
    %c85 = arith.constant 85 : index
    %438 = memref.load %arg3[%c85] : memref<288xf32, #tpu.memory_space<smem>>
    %439 = vector.broadcast %438 : f32 to vector<8x16xf32>
    %440 = arith.mulf %439, %35 : vector<8x16xf32>
    %441 = arith.addf %437, %440 : vector<8x16xf32>
    %c86 = arith.constant 86 : index
    %442 = memref.load %arg3[%c86] : memref<288xf32, #tpu.memory_space<smem>>
    %443 = vector.broadcast %442 : f32 to vector<8x16xf32>
    %444 = arith.mulf %443, %36 : vector<8x16xf32>
    %445 = arith.addf %441, %444 : vector<8x16xf32>
    %c87 = arith.constant 87 : index
    %446 = memref.load %arg3[%c87] : memref<288xf32, #tpu.memory_space<smem>>
    %447 = vector.broadcast %446 : f32 to vector<8x16xf32>
    %448 = arith.mulf %447, %41 : vector<8x16xf32>
    %449 = arith.addf %445, %448 : vector<8x16xf32>
    %c88 = arith.constant 88 : index
    %450 = memref.load %arg3[%c88] : memref<288xf32, #tpu.memory_space<smem>>
    %451 = vector.broadcast %450 : f32 to vector<8x16xf32>
    %452 = arith.mulf %451, %42 : vector<8x16xf32>
    %453 = arith.addf %449, %452 : vector<8x16xf32>
    %c89 = arith.constant 89 : index
    %454 = memref.load %arg3[%c89] : memref<288xf32, #tpu.memory_space<smem>>
    %455 = vector.broadcast %454 : f32 to vector<8x16xf32>
    %456 = arith.mulf %455, %43 : vector<8x16xf32>
    %457 = arith.addf %453, %456 : vector<8x16xf32>
    %c90 = arith.constant 90 : index
    %458 = memref.load %arg3[%c90] : memref<288xf32, #tpu.memory_space<smem>>
    %459 = vector.broadcast %458 : f32 to vector<8x16xf32>
    %460 = arith.mulf %459, %48 : vector<8x16xf32>
    %461 = arith.addf %457, %460 : vector<8x16xf32>
    %c91 = arith.constant 91 : index
    %462 = memref.load %arg3[%c91] : memref<288xf32, #tpu.memory_space<smem>>
    %463 = vector.broadcast %462 : f32 to vector<8x16xf32>
    %464 = arith.mulf %463, %49 : vector<8x16xf32>
    %465 = arith.addf %461, %464 : vector<8x16xf32>
    %c92 = arith.constant 92 : index
    %466 = memref.load %arg3[%c92] : memref<288xf32, #tpu.memory_space<smem>>
    %467 = vector.broadcast %466 : f32 to vector<8x16xf32>
    %468 = arith.mulf %467, %50 : vector<8x16xf32>
    %469 = arith.addf %465, %468 : vector<8x16xf32>
    %c93 = arith.constant 93 : index
    %470 = memref.load %arg3[%c93] : memref<288xf32, #tpu.memory_space<smem>>
    %471 = vector.broadcast %470 : f32 to vector<8x16xf32>
    %472 = arith.mulf %471, %55 : vector<8x16xf32>
    %473 = arith.addf %469, %472 : vector<8x16xf32>
    %c94 = arith.constant 94 : index
    %474 = memref.load %arg3[%c94] : memref<288xf32, #tpu.memory_space<smem>>
    %475 = vector.broadcast %474 : f32 to vector<8x16xf32>
    %476 = arith.mulf %475, %56 : vector<8x16xf32>
    %477 = arith.addf %473, %476 : vector<8x16xf32>
    %c95 = arith.constant 95 : index
    %478 = memref.load %arg3[%c95] : memref<288xf32, #tpu.memory_space<smem>>
    %479 = vector.broadcast %478 : f32 to vector<8x16xf32>
    %480 = arith.mulf %479, %57 : vector<8x16xf32>
    %481 = arith.addf %477, %480 : vector<8x16xf32>
    %c96 = arith.constant 96 : index
    %482 = memref.load %arg3[%c96] : memref<288xf32, #tpu.memory_space<smem>>
    %483 = vector.broadcast %482 : f32 to vector<8x16xf32>
    %484 = arith.mulf %483, %62 : vector<8x16xf32>
    %485 = arith.addf %481, %484 : vector<8x16xf32>
    %c97 = arith.constant 97 : index
    %486 = memref.load %arg3[%c97] : memref<288xf32, #tpu.memory_space<smem>>
    %487 = vector.broadcast %486 : f32 to vector<8x16xf32>
    %488 = arith.mulf %487, %63 : vector<8x16xf32>
    %489 = arith.addf %485, %488 : vector<8x16xf32>
    %c98 = arith.constant 98 : index
    %490 = memref.load %arg3[%c98] : memref<288xf32, #tpu.memory_space<smem>>
    %491 = vector.broadcast %490 : f32 to vector<8x16xf32>
    %492 = arith.mulf %491, %64 : vector<8x16xf32>
    %493 = arith.addf %489, %492 : vector<8x16xf32>
    %c99 = arith.constant 99 : index
    %494 = memref.load %arg3[%c99] : memref<288xf32, #tpu.memory_space<smem>>
    %495 = vector.broadcast %494 : f32 to vector<8x16xf32>
    %496 = arith.mulf %495, %69 : vector<8x16xf32>
    %497 = arith.addf %493, %496 : vector<8x16xf32>
    %c100 = arith.constant 100 : index
    %498 = memref.load %arg3[%c100] : memref<288xf32, #tpu.memory_space<smem>>
    %499 = vector.broadcast %498 : f32 to vector<8x16xf32>
    %500 = arith.mulf %499, %70 : vector<8x16xf32>
    %501 = arith.addf %497, %500 : vector<8x16xf32>
    %c101 = arith.constant 101 : index
    %502 = memref.load %arg3[%c101] : memref<288xf32, #tpu.memory_space<smem>>
    %503 = vector.broadcast %502 : f32 to vector<8x16xf32>
    %504 = arith.mulf %503, %71 : vector<8x16xf32>
    %505 = arith.addf %501, %504 : vector<8x16xf32>
    %c102 = arith.constant 102 : index
    %506 = memref.load %arg3[%c102] : memref<288xf32, #tpu.memory_space<smem>>
    %507 = vector.broadcast %506 : f32 to vector<8x16xf32>
    %508 = arith.mulf %507, %76 : vector<8x16xf32>
    %509 = arith.addf %505, %508 : vector<8x16xf32>
    %c103 = arith.constant 103 : index
    %510 = memref.load %arg3[%c103] : memref<288xf32, #tpu.memory_space<smem>>
    %511 = vector.broadcast %510 : f32 to vector<8x16xf32>
    %512 = arith.mulf %511, %77 : vector<8x16xf32>
    %513 = arith.addf %509, %512 : vector<8x16xf32>
    %c104 = arith.constant 104 : index
    %514 = memref.load %arg3[%c104] : memref<288xf32, #tpu.memory_space<smem>>
    %515 = vector.broadcast %514 : f32 to vector<8x16xf32>
    %516 = arith.mulf %515, %78 : vector<8x16xf32>
    %517 = arith.addf %513, %516 : vector<8x16xf32>
    %c105 = arith.constant 105 : index
    %518 = memref.load %arg3[%c105] : memref<288xf32, #tpu.memory_space<smem>>
    %519 = vector.broadcast %518 : f32 to vector<8x16xf32>
    %520 = arith.mulf %519, %83 : vector<8x16xf32>
    %521 = arith.addf %517, %520 : vector<8x16xf32>
    %c106 = arith.constant 106 : index
    %522 = memref.load %arg3[%c106] : memref<288xf32, #tpu.memory_space<smem>>
    %523 = vector.broadcast %522 : f32 to vector<8x16xf32>
    %524 = arith.mulf %523, %84 : vector<8x16xf32>
    %525 = arith.addf %521, %524 : vector<8x16xf32>
    %c107 = arith.constant 107 : index
    %526 = memref.load %arg3[%c107] : memref<288xf32, #tpu.memory_space<smem>>
    %527 = vector.broadcast %526 : f32 to vector<8x16xf32>
    %528 = arith.mulf %527, %85 : vector<8x16xf32>
    %529 = arith.addf %525, %528 : vector<8x16xf32>
    %c0_56 = arith.constant 0 : index
    %c2_57 = arith.constant 2 : index
    %c0_58 = arith.constant 0 : index
    %c0_59 = arith.constant 0 : index
    %530 = vector.load %arg5[%c0_56, %c2_57, %c0_58, %c0_59] : memref<1x8x8x16xf32, #tpu.memory_space<vmem>>, vector<1x1x8x16xf32>
    %531 = vector.shape_cast %530 : vector<1x1x8x16xf32> to vector<8x16xf32>
    %532 = vector.shape_cast %529 : vector<8x16xf32> to vector<1x1x8x16xf32>
    tpu.vector_store %arg5[%c0_56, %c2_57, %c0_58, %c0_59], %532 {strides = array<i32>} : memref<1x8x8x16xf32, #tpu.memory_space<vmem>>, vector<1x1x8x16xf32>,
    %c3_60 = arith.constant 3 : index
    %533 = memref.load %arg4[%c3_60] : memref<8xf32, #tpu.memory_space<smem>>
    %534 = vector.broadcast %533 : f32 to vector<8x16xf32>
    %c108 = arith.constant 108 : index
    %535 = memref.load %arg3[%c108] : memref<288xf32, #tpu.memory_space<smem>>
    %536 = vector.broadcast %535 : f32 to vector<8x16xf32>
    %537 = arith.mulf %536, %6 : vector<8x16xf32>
    %538 = arith.addf %534, %537 : vector<8x16xf32>
    %c109 = arith.constant 109 : index
    %539 = memref.load %arg3[%c109] : memref<288xf32, #tpu.memory_space<smem>>
    %540 = vector.broadcast %539 : f32 to vector<8x16xf32>
    %541 = arith.mulf %540, %7 : vector<8x16xf32>
    %542 = arith.addf %538, %541 : vector<8x16xf32>
    %c110 = arith.constant 110 : index
    %543 = memref.load %arg3[%c110] : memref<288xf32, #tpu.memory_space<smem>>
    %544 = vector.broadcast %543 : f32 to vector<8x16xf32>
    %545 = arith.mulf %544, %8 : vector<8x16xf32>
    %546 = arith.addf %542, %545 : vector<8x16xf32>
    %c111 = arith.constant 111 : index
    %547 = memref.load %arg3[%c111] : memref<288xf32, #tpu.memory_space<smem>>
    %548 = vector.broadcast %547 : f32 to vector<8x16xf32>
    %549 = arith.mulf %548, %13 : vector<8x16xf32>
    %550 = arith.addf %546, %549 : vector<8x16xf32>
    %c112 = arith.constant 112 : index
    %551 = memref.load %arg3[%c112] : memref<288xf32, #tpu.memory_space<smem>>
    %552 = vector.broadcast %551 : f32 to vector<8x16xf32>
    %553 = arith.mulf %552, %14 : vector<8x16xf32>
    %554 = arith.addf %550, %553 : vector<8x16xf32>
    %c113 = arith.constant 113 : index
    %555 = memref.load %arg3[%c113] : memref<288xf32, #tpu.memory_space<smem>>
    %556 = vector.broadcast %555 : f32 to vector<8x16xf32>
    %557 = arith.mulf %556, %15 : vector<8x16xf32>
    %558 = arith.addf %554, %557 : vector<8x16xf32>
    %c114 = arith.constant 114 : index
    %559 = memref.load %arg3[%c114] : memref<288xf32, #tpu.memory_space<smem>>
    %560 = vector.broadcast %559 : f32 to vector<8x16xf32>
    %561 = arith.mulf %560, %20 : vector<8x16xf32>
    %562 = arith.addf %558, %561 : vector<8x16xf32>
    %c115 = arith.constant 115 : index
    %563 = memref.load %arg3[%c115] : memref<288xf32, #tpu.memory_space<smem>>
    %564 = vector.broadcast %563 : f32 to vector<8x16xf32>
    %565 = arith.mulf %564, %21 : vector<8x16xf32>
    %566 = arith.addf %562, %565 : vector<8x16xf32>
    %c116 = arith.constant 116 : index
    %567 = memref.load %arg3[%c116] : memref<288xf32, #tpu.memory_space<smem>>
    %568 = vector.broadcast %567 : f32 to vector<8x16xf32>
    %569 = arith.mulf %568, %22 : vector<8x16xf32>
    %570 = arith.addf %566, %569 : vector<8x16xf32>
    %c117 = arith.constant 117 : index
    %571 = memref.load %arg3[%c117] : memref<288xf32, #tpu.memory_space<smem>>
    %572 = vector.broadcast %571 : f32 to vector<8x16xf32>
    %573 = arith.mulf %572, %27 : vector<8x16xf32>
    %574 = arith.addf %570, %573 : vector<8x16xf32>
    %c118 = arith.constant 118 : index
    %575 = memref.load %arg3[%c118] : memref<288xf32, #tpu.memory_space<smem>>
    %576 = vector.broadcast %575 : f32 to vector<8x16xf32>
    %577 = arith.mulf %576, %28 : vector<8x16xf32>
    %578 = arith.addf %574, %577 : vector<8x16xf32>
    %c119 = arith.constant 119 : index
    %579 = memref.load %arg3[%c119] : memref<288xf32, #tpu.memory_space<smem>>
    %580 = vector.broadcast %579 : f32 to vector<8x16xf32>
    %581 = arith.mulf %580, %29 : vector<8x16xf32>
    %582 = arith.addf %578, %581 : vector<8x16xf32>
    %c120 = arith.constant 120 : index
    %583 = memref.load %arg3[%c120] : memref<288xf32, #tpu.memory_space<smem>>
    %584 = vector.broadcast %583 : f32 to vector<8x16xf32>
    %585 = arith.mulf %584, %34 : vector<8x16xf32>
    %586 = arith.addf %582, %585 : vector<8x16xf32>
    %c121 = arith.constant 121 : index
    %587 = memref.load %arg3[%c121] : memref<288xf32, #tpu.memory_space<smem>>
    %588 = vector.broadcast %587 : f32 to vector<8x16xf32>
    %589 = arith.mulf %588, %35 : vector<8x16xf32>
    %590 = arith.addf %586, %589 : vector<8x16xf32>
    %c122 = arith.constant 122 : index
    %591 = memref.load %arg3[%c122] : memref<288xf32, #tpu.memory_space<smem>>
    %592 = vector.broadcast %591 : f32 to vector<8x16xf32>
    %593 = arith.mulf %592, %36 : vector<8x16xf32>
    %594 = arith.addf %590, %593 : vector<8x16xf32>
    %c123 = arith.constant 123 : index
    %595 = memref.load %arg3[%c123] : memref<288xf32, #tpu.memory_space<smem>>
    %596 = vector.broadcast %595 : f32 to vector<8x16xf32>
    %597 = arith.mulf %596, %41 : vector<8x16xf32>
    %598 = arith.addf %594, %597 : vector<8x16xf32>
    %c124 = arith.constant 124 : index
    %599 = memref.load %arg3[%c124] : memref<288xf32, #tpu.memory_space<smem>>
    %600 = vector.broadcast %599 : f32 to vector<8x16xf32>
    %601 = arith.mulf %600, %42 : vector<8x16xf32>
    %602 = arith.addf %598, %601 : vector<8x16xf32>
    %c125 = arith.constant 125 : index
    %603 = memref.load %arg3[%c125] : memref<288xf32, #tpu.memory_space<smem>>
    %604 = vector.broadcast %603 : f32 to vector<8x16xf32>
    %605 = arith.mulf %604, %43 : vector<8x16xf32>
    %606 = arith.addf %602, %605 : vector<8x16xf32>
    %c126 = arith.constant 126 : index
    %607 = memref.load %arg3[%c126] : memref<288xf32, #tpu.memory_space<smem>>
    %608 = vector.broadcast %607 : f32 to vector<8x16xf32>
    %609 = arith.mulf %608, %48 : vector<8x16xf32>
    %610 = arith.addf %606, %609 : vector<8x16xf32>
    %c127 = arith.constant 127 : index
    %611 = memref.load %arg3[%c127] : memref<288xf32, #tpu.memory_space<smem>>
    %612 = vector.broadcast %611 : f32 to vector<8x16xf32>
    %613 = arith.mulf %612, %49 : vector<8x16xf32>
    %614 = arith.addf %610, %613 : vector<8x16xf32>
    %c128 = arith.constant 128 : index
    %615 = memref.load %arg3[%c128] : memref<288xf32, #tpu.memory_space<smem>>
    %616 = vector.broadcast %615 : f32 to vector<8x16xf32>
    %617 = arith.mulf %616, %50 : vector<8x16xf32>
    %618 = arith.addf %614, %617 : vector<8x16xf32>
    %c129 = arith.constant 129 : index
    %619 = memref.load %arg3[%c129] : memref<288xf32, #tpu.memory_space<smem>>
    %620 = vector.broadcast %619 : f32 to vector<8x16xf32>
    %621 = arith.mulf %620, %55 : vector<8x16xf32>
    %622 = arith.addf %618, %621 : vector<8x16xf32>
    %c130 = arith.constant 130 : index
    %623 = memref.load %arg3[%c130] : memref<288xf32, #tpu.memory_space<smem>>
    %624 = vector.broadcast %623 : f32 to vector<8x16xf32>
    %625 = arith.mulf %624, %56 : vector<8x16xf32>
    %626 = arith.addf %622, %625 : vector<8x16xf32>
    %c131 = arith.constant 131 : index
    %627 = memref.load %arg3[%c131] : memref<288xf32, #tpu.memory_space<smem>>
    %628 = vector.broadcast %627 : f32 to vector<8x16xf32>
    %629 = arith.mulf %628, %57 : vector<8x16xf32>
    %630 = arith.addf %626, %629 : vector<8x16xf32>
    %c132 = arith.constant 132 : index
    %631 = memref.load %arg3[%c132] : memref<288xf32, #tpu.memory_space<smem>>
    %632 = vector.broadcast %631 : f32 to vector<8x16xf32>
    %633 = arith.mulf %632, %62 : vector<8x16xf32>
    %634 = arith.addf %630, %633 : vector<8x16xf32>
    %c133 = arith.constant 133 : index
    %635 = memref.load %arg3[%c133] : memref<288xf32, #tpu.memory_space<smem>>
    %636 = vector.broadcast %635 : f32 to vector<8x16xf32>
    %637 = arith.mulf %636, %63 : vector<8x16xf32>
    %638 = arith.addf %634, %637 : vector<8x16xf32>
    %c134 = arith.constant 134 : index
    %639 = memref.load %arg3[%c134] : memref<288xf32, #tpu.memory_space<smem>>
    %640 = vector.broadcast %639 : f32 to vector<8x16xf32>
    %641 = arith.mulf %640, %64 : vector<8x16xf32>
    %642 = arith.addf %638, %641 : vector<8x16xf32>
    %c135 = arith.constant 135 : index
    %643 = memref.load %arg3[%c135] : memref<288xf32, #tpu.memory_space<smem>>
    %644 = vector.broadcast %643 : f32 to vector<8x16xf32>
    %645 = arith.mulf %644, %69 : vector<8x16xf32>
    %646 = arith.addf %642, %645 : vector<8x16xf32>
    %c136 = arith.constant 136 : index
    %647 = memref.load %arg3[%c136] : memref<288xf32, #tpu.memory_space<smem>>
    %648 = vector.broadcast %647 : f32 to vector<8x16xf32>
    %649 = arith.mulf %648, %70 : vector<8x16xf32>
    %650 = arith.addf %646, %649 : vector<8x16xf32>
    %c137 = arith.constant 137 : index
    %651 = memref.load %arg3[%c137] : memref<288xf32, #tpu.memory_space<smem>>
    %652 = vector.broadcast %651 : f32 to vector<8x16xf32>
    %653 = arith.mulf %652, %71 : vector<8x16xf32>
    %654 = arith.addf %650, %653 : vector<8x16xf32>
    %c138 = arith.constant 138 : index
    %655 = memref.load %arg3[%c138] : memref<288xf32, #tpu.memory_space<smem>>
    %656 = vector.broadcast %655 : f32 to vector<8x16xf32>
    %657 = arith.mulf %656, %76 : vector<8x16xf32>
    %658 = arith.addf %654, %657 : vector<8x16xf32>
    %c139 = arith.constant 139 : index
    %659 = memref.load %arg3[%c139] : memref<288xf32, #tpu.memory_space<smem>>
    %660 = vector.broadcast %659 : f32 to vector<8x16xf32>
    %661 = arith.mulf %660, %77 : vector<8x16xf32>
    %662 = arith.addf %658, %661 : vector<8x16xf32>
    %c140 = arith.constant 140 : index
    %663 = memref.load %arg3[%c140] : memref<288xf32, #tpu.memory_space<smem>>
    %664 = vector.broadcast %663 : f32 to vector<8x16xf32>
    %665 = arith.mulf %664, %78 : vector<8x16xf32>
    %666 = arith.addf %662, %665 : vector<8x16xf32>
    %c141 = arith.constant 141 : index
    %667 = memref.load %arg3[%c141] : memref<288xf32, #tpu.memory_space<smem>>
    %668 = vector.broadcast %667 : f32 to vector<8x16xf32>
    %669 = arith.mulf %668, %83 : vector<8x16xf32>
    %670 = arith.addf %666, %669 : vector<8x16xf32>
    %c142 = arith.constant 142 : index
    %671 = memref.load %arg3[%c142] : memref<288xf32, #tpu.memory_space<smem>>
    %672 = vector.broadcast %671 : f32 to vector<8x16xf32>
    %673 = arith.mulf %672, %84 : vector<8x16xf32>
    %674 = arith.addf %670, %673 : vector<8x16xf32>
    %c143 = arith.constant 143 : index
    %675 = memref.load %arg3[%c143] : memref<288xf32, #tpu.memory_space<smem>>
    %676 = vector.broadcast %675 : f32 to vector<8x16xf32>
    %677 = arith.mulf %676, %85 : vector<8x16xf32>
    %678 = arith.addf %674, %677 : vector<8x16xf32>
    %c0_61 = arith.constant 0 : index
    %c3_62 = arith.constant 3 : index
    %c0_63 = arith.constant 0 : index
    %c0_64 = arith.constant 0 : index
    %679 = vector.load %arg5[%c0_61, %c3_62, %c0_63, %c0_64] : memref<1x8x8x16xf32, #tpu.memory_space<vmem>>, vector<1x1x8x16xf32>
    %680 = vector.shape_cast %679 : vector<1x1x8x16xf32> to vector<8x16xf32>
    %681 = vector.shape_cast %678 : vector<8x16xf32> to vector<1x1x8x16xf32>
    tpu.vector_store %arg5[%c0_61, %c3_62, %c0_63, %c0_64], %681 {strides = array<i32>} : memref<1x8x8x16xf32, #tpu.memory_space<vmem>>, vector<1x1x8x16xf32>,
    %c4_65 = arith.constant 4 : index
    %682 = memref.load %arg4[%c4_65] : memref<8xf32, #tpu.memory_space<smem>>
    %683 = vector.broadcast %682 : f32 to vector<8x16xf32>
    %c144 = arith.constant 144 : index
    %684 = memref.load %arg3[%c144] : memref<288xf32, #tpu.memory_space<smem>>
    %685 = vector.broadcast %684 : f32 to vector<8x16xf32>
    %686 = arith.mulf %685, %6 : vector<8x16xf32>
    %687 = arith.addf %683, %686 : vector<8x16xf32>
    %c145 = arith.constant 145 : index
    %688 = memref.load %arg3[%c145] : memref<288xf32, #tpu.memory_space<smem>>
    %689 = vector.broadcast %688 : f32 to vector<8x16xf32>
    %690 = arith.mulf %689, %7 : vector<8x16xf32>
    %691 = arith.addf %687, %690 : vector<8x16xf32>
    %c146 = arith.constant 146 : index
    %692 = memref.load %arg3[%c146] : memref<288xf32, #tpu.memory_space<smem>>
    %693 = vector.broadcast %692 : f32 to vector<8x16xf32>
    %694 = arith.mulf %693, %8 : vector<8x16xf32>
    %695 = arith.addf %691, %694 : vector<8x16xf32>
    %c147 = arith.constant 147 : index
    %696 = memref.load %arg3[%c147] : memref<288xf32, #tpu.memory_space<smem>>
    %697 = vector.broadcast %696 : f32 to vector<8x16xf32>
    %698 = arith.mulf %697, %13 : vector<8x16xf32>
    %699 = arith.addf %695, %698 : vector<8x16xf32>
    %c148 = arith.constant 148 : index
    %700 = memref.load %arg3[%c148] : memref<288xf32, #tpu.memory_space<smem>>
    %701 = vector.broadcast %700 : f32 to vector<8x16xf32>
    %702 = arith.mulf %701, %14 : vector<8x16xf32>
    %703 = arith.addf %699, %702 : vector<8x16xf32>
    %c149 = arith.constant 149 : index
    %704 = memref.load %arg3[%c149] : memref<288xf32, #tpu.memory_space<smem>>
    %705 = vector.broadcast %704 : f32 to vector<8x16xf32>
    %706 = arith.mulf %705, %15 : vector<8x16xf32>
    %707 = arith.addf %703, %706 : vector<8x16xf32>
    %c150 = arith.constant 150 : index
    %708 = memref.load %arg3[%c150] : memref<288xf32, #tpu.memory_space<smem>>
    %709 = vector.broadcast %708 : f32 to vector<8x16xf32>
    %710 = arith.mulf %709, %20 : vector<8x16xf32>
    %711 = arith.addf %707, %710 : vector<8x16xf32>
    %c151 = arith.constant 151 : index
    %712 = memref.load %arg3[%c151] : memref<288xf32, #tpu.memory_space<smem>>
    %713 = vector.broadcast %712 : f32 to vector<8x16xf32>
    %714 = arith.mulf %713, %21 : vector<8x16xf32>
    %715 = arith.addf %711, %714 : vector<8x16xf32>
    %c152 = arith.constant 152 : index
    %716 = memref.load %arg3[%c152] : memref<288xf32, #tpu.memory_space<smem>>
    %717 = vector.broadcast %716 : f32 to vector<8x16xf32>
    %718 = arith.mulf %717, %22 : vector<8x16xf32>
    %719 = arith.addf %715, %718 : vector<8x16xf32>
    %c153 = arith.constant 153 : index
    %720 = memref.load %arg3[%c153] : memref<288xf32, #tpu.memory_space<smem>>
    %721 = vector.broadcast %720 : f32 to vector<8x16xf32>
    %722 = arith.mulf %721, %27 : vector<8x16xf32>
    %723 = arith.addf %719, %722 : vector<8x16xf32>
    %c154 = arith.constant 154 : index
    %724 = memref.load %arg3[%c154] : memref<288xf32, #tpu.memory_space<smem>>
    %725 = vector.broadcast %724 : f32 to vector<8x16xf32>
    %726 = arith.mulf %725, %28 : vector<8x16xf32>
    %727 = arith.addf %723, %726 : vector<8x16xf32>
    %c155 = arith.constant 155 : index
    %728 = memref.load %arg3[%c155] : memref<288xf32, #tpu.memory_space<smem>>
    %729 = vector.broadcast %728 : f32 to vector<8x16xf32>
    %730 = arith.mulf %729, %29 : vector<8x16xf32>
    %731 = arith.addf %727, %730 : vector<8x16xf32>
    %c156 = arith.constant 156 : index
    %732 = memref.load %arg3[%c156] : memref<288xf32, #tpu.memory_space<smem>>
    %733 = vector.broadcast %732 : f32 to vector<8x16xf32>
    %734 = arith.mulf %733, %34 : vector<8x16xf32>
    %735 = arith.addf %731, %734 : vector<8x16xf32>
    %c157 = arith.constant 157 : index
    %736 = memref.load %arg3[%c157] : memref<288xf32, #tpu.memory_space<smem>>
    %737 = vector.broadcast %736 : f32 to vector<8x16xf32>
    %738 = arith.mulf %737, %35 : vector<8x16xf32>
    %739 = arith.addf %735, %738 : vector<8x16xf32>
    %c158 = arith.constant 158 : index
    %740 = memref.load %arg3[%c158] : memref<288xf32, #tpu.memory_space<smem>>
    %741 = vector.broadcast %740 : f32 to vector<8x16xf32>
    %742 = arith.mulf %741, %36 : vector<8x16xf32>
    %743 = arith.addf %739, %742 : vector<8x16xf32>
    %c159 = arith.constant 159 : index
    %744 = memref.load %arg3[%c159] : memref<288xf32, #tpu.memory_space<smem>>
    %745 = vector.broadcast %744 : f32 to vector<8x16xf32>
    %746 = arith.mulf %745, %41 : vector<8x16xf32>
    %747 = arith.addf %743, %746 : vector<8x16xf32>
    %c160 = arith.constant 160 : index
    %748 = memref.load %arg3[%c160] : memref<288xf32, #tpu.memory_space<smem>>
    %749 = vector.broadcast %748 : f32 to vector<8x16xf32>
    %750 = arith.mulf %749, %42 : vector<8x16xf32>
    %751 = arith.addf %747, %750 : vector<8x16xf32>
    %c161 = arith.constant 161 : index
    %752 = memref.load %arg3[%c161] : memref<288xf32, #tpu.memory_space<smem>>
    %753 = vector.broadcast %752 : f32 to vector<8x16xf32>
    %754 = arith.mulf %753, %43 : vector<8x16xf32>
    %755 = arith.addf %751, %754 : vector<8x16xf32>
    %c162 = arith.constant 162 : index
    %756 = memref.load %arg3[%c162] : memref<288xf32, #tpu.memory_space<smem>>
    %757 = vector.broadcast %756 : f32 to vector<8x16xf32>
    %758 = arith.mulf %757, %48 : vector<8x16xf32>
    %759 = arith.addf %755, %758 : vector<8x16xf32>
    %c163 = arith.constant 163 : index
    %760 = memref.load %arg3[%c163] : memref<288xf32, #tpu.memory_space<smem>>
    %761 = vector.broadcast %760 : f32 to vector<8x16xf32>
    %762 = arith.mulf %761, %49 : vector<8x16xf32>
    %763 = arith.addf %759, %762 : vector<8x16xf32>
    %c164 = arith.constant 164 : index
    %764 = memref.load %arg3[%c164] : memref<288xf32, #tpu.memory_space<smem>>
    %765 = vector.broadcast %764 : f32 to vector<8x16xf32>
    %766 = arith.mulf %765, %50 : vector<8x16xf32>
    %767 = arith.addf %763, %766 : vector<8x16xf32>
    %c165 = arith.constant 165 : index
    %768 = memref.load %arg3[%c165] : memref<288xf32, #tpu.memory_space<smem>>
    %769 = vector.broadcast %768 : f32 to vector<8x16xf32>
    %770 = arith.mulf %769, %55 : vector<8x16xf32>
    %771 = arith.addf %767, %770 : vector<8x16xf32>
    %c166 = arith.constant 166 : index
    %772 = memref.load %arg3[%c166] : memref<288xf32, #tpu.memory_space<smem>>
    %773 = vector.broadcast %772 : f32 to vector<8x16xf32>
    %774 = arith.mulf %773, %56 : vector<8x16xf32>
    %775 = arith.addf %771, %774 : vector<8x16xf32>
    %c167 = arith.constant 167 : index
    %776 = memref.load %arg3[%c167] : memref<288xf32, #tpu.memory_space<smem>>
    %777 = vector.broadcast %776 : f32 to vector<8x16xf32>
    %778 = arith.mulf %777, %57 : vector<8x16xf32>
    %779 = arith.addf %775, %778 : vector<8x16xf32>
    %c168 = arith.constant 168 : index
    %780 = memref.load %arg3[%c168] : memref<288xf32, #tpu.memory_space<smem>>
    %781 = vector.broadcast %780 : f32 to vector<8x16xf32>
    %782 = arith.mulf %781, %62 : vector<8x16xf32>
    %783 = arith.addf %779, %782 : vector<8x16xf32>
    %c169 = arith.constant 169 : index
    %784 = memref.load %arg3[%c169] : memref<288xf32, #tpu.memory_space<smem>>
    %785 = vector.broadcast %784 : f32 to vector<8x16xf32>
    %786 = arith.mulf %785, %63 : vector<8x16xf32>
    %787 = arith.addf %783, %786 : vector<8x16xf32>
    %c170 = arith.constant 170 : index
    %788 = memref.load %arg3[%c170] : memref<288xf32, #tpu.memory_space<smem>>
    %789 = vector.broadcast %788 : f32 to vector<8x16xf32>
    %790 = arith.mulf %789, %64 : vector<8x16xf32>
    %791 = arith.addf %787, %790 : vector<8x16xf32>
    %c171 = arith.constant 171 : index
    %792 = memref.load %arg3[%c171] : memref<288xf32, #tpu.memory_space<smem>>
    %793 = vector.broadcast %792 : f32 to vector<8x16xf32>
    %794 = arith.mulf %793, %69 : vector<8x16xf32>
    %795 = arith.addf %791, %794 : vector<8x16xf32>
    %c172 = arith.constant 172 : index
    %796 = memref.load %arg3[%c172] : memref<288xf32, #tpu.memory_space<smem>>
    %797 = vector.broadcast %796 : f32 to vector<8x16xf32>
    %798 = arith.mulf %797, %70 : vector<8x16xf32>
    %799 = arith.addf %795, %798 : vector<8x16xf32>
    %c173 = arith.constant 173 : index
    %800 = memref.load %arg3[%c173] : memref<288xf32, #tpu.memory_space<smem>>
    %801 = vector.broadcast %800 : f32 to vector<8x16xf32>
    %802 = arith.mulf %801, %71 : vector<8x16xf32>
    %803 = arith.addf %799, %802 : vector<8x16xf32>
    %c174 = arith.constant 174 : index
    %804 = memref.load %arg3[%c174] : memref<288xf32, #tpu.memory_space<smem>>
    %805 = vector.broadcast %804 : f32 to vector<8x16xf32>
    %806 = arith.mulf %805, %76 : vector<8x16xf32>
    %807 = arith.addf %803, %806 : vector<8x16xf32>
    %c175 = arith.constant 175 : index
    %808 = memref.load %arg3[%c175] : memref<288xf32, #tpu.memory_space<smem>>
    %809 = vector.broadcast %808 : f32 to vector<8x16xf32>
    %810 = arith.mulf %809, %77 : vector<8x16xf32>
    %811 = arith.addf %807, %810 : vector<8x16xf32>
    %c176 = arith.constant 176 : index
    %812 = memref.load %arg3[%c176] : memref<288xf32, #tpu.memory_space<smem>>
    %813 = vector.broadcast %812 : f32 to vector<8x16xf32>
    %814 = arith.mulf %813, %78 : vector<8x16xf32>
    %815 = arith.addf %811, %814 : vector<8x16xf32>
    %c177 = arith.constant 177 : index
    %816 = memref.load %arg3[%c177] : memref<288xf32, #tpu.memory_space<smem>>
    %817 = vector.broadcast %816 : f32 to vector<8x16xf32>
    %818 = arith.mulf %817, %83 : vector<8x16xf32>
    %819 = arith.addf %815, %818 : vector<8x16xf32>
    %c178 = arith.constant 178 : index
    %820 = memref.load %arg3[%c178] : memref<288xf32, #tpu.memory_space<smem>>
    %821 = vector.broadcast %820 : f32 to vector<8x16xf32>
    %822 = arith.mulf %821, %84 : vector<8x16xf32>
    %823 = arith.addf %819, %822 : vector<8x16xf32>
    %c179 = arith.constant 179 : index
    %824 = memref.load %arg3[%c179] : memref<288xf32, #tpu.memory_space<smem>>
    %825 = vector.broadcast %824 : f32 to vector<8x16xf32>
    %826 = arith.mulf %825, %85 : vector<8x16xf32>
    %827 = arith.addf %823, %826 : vector<8x16xf32>
    %c0_66 = arith.constant 0 : index
    %c4_67 = arith.constant 4 : index
    %c0_68 = arith.constant 0 : index
    %c0_69 = arith.constant 0 : index
    %828 = vector.load %arg5[%c0_66, %c4_67, %c0_68, %c0_69] : memref<1x8x8x16xf32, #tpu.memory_space<vmem>>, vector<1x1x8x16xf32>
    %829 = vector.shape_cast %828 : vector<1x1x8x16xf32> to vector<8x16xf32>
    %830 = vector.shape_cast %827 : vector<8x16xf32> to vector<1x1x8x16xf32>
    tpu.vector_store %arg5[%c0_66, %c4_67, %c0_68, %c0_69], %830 {strides = array<i32>} : memref<1x8x8x16xf32, #tpu.memory_space<vmem>>, vector<1x1x8x16xf32>,
    %c5_70 = arith.constant 5 : index
    %831 = memref.load %arg4[%c5_70] : memref<8xf32, #tpu.memory_space<smem>>
    %832 = vector.broadcast %831 : f32 to vector<8x16xf32>
    %c180 = arith.constant 180 : index
    %833 = memref.load %arg3[%c180] : memref<288xf32, #tpu.memory_space<smem>>
    %834 = vector.broadcast %833 : f32 to vector<8x16xf32>
    %835 = arith.mulf %834, %6 : vector<8x16xf32>
    %836 = arith.addf %832, %835 : vector<8x16xf32>
    %c181 = arith.constant 181 : index
    %837 = memref.load %arg3[%c181] : memref<288xf32, #tpu.memory_space<smem>>
    %838 = vector.broadcast %837 : f32 to vector<8x16xf32>
    %839 = arith.mulf %838, %7 : vector<8x16xf32>
    %840 = arith.addf %836, %839 : vector<8x16xf32>
    %c182 = arith.constant 182 : index
    %841 = memref.load %arg3[%c182] : memref<288xf32, #tpu.memory_space<smem>>
    %842 = vector.broadcast %841 : f32 to vector<8x16xf32>
    %843 = arith.mulf %842, %8 : vector<8x16xf32>
    %844 = arith.addf %840, %843 : vector<8x16xf32>
    %c183 = arith.constant 183 : index
    %845 = memref.load %arg3[%c183] : memref<288xf32, #tpu.memory_space<smem>>
    %846 = vector.broadcast %845 : f32 to vector<8x16xf32>
    %847 = arith.mulf %846, %13 : vector<8x16xf32>
    %848 = arith.addf %844, %847 : vector<8x16xf32>
    %c184 = arith.constant 184 : index
    %849 = memref.load %arg3[%c184] : memref<288xf32, #tpu.memory_space<smem>>
    %850 = vector.broadcast %849 : f32 to vector<8x16xf32>
    %851 = arith.mulf %850, %14 : vector<8x16xf32>
    %852 = arith.addf %848, %851 : vector<8x16xf32>
    %c185 = arith.constant 185 : index
    %853 = memref.load %arg3[%c185] : memref<288xf32, #tpu.memory_space<smem>>
    %854 = vector.broadcast %853 : f32 to vector<8x16xf32>
    %855 = arith.mulf %854, %15 : vector<8x16xf32>
    %856 = arith.addf %852, %855 : vector<8x16xf32>
    %c186 = arith.constant 186 : index
    %857 = memref.load %arg3[%c186] : memref<288xf32, #tpu.memory_space<smem>>
    %858 = vector.broadcast %857 : f32 to vector<8x16xf32>
    %859 = arith.mulf %858, %20 : vector<8x16xf32>
    %860 = arith.addf %856, %859 : vector<8x16xf32>
    %c187 = arith.constant 187 : index
    %861 = memref.load %arg3[%c187] : memref<288xf32, #tpu.memory_space<smem>>
    %862 = vector.broadcast %861 : f32 to vector<8x16xf32>
    %863 = arith.mulf %862, %21 : vector<8x16xf32>
    %864 = arith.addf %860, %863 : vector<8x16xf32>
    %c188 = arith.constant 188 : index
    %865 = memref.load %arg3[%c188] : memref<288xf32, #tpu.memory_space<smem>>
    %866 = vector.broadcast %865 : f32 to vector<8x16xf32>
    %867 = arith.mulf %866, %22 : vector<8x16xf32>
    %868 = arith.addf %864, %867 : vector<8x16xf32>
    %c189 = arith.constant 189 : index
    %869 = memref.load %arg3[%c189] : memref<288xf32, #tpu.memory_space<smem>>
    %870 = vector.broadcast %869 : f32 to vector<8x16xf32>
    %871 = arith.mulf %870, %27 : vector<8x16xf32>
    %872 = arith.addf %868, %871 : vector<8x16xf32>
    %c190 = arith.constant 190 : index
    %873 = memref.load %arg3[%c190] : memref<288xf32, #tpu.memory_space<smem>>
    %874 = vector.broadcast %873 : f32 to vector<8x16xf32>
    %875 = arith.mulf %874, %28 : vector<8x16xf32>
    %876 = arith.addf %872, %875 : vector<8x16xf32>
    %c191 = arith.constant 191 : index
    %877 = memref.load %arg3[%c191] : memref<288xf32, #tpu.memory_space<smem>>
    %878 = vector.broadcast %877 : f32 to vector<8x16xf32>
    %879 = arith.mulf %878, %29 : vector<8x16xf32>
    %880 = arith.addf %876, %879 : vector<8x16xf32>
    %c192 = arith.constant 192 : index
    %881 = memref.load %arg3[%c192] : memref<288xf32, #tpu.memory_space<smem>>
    %882 = vector.broadcast %881 : f32 to vector<8x16xf32>
    %883 = arith.mulf %882, %34 : vector<8x16xf32>
    %884 = arith.addf %880, %883 : vector<8x16xf32>
    %c193 = arith.constant 193 : index
    %885 = memref.load %arg3[%c193] : memref<288xf32, #tpu.memory_space<smem>>
    %886 = vector.broadcast %885 : f32 to vector<8x16xf32>
    %887 = arith.mulf %886, %35 : vector<8x16xf32>
    %888 = arith.addf %884, %887 : vector<8x16xf32>
    %c194 = arith.constant 194 : index
    %889 = memref.load %arg3[%c194] : memref<288xf32, #tpu.memory_space<smem>>
    %890 = vector.broadcast %889 : f32 to vector<8x16xf32>
    %891 = arith.mulf %890, %36 : vector<8x16xf32>
    %892 = arith.addf %888, %891 : vector<8x16xf32>
    %c195 = arith.constant 195 : index
    %893 = memref.load %arg3[%c195] : memref<288xf32, #tpu.memory_space<smem>>
    %894 = vector.broadcast %893 : f32 to vector<8x16xf32>
    %895 = arith.mulf %894, %41 : vector<8x16xf32>
    %896 = arith.addf %892, %895 : vector<8x16xf32>
    %c196 = arith.constant 196 : index
    %897 = memref.load %arg3[%c196] : memref<288xf32, #tpu.memory_space<smem>>
    %898 = vector.broadcast %897 : f32 to vector<8x16xf32>
    %899 = arith.mulf %898, %42 : vector<8x16xf32>
    %900 = arith.addf %896, %899 : vector<8x16xf32>
    %c197 = arith.constant 197 : index
    %901 = memref.load %arg3[%c197] : memref<288xf32, #tpu.memory_space<smem>>
    %902 = vector.broadcast %901 : f32 to vector<8x16xf32>
    %903 = arith.mulf %902, %43 : vector<8x16xf32>
    %904 = arith.addf %900, %903 : vector<8x16xf32>
    %c198 = arith.constant 198 : index
    %905 = memref.load %arg3[%c198] : memref<288xf32, #tpu.memory_space<smem>>
    %906 = vector.broadcast %905 : f32 to vector<8x16xf32>
    %907 = arith.mulf %906, %48 : vector<8x16xf32>
    %908 = arith.addf %904, %907 : vector<8x16xf32>
    %c199 = arith.constant 199 : index
    %909 = memref.load %arg3[%c199] : memref<288xf32, #tpu.memory_space<smem>>
    %910 = vector.broadcast %909 : f32 to vector<8x16xf32>
    %911 = arith.mulf %910, %49 : vector<8x16xf32>
    %912 = arith.addf %908, %911 : vector<8x16xf32>
    %c200 = arith.constant 200 : index
    %913 = memref.load %arg3[%c200] : memref<288xf32, #tpu.memory_space<smem>>
    %914 = vector.broadcast %913 : f32 to vector<8x16xf32>
    %915 = arith.mulf %914, %50 : vector<8x16xf32>
    %916 = arith.addf %912, %915 : vector<8x16xf32>
    %c201 = arith.constant 201 : index
    %917 = memref.load %arg3[%c201] : memref<288xf32, #tpu.memory_space<smem>>
    %918 = vector.broadcast %917 : f32 to vector<8x16xf32>
    %919 = arith.mulf %918, %55 : vector<8x16xf32>
    %920 = arith.addf %916, %919 : vector<8x16xf32>
    %c202 = arith.constant 202 : index
    %921 = memref.load %arg3[%c202] : memref<288xf32, #tpu.memory_space<smem>>
    %922 = vector.broadcast %921 : f32 to vector<8x16xf32>
    %923 = arith.mulf %922, %56 : vector<8x16xf32>
    %924 = arith.addf %920, %923 : vector<8x16xf32>
    %c203 = arith.constant 203 : index
    %925 = memref.load %arg3[%c203] : memref<288xf32, #tpu.memory_space<smem>>
    %926 = vector.broadcast %925 : f32 to vector<8x16xf32>
    %927 = arith.mulf %926, %57 : vector<8x16xf32>
    %928 = arith.addf %924, %927 : vector<8x16xf32>
    %c204 = arith.constant 204 : index
    %929 = memref.load %arg3[%c204] : memref<288xf32, #tpu.memory_space<smem>>
    %930 = vector.broadcast %929 : f32 to vector<8x16xf32>
    %931 = arith.mulf %930, %62 : vector<8x16xf32>
    %932 = arith.addf %928, %931 : vector<8x16xf32>
    %c205 = arith.constant 205 : index
    %933 = memref.load %arg3[%c205] : memref<288xf32, #tpu.memory_space<smem>>
    %934 = vector.broadcast %933 : f32 to vector<8x16xf32>
    %935 = arith.mulf %934, %63 : vector<8x16xf32>
    %936 = arith.addf %932, %935 : vector<8x16xf32>
    %c206 = arith.constant 206 : index
    %937 = memref.load %arg3[%c206] : memref<288xf32, #tpu.memory_space<smem>>
    %938 = vector.broadcast %937 : f32 to vector<8x16xf32>
    %939 = arith.mulf %938, %64 : vector<8x16xf32>
    %940 = arith.addf %936, %939 : vector<8x16xf32>
    %c207 = arith.constant 207 : index
    %941 = memref.load %arg3[%c207] : memref<288xf32, #tpu.memory_space<smem>>
    %942 = vector.broadcast %941 : f32 to vector<8x16xf32>
    %943 = arith.mulf %942, %69 : vector<8x16xf32>
    %944 = arith.addf %940, %943 : vector<8x16xf32>
    %c208 = arith.constant 208 : index
    %945 = memref.load %arg3[%c208] : memref<288xf32, #tpu.memory_space<smem>>
    %946 = vector.broadcast %945 : f32 to vector<8x16xf32>
    %947 = arith.mulf %946, %70 : vector<8x16xf32>
    %948 = arith.addf %944, %947 : vector<8x16xf32>
    %c209 = arith.constant 209 : index
    %949 = memref.load %arg3[%c209] : memref<288xf32, #tpu.memory_space<smem>>
    %950 = vector.broadcast %949 : f32 to vector<8x16xf32>
    %951 = arith.mulf %950, %71 : vector<8x16xf32>
    %952 = arith.addf %948, %951 : vector<8x16xf32>
    %c210 = arith.constant 210 : index
    %953 = memref.load %arg3[%c210] : memref<288xf32, #tpu.memory_space<smem>>
    %954 = vector.broadcast %953 : f32 to vector<8x16xf32>
    %955 = arith.mulf %954, %76 : vector<8x16xf32>
    %956 = arith.addf %952, %955 : vector<8x16xf32>
    %c211 = arith.constant 211 : index
    %957 = memref.load %arg3[%c211] : memref<288xf32, #tpu.memory_space<smem>>
    %958 = vector.broadcast %957 : f32 to vector<8x16xf32>
    %959 = arith.mulf %958, %77 : vector<8x16xf32>
    %960 = arith.addf %956, %959 : vector<8x16xf32>
    %c212 = arith.constant 212 : index
    %961 = memref.load %arg3[%c212] : memref<288xf32, #tpu.memory_space<smem>>
    %962 = vector.broadcast %961 : f32 to vector<8x16xf32>
    %963 = arith.mulf %962, %78 : vector<8x16xf32>
    %964 = arith.addf %960, %963 : vector<8x16xf32>
    %c213 = arith.constant 213 : index
    %965 = memref.load %arg3[%c213] : memref<288xf32, #tpu.memory_space<smem>>
    %966 = vector.broadcast %965 : f32 to vector<8x16xf32>
    %967 = arith.mulf %966, %83 : vector<8x16xf32>
    %968 = arith.addf %964, %967 : vector<8x16xf32>
    %c214 = arith.constant 214 : index
    %969 = memref.load %arg3[%c214] : memref<288xf32, #tpu.memory_space<smem>>
    %970 = vector.broadcast %969 : f32 to vector<8x16xf32>
    %971 = arith.mulf %970, %84 : vector<8x16xf32>
    %972 = arith.addf %968, %971 : vector<8x16xf32>
    %c215 = arith.constant 215 : index
    %973 = memref.load %arg3[%c215] : memref<288xf32, #tpu.memory_space<smem>>
    %974 = vector.broadcast %973 : f32 to vector<8x16xf32>
    %975 = arith.mulf %974, %85 : vector<8x16xf32>
    %976 = arith.addf %972, %975 : vector<8x16xf32>
    %c0_71 = arith.constant 0 : index
    %c5_72 = arith.constant 5 : index
    %c0_73 = arith.constant 0 : index
    %c0_74 = arith.constant 0 : index
    %977 = vector.load %arg5[%c0_71, %c5_72, %c0_73, %c0_74] : memref<1x8x8x16xf32, #tpu.memory_space<vmem>>, vector<1x1x8x16xf32>
    %978 = vector.shape_cast %977 : vector<1x1x8x16xf32> to vector<8x16xf32>
    %979 = vector.shape_cast %976 : vector<8x16xf32> to vector<1x1x8x16xf32>
    tpu.vector_store %arg5[%c0_71, %c5_72, %c0_73, %c0_74], %979 {strides = array<i32>} : memref<1x8x8x16xf32, #tpu.memory_space<vmem>>, vector<1x1x8x16xf32>,
    %c6_75 = arith.constant 6 : index
    %980 = memref.load %arg4[%c6_75] : memref<8xf32, #tpu.memory_space<smem>>
    %981 = vector.broadcast %980 : f32 to vector<8x16xf32>
    %c216 = arith.constant 216 : index
    %982 = memref.load %arg3[%c216] : memref<288xf32, #tpu.memory_space<smem>>
    %983 = vector.broadcast %982 : f32 to vector<8x16xf32>
    %984 = arith.mulf %983, %6 : vector<8x16xf32>
    %985 = arith.addf %981, %984 : vector<8x16xf32>
    %c217 = arith.constant 217 : index
    %986 = memref.load %arg3[%c217] : memref<288xf32, #tpu.memory_space<smem>>
    %987 = vector.broadcast %986 : f32 to vector<8x16xf32>
    %988 = arith.mulf %987, %7 : vector<8x16xf32>
    %989 = arith.addf %985, %988 : vector<8x16xf32>
    %c218 = arith.constant 218 : index
    %990 = memref.load %arg3[%c218] : memref<288xf32, #tpu.memory_space<smem>>
    %991 = vector.broadcast %990 : f32 to vector<8x16xf32>
    %992 = arith.mulf %991, %8 : vector<8x16xf32>
    %993 = arith.addf %989, %992 : vector<8x16xf32>
    %c219 = arith.constant 219 : index
    %994 = memref.load %arg3[%c219] : memref<288xf32, #tpu.memory_space<smem>>
    %995 = vector.broadcast %994 : f32 to vector<8x16xf32>
    %996 = arith.mulf %995, %13 : vector<8x16xf32>
    %997 = arith.addf %993, %996 : vector<8x16xf32>
    %c220 = arith.constant 220 : index
    %998 = memref.load %arg3[%c220] : memref<288xf32, #tpu.memory_space<smem>>
    %999 = vector.broadcast %998 : f32 to vector<8x16xf32>
    %1000 = arith.mulf %999, %14 : vector<8x16xf32>
    %1001 = arith.addf %997, %1000 : vector<8x16xf32>
    %c221 = arith.constant 221 : index
    %1002 = memref.load %arg3[%c221] : memref<288xf32, #tpu.memory_space<smem>>
    %1003 = vector.broadcast %1002 : f32 to vector<8x16xf32>
    %1004 = arith.mulf %1003, %15 : vector<8x16xf32>
    %1005 = arith.addf %1001, %1004 : vector<8x16xf32>
    %c222 = arith.constant 222 : index
    %1006 = memref.load %arg3[%c222] : memref<288xf32, #tpu.memory_space<smem>>
    %1007 = vector.broadcast %1006 : f32 to vector<8x16xf32>
    %1008 = arith.mulf %1007, %20 : vector<8x16xf32>
    %1009 = arith.addf %1005, %1008 : vector<8x16xf32>
    %c223 = arith.constant 223 : index
    %1010 = memref.load %arg3[%c223] : memref<288xf32, #tpu.memory_space<smem>>
    %1011 = vector.broadcast %1010 : f32 to vector<8x16xf32>
    %1012 = arith.mulf %1011, %21 : vector<8x16xf32>
    %1013 = arith.addf %1009, %1012 : vector<8x16xf32>
    %c224 = arith.constant 224 : index
    %1014 = memref.load %arg3[%c224] : memref<288xf32, #tpu.memory_space<smem>>
    %1015 = vector.broadcast %1014 : f32 to vector<8x16xf32>
    %1016 = arith.mulf %1015, %22 : vector<8x16xf32>
    %1017 = arith.addf %1013, %1016 : vector<8x16xf32>
    %c225 = arith.constant 225 : index
    %1018 = memref.load %arg3[%c225] : memref<288xf32, #tpu.memory_space<smem>>
    %1019 = vector.broadcast %1018 : f32 to vector<8x16xf32>
    %1020 = arith.mulf %1019, %27 : vector<8x16xf32>
    %1021 = arith.addf %1017, %1020 : vector<8x16xf32>
    %c226 = arith.constant 226 : index
    %1022 = memref.load %arg3[%c226] : memref<288xf32, #tpu.memory_space<smem>>
    %1023 = vector.broadcast %1022 : f32 to vector<8x16xf32>
    %1024 = arith.mulf %1023, %28 : vector<8x16xf32>
    %1025 = arith.addf %1021, %1024 : vector<8x16xf32>
    %c227 = arith.constant 227 : index
    %1026 = memref.load %arg3[%c227] : memref<288xf32, #tpu.memory_space<smem>>
    %1027 = vector.broadcast %1026 : f32 to vector<8x16xf32>
    %1028 = arith.mulf %1027, %29 : vector<8x16xf32>
    %1029 = arith.addf %1025, %1028 : vector<8x16xf32>
    %c228 = arith.constant 228 : index
    %1030 = memref.load %arg3[%c228] : memref<288xf32, #tpu.memory_space<smem>>
    %1031 = vector.broadcast %1030 : f32 to vector<8x16xf32>
    %1032 = arith.mulf %1031, %34 : vector<8x16xf32>
    %1033 = arith.addf %1029, %1032 : vector<8x16xf32>
    %c229 = arith.constant 229 : index
    %1034 = memref.load %arg3[%c229] : memref<288xf32, #tpu.memory_space<smem>>
    %1035 = vector.broadcast %1034 : f32 to vector<8x16xf32>
    %1036 = arith.mulf %1035, %35 : vector<8x16xf32>
    %1037 = arith.addf %1033, %1036 : vector<8x16xf32>
    %c230 = arith.constant 230 : index
    %1038 = memref.load %arg3[%c230] : memref<288xf32, #tpu.memory_space<smem>>
    %1039 = vector.broadcast %1038 : f32 to vector<8x16xf32>
    %1040 = arith.mulf %1039, %36 : vector<8x16xf32>
    %1041 = arith.addf %1037, %1040 : vector<8x16xf32>
    %c231 = arith.constant 231 : index
    %1042 = memref.load %arg3[%c231] : memref<288xf32, #tpu.memory_space<smem>>
    %1043 = vector.broadcast %1042 : f32 to vector<8x16xf32>
    %1044 = arith.mulf %1043, %41 : vector<8x16xf32>
    %1045 = arith.addf %1041, %1044 : vector<8x16xf32>
    %c232 = arith.constant 232 : index
    %1046 = memref.load %arg3[%c232] : memref<288xf32, #tpu.memory_space<smem>>
    %1047 = vector.broadcast %1046 : f32 to vector<8x16xf32>
    %1048 = arith.mulf %1047, %42 : vector<8x16xf32>
    %1049 = arith.addf %1045, %1048 : vector<8x16xf32>
    %c233 = arith.constant 233 : index
    %1050 = memref.load %arg3[%c233] : memref<288xf32, #tpu.memory_space<smem>>
    %1051 = vector.broadcast %1050 : f32 to vector<8x16xf32>
    %1052 = arith.mulf %1051, %43 : vector<8x16xf32>
    %1053 = arith.addf %1049, %1052 : vector<8x16xf32>
    %c234 = arith.constant 234 : index
    %1054 = memref.load %arg3[%c234] : memref<288xf32, #tpu.memory_space<smem>>
    %1055 = vector.broadcast %1054 : f32 to vector<8x16xf32>
    %1056 = arith.mulf %1055, %48 : vector<8x16xf32>
    %1057 = arith.addf %1053, %1056 : vector<8x16xf32>
    %c235 = arith.constant 235 : index
    %1058 = memref.load %arg3[%c235] : memref<288xf32, #tpu.memory_space<smem>>
    %1059 = vector.broadcast %1058 : f32 to vector<8x16xf32>
    %1060 = arith.mulf %1059, %49 : vector<8x16xf32>
    %1061 = arith.addf %1057, %1060 : vector<8x16xf32>
    %c236 = arith.constant 236 : index
    %1062 = memref.load %arg3[%c236] : memref<288xf32, #tpu.memory_space<smem>>
    %1063 = vector.broadcast %1062 : f32 to vector<8x16xf32>
    %1064 = arith.mulf %1063, %50 : vector<8x16xf32>
    %1065 = arith.addf %1061, %1064 : vector<8x16xf32>
    %c237 = arith.constant 237 : index
    %1066 = memref.load %arg3[%c237] : memref<288xf32, #tpu.memory_space<smem>>
    %1067 = vector.broadcast %1066 : f32 to vector<8x16xf32>
    %1068 = arith.mulf %1067, %55 : vector<8x16xf32>
    %1069 = arith.addf %1065, %1068 : vector<8x16xf32>
    %c238 = arith.constant 238 : index
    %1070 = memref.load %arg3[%c238] : memref<288xf32, #tpu.memory_space<smem>>
    %1071 = vector.broadcast %1070 : f32 to vector<8x16xf32>
    %1072 = arith.mulf %1071, %56 : vector<8x16xf32>
    %1073 = arith.addf %1069, %1072 : vector<8x16xf32>
    %c239 = arith.constant 239 : index
    %1074 = memref.load %arg3[%c239] : memref<288xf32, #tpu.memory_space<smem>>
    %1075 = vector.broadcast %1074 : f32 to vector<8x16xf32>
    %1076 = arith.mulf %1075, %57 : vector<8x16xf32>
    %1077 = arith.addf %1073, %1076 : vector<8x16xf32>
    %c240 = arith.constant 240 : index
    %1078 = memref.load %arg3[%c240] : memref<288xf32, #tpu.memory_space<smem>>
    %1079 = vector.broadcast %1078 : f32 to vector<8x16xf32>
    %1080 = arith.mulf %1079, %62 : vector<8x16xf32>
    %1081 = arith.addf %1077, %1080 : vector<8x16xf32>
    %c241 = arith.constant 241 : index
    %1082 = memref.load %arg3[%c241] : memref<288xf32, #tpu.memory_space<smem>>
    %1083 = vector.broadcast %1082 : f32 to vector<8x16xf32>
    %1084 = arith.mulf %1083, %63 : vector<8x16xf32>
    %1085 = arith.addf %1081, %1084 : vector<8x16xf32>
    %c242 = arith.constant 242 : index
    %1086 = memref.load %arg3[%c242] : memref<288xf32, #tpu.memory_space<smem>>
    %1087 = vector.broadcast %1086 : f32 to vector<8x16xf32>
    %1088 = arith.mulf %1087, %64 : vector<8x16xf32>
    %1089 = arith.addf %1085, %1088 : vector<8x16xf32>
    %c243 = arith.constant 243 : index
    %1090 = memref.load %arg3[%c243] : memref<288xf32, #tpu.memory_space<smem>>
    %1091 = vector.broadcast %1090 : f32 to vector<8x16xf32>
    %1092 = arith.mulf %1091, %69 : vector<8x16xf32>
    %1093 = arith.addf %1089, %1092 : vector<8x16xf32>
    %c244 = arith.constant 244 : index
    %1094 = memref.load %arg3[%c244] : memref<288xf32, #tpu.memory_space<smem>>
    %1095 = vector.broadcast %1094 : f32 to vector<8x16xf32>
    %1096 = arith.mulf %1095, %70 : vector<8x16xf32>
    %1097 = arith.addf %1093, %1096 : vector<8x16xf32>
    %c245 = arith.constant 245 : index
    %1098 = memref.load %arg3[%c245] : memref<288xf32, #tpu.memory_space<smem>>
    %1099 = vector.broadcast %1098 : f32 to vector<8x16xf32>
    %1100 = arith.mulf %1099, %71 : vector<8x16xf32>
    %1101 = arith.addf %1097, %1100 : vector<8x16xf32>
    %c246 = arith.constant 246 : index
    %1102 = memref.load %arg3[%c246] : memref<288xf32, #tpu.memory_space<smem>>
    %1103 = vector.broadcast %1102 : f32 to vector<8x16xf32>
    %1104 = arith.mulf %1103, %76 : vector<8x16xf32>
    %1105 = arith.addf %1101, %1104 : vector<8x16xf32>
    %c247 = arith.constant 247 : index
    %1106 = memref.load %arg3[%c247] : memref<288xf32, #tpu.memory_space<smem>>
    %1107 = vector.broadcast %1106 : f32 to vector<8x16xf32>
    %1108 = arith.mulf %1107, %77 : vector<8x16xf32>
    %1109 = arith.addf %1105, %1108 : vector<8x16xf32>
    %c248 = arith.constant 248 : index
    %1110 = memref.load %arg3[%c248] : memref<288xf32, #tpu.memory_space<smem>>
    %1111 = vector.broadcast %1110 : f32 to vector<8x16xf32>
    %1112 = arith.mulf %1111, %78 : vector<8x16xf32>
    %1113 = arith.addf %1109, %1112 : vector<8x16xf32>
    %c249 = arith.constant 249 : index
    %1114 = memref.load %arg3[%c249] : memref<288xf32, #tpu.memory_space<smem>>
    %1115 = vector.broadcast %1114 : f32 to vector<8x16xf32>
    %1116 = arith.mulf %1115, %83 : vector<8x16xf32>
    %1117 = arith.addf %1113, %1116 : vector<8x16xf32>
    %c250 = arith.constant 250 : index
    %1118 = memref.load %arg3[%c250] : memref<288xf32, #tpu.memory_space<smem>>
    %1119 = vector.broadcast %1118 : f32 to vector<8x16xf32>
    %1120 = arith.mulf %1119, %84 : vector<8x16xf32>
    %1121 = arith.addf %1117, %1120 : vector<8x16xf32>
    %c251 = arith.constant 251 : index
    %1122 = memref.load %arg3[%c251] : memref<288xf32, #tpu.memory_space<smem>>
    %1123 = vector.broadcast %1122 : f32 to vector<8x16xf32>
    %1124 = arith.mulf %1123, %85 : vector<8x16xf32>
    %1125 = arith.addf %1121, %1124 : vector<8x16xf32>
    %c0_76 = arith.constant 0 : index
    %c6_77 = arith.constant 6 : index
    %c0_78 = arith.constant 0 : index
    %c0_79 = arith.constant 0 : index
    %1126 = vector.load %arg5[%c0_76, %c6_77, %c0_78, %c0_79] : memref<1x8x8x16xf32, #tpu.memory_space<vmem>>, vector<1x1x8x16xf32>
    %1127 = vector.shape_cast %1126 : vector<1x1x8x16xf32> to vector<8x16xf32>
    %1128 = vector.shape_cast %1125 : vector<8x16xf32> to vector<1x1x8x16xf32>
    tpu.vector_store %arg5[%c0_76, %c6_77, %c0_78, %c0_79], %1128 {strides = array<i32>} : memref<1x8x8x16xf32, #tpu.memory_space<vmem>>, vector<1x1x8x16xf32>,
    %c7_80 = arith.constant 7 : index
    %1129 = memref.load %arg4[%c7_80] : memref<8xf32, #tpu.memory_space<smem>>
    %1130 = vector.broadcast %1129 : f32 to vector<8x16xf32>
    %c252 = arith.constant 252 : index
    %1131 = memref.load %arg3[%c252] : memref<288xf32, #tpu.memory_space<smem>>
    %1132 = vector.broadcast %1131 : f32 to vector<8x16xf32>
    %1133 = arith.mulf %1132, %6 : vector<8x16xf32>
    %1134 = arith.addf %1130, %1133 : vector<8x16xf32>
    %c253 = arith.constant 253 : index
    %1135 = memref.load %arg3[%c253] : memref<288xf32, #tpu.memory_space<smem>>
    %1136 = vector.broadcast %1135 : f32 to vector<8x16xf32>
    %1137 = arith.mulf %1136, %7 : vector<8x16xf32>
    %1138 = arith.addf %1134, %1137 : vector<8x16xf32>
    %c254 = arith.constant 254 : index
    %1139 = memref.load %arg3[%c254] : memref<288xf32, #tpu.memory_space<smem>>
    %1140 = vector.broadcast %1139 : f32 to vector<8x16xf32>
    %1141 = arith.mulf %1140, %8 : vector<8x16xf32>
    %1142 = arith.addf %1138, %1141 : vector<8x16xf32>
    %c255 = arith.constant 255 : index
    %1143 = memref.load %arg3[%c255] : memref<288xf32, #tpu.memory_space<smem>>
    %1144 = vector.broadcast %1143 : f32 to vector<8x16xf32>
    %1145 = arith.mulf %1144, %13 : vector<8x16xf32>
    %1146 = arith.addf %1142, %1145 : vector<8x16xf32>
    %c256 = arith.constant 256 : index
    %1147 = memref.load %arg3[%c256] : memref<288xf32, #tpu.memory_space<smem>>
    %1148 = vector.broadcast %1147 : f32 to vector<8x16xf32>
    %1149 = arith.mulf %1148, %14 : vector<8x16xf32>
    %1150 = arith.addf %1146, %1149 : vector<8x16xf32>
    %c257 = arith.constant 257 : index
    %1151 = memref.load %arg3[%c257] : memref<288xf32, #tpu.memory_space<smem>>
    %1152 = vector.broadcast %1151 : f32 to vector<8x16xf32>
    %1153 = arith.mulf %1152, %15 : vector<8x16xf32>
    %1154 = arith.addf %1150, %1153 : vector<8x16xf32>
    %c258 = arith.constant 258 : index
    %1155 = memref.load %arg3[%c258] : memref<288xf32, #tpu.memory_space<smem>>
    %1156 = vector.broadcast %1155 : f32 to vector<8x16xf32>
    %1157 = arith.mulf %1156, %20 : vector<8x16xf32>
    %1158 = arith.addf %1154, %1157 : vector<8x16xf32>
    %c259 = arith.constant 259 : index
    %1159 = memref.load %arg3[%c259] : memref<288xf32, #tpu.memory_space<smem>>
    %1160 = vector.broadcast %1159 : f32 to vector<8x16xf32>
    %1161 = arith.mulf %1160, %21 : vector<8x16xf32>
    %1162 = arith.addf %1158, %1161 : vector<8x16xf32>
    %c260 = arith.constant 260 : index
    %1163 = memref.load %arg3[%c260] : memref<288xf32, #tpu.memory_space<smem>>
    %1164 = vector.broadcast %1163 : f32 to vector<8x16xf32>
    %1165 = arith.mulf %1164, %22 : vector<8x16xf32>
    %1166 = arith.addf %1162, %1165 : vector<8x16xf32>
    %c261 = arith.constant 261 : index
    %1167 = memref.load %arg3[%c261] : memref<288xf32, #tpu.memory_space<smem>>
    %1168 = vector.broadcast %1167 : f32 to vector<8x16xf32>
    %1169 = arith.mulf %1168, %27 : vector<8x16xf32>
    %1170 = arith.addf %1166, %1169 : vector<8x16xf32>
    %c262 = arith.constant 262 : index
    %1171 = memref.load %arg3[%c262] : memref<288xf32, #tpu.memory_space<smem>>
    %1172 = vector.broadcast %1171 : f32 to vector<8x16xf32>
    %1173 = arith.mulf %1172, %28 : vector<8x16xf32>
    %1174 = arith.addf %1170, %1173 : vector<8x16xf32>
    %c263 = arith.constant 263 : index
    %1175 = memref.load %arg3[%c263] : memref<288xf32, #tpu.memory_space<smem>>
    %1176 = vector.broadcast %1175 : f32 to vector<8x16xf32>
    %1177 = arith.mulf %1176, %29 : vector<8x16xf32>
    %1178 = arith.addf %1174, %1177 : vector<8x16xf32>
    %c264 = arith.constant 264 : index
    %1179 = memref.load %arg3[%c264] : memref<288xf32, #tpu.memory_space<smem>>
    %1180 = vector.broadcast %1179 : f32 to vector<8x16xf32>
    %1181 = arith.mulf %1180, %34 : vector<8x16xf32>
    %1182 = arith.addf %1178, %1181 : vector<8x16xf32>
    %c265 = arith.constant 265 : index
    %1183 = memref.load %arg3[%c265] : memref<288xf32, #tpu.memory_space<smem>>
    %1184 = vector.broadcast %1183 : f32 to vector<8x16xf32>
    %1185 = arith.mulf %1184, %35 : vector<8x16xf32>
    %1186 = arith.addf %1182, %1185 : vector<8x16xf32>
    %c266 = arith.constant 266 : index
    %1187 = memref.load %arg3[%c266] : memref<288xf32, #tpu.memory_space<smem>>
    %1188 = vector.broadcast %1187 : f32 to vector<8x16xf32>
    %1189 = arith.mulf %1188, %36 : vector<8x16xf32>
    %1190 = arith.addf %1186, %1189 : vector<8x16xf32>
    %c267 = arith.constant 267 : index
    %1191 = memref.load %arg3[%c267] : memref<288xf32, #tpu.memory_space<smem>>
    %1192 = vector.broadcast %1191 : f32 to vector<8x16xf32>
    %1193 = arith.mulf %1192, %41 : vector<8x16xf32>
    %1194 = arith.addf %1190, %1193 : vector<8x16xf32>
    %c268 = arith.constant 268 : index
    %1195 = memref.load %arg3[%c268] : memref<288xf32, #tpu.memory_space<smem>>
    %1196 = vector.broadcast %1195 : f32 to vector<8x16xf32>
    %1197 = arith.mulf %1196, %42 : vector<8x16xf32>
    %1198 = arith.addf %1194, %1197 : vector<8x16xf32>
    %c269 = arith.constant 269 : index
    %1199 = memref.load %arg3[%c269] : memref<288xf32, #tpu.memory_space<smem>>
    %1200 = vector.broadcast %1199 : f32 to vector<8x16xf32>
    %1201 = arith.mulf %1200, %43 : vector<8x16xf32>
    %1202 = arith.addf %1198, %1201 : vector<8x16xf32>
    %c270 = arith.constant 270 : index
    %1203 = memref.load %arg3[%c270] : memref<288xf32, #tpu.memory_space<smem>>
    %1204 = vector.broadcast %1203 : f32 to vector<8x16xf32>
    %1205 = arith.mulf %1204, %48 : vector<8x16xf32>
    %1206 = arith.addf %1202, %1205 : vector<8x16xf32>
    %c271 = arith.constant 271 : index
    %1207 = memref.load %arg3[%c271] : memref<288xf32, #tpu.memory_space<smem>>
    %1208 = vector.broadcast %1207 : f32 to vector<8x16xf32>
    %1209 = arith.mulf %1208, %49 : vector<8x16xf32>
    %1210 = arith.addf %1206, %1209 : vector<8x16xf32>
    %c272 = arith.constant 272 : index
    %1211 = memref.load %arg3[%c272] : memref<288xf32, #tpu.memory_space<smem>>
    %1212 = vector.broadcast %1211 : f32 to vector<8x16xf32>
    %1213 = arith.mulf %1212, %50 : vector<8x16xf32>
    %1214 = arith.addf %1210, %1213 : vector<8x16xf32>
    %c273 = arith.constant 273 : index
    %1215 = memref.load %arg3[%c273] : memref<288xf32, #tpu.memory_space<smem>>
    %1216 = vector.broadcast %1215 : f32 to vector<8x16xf32>
    %1217 = arith.mulf %1216, %55 : vector<8x16xf32>
    %1218 = arith.addf %1214, %1217 : vector<8x16xf32>
    %c274 = arith.constant 274 : index
    %1219 = memref.load %arg3[%c274] : memref<288xf32, #tpu.memory_space<smem>>
    %1220 = vector.broadcast %1219 : f32 to vector<8x16xf32>
    %1221 = arith.mulf %1220, %56 : vector<8x16xf32>
    %1222 = arith.addf %1218, %1221 : vector<8x16xf32>
    %c275 = arith.constant 275 : index
    %1223 = memref.load %arg3[%c275] : memref<288xf32, #tpu.memory_space<smem>>
    %1224 = vector.broadcast %1223 : f32 to vector<8x16xf32>
    %1225 = arith.mulf %1224, %57 : vector<8x16xf32>
    %1226 = arith.addf %1222, %1225 : vector<8x16xf32>
    %c276 = arith.constant 276 : index
    %1227 = memref.load %arg3[%c276] : memref<288xf32, #tpu.memory_space<smem>>
    %1228 = vector.broadcast %1227 : f32 to vector<8x16xf32>
    %1229 = arith.mulf %1228, %62 : vector<8x16xf32>
    %1230 = arith.addf %1226, %1229 : vector<8x16xf32>
    %c277 = arith.constant 277 : index
    %1231 = memref.load %arg3[%c277] : memref<288xf32, #tpu.memory_space<smem>>
    %1232 = vector.broadcast %1231 : f32 to vector<8x16xf32>
    %1233 = arith.mulf %1232, %63 : vector<8x16xf32>
    %1234 = arith.addf %1230, %1233 : vector<8x16xf32>
    %c278 = arith.constant 278 : index
    %1235 = memref.load %arg3[%c278] : memref<288xf32, #tpu.memory_space<smem>>
    %1236 = vector.broadcast %1235 : f32 to vector<8x16xf32>
    %1237 = arith.mulf %1236, %64 : vector<8x16xf32>
    %1238 = arith.addf %1234, %1237 : vector<8x16xf32>
    %c279 = arith.constant 279 : index
    %1239 = memref.load %arg3[%c279] : memref<288xf32, #tpu.memory_space<smem>>
    %1240 = vector.broadcast %1239 : f32 to vector<8x16xf32>
    %1241 = arith.mulf %1240, %69 : vector<8x16xf32>
    %1242 = arith.addf %1238, %1241 : vector<8x16xf32>
    %c280 = arith.constant 280 : index
    %1243 = memref.load %arg3[%c280] : memref<288xf32, #tpu.memory_space<smem>>
    %1244 = vector.broadcast %1243 : f32 to vector<8x16xf32>
    %1245 = arith.mulf %1244, %70 : vector<8x16xf32>
    %1246 = arith.addf %1242, %1245 : vector<8x16xf32>
    %c281 = arith.constant 281 : index
    %1247 = memref.load %arg3[%c281] : memref<288xf32, #tpu.memory_space<smem>>
    %1248 = vector.broadcast %1247 : f32 to vector<8x16xf32>
    %1249 = arith.mulf %1248, %71 : vector<8x16xf32>
    %1250 = arith.addf %1246, %1249 : vector<8x16xf32>
    %c282 = arith.constant 282 : index
    %1251 = memref.load %arg3[%c282] : memref<288xf32, #tpu.memory_space<smem>>
    %1252 = vector.broadcast %1251 : f32 to vector<8x16xf32>
    %1253 = arith.mulf %1252, %76 : vector<8x16xf32>
    %1254 = arith.addf %1250, %1253 : vector<8x16xf32>
    %c283 = arith.constant 283 : index
    %1255 = memref.load %arg3[%c283] : memref<288xf32, #tpu.memory_space<smem>>
    %1256 = vector.broadcast %1255 : f32 to vector<8x16xf32>
    %1257 = arith.mulf %1256, %77 : vector<8x16xf32>
    %1258 = arith.addf %1254, %1257 : vector<8x16xf32>
    %c284 = arith.constant 284 : index
    %1259 = memref.load %arg3[%c284] : memref<288xf32, #tpu.memory_space<smem>>
    %1260 = vector.broadcast %1259 : f32 to vector<8x16xf32>
    %1261 = arith.mulf %1260, %78 : vector<8x16xf32>
    %1262 = arith.addf %1258, %1261 : vector<8x16xf32>
    %c285 = arith.constant 285 : index
    %1263 = memref.load %arg3[%c285] : memref<288xf32, #tpu.memory_space<smem>>
    %1264 = vector.broadcast %1263 : f32 to vector<8x16xf32>
    %1265 = arith.mulf %1264, %83 : vector<8x16xf32>
    %1266 = arith.addf %1262, %1265 : vector<8x16xf32>
    %c286 = arith.constant 286 : index
    %1267 = memref.load %arg3[%c286] : memref<288xf32, #tpu.memory_space<smem>>
    %1268 = vector.broadcast %1267 : f32 to vector<8x16xf32>
    %1269 = arith.mulf %1268, %84 : vector<8x16xf32>
    %1270 = arith.addf %1266, %1269 : vector<8x16xf32>
    %c287 = arith.constant 287 : index
    %1271 = memref.load %arg3[%c287] : memref<288xf32, #tpu.memory_space<smem>>
    %1272 = vector.broadcast %1271 : f32 to vector<8x16xf32>
    %1273 = arith.mulf %1272, %85 : vector<8x16xf32>
    %1274 = arith.addf %1270, %1273 : vector<8x16xf32>
    %c0_81 = arith.constant 0 : index
    %c7_82 = arith.constant 7 : index
    %c0_83 = arith.constant 0 : index
    %c0_84 = arith.constant 0 : index
    %1275 = vector.load %arg5[%c0_81, %c7_82, %c0_83, %c0_84] : memref<1x8x8x16xf32, #tpu.memory_space<vmem>>, vector<1x1x8x16xf32>
    %1276 = vector.shape_cast %1275 : vector<1x1x8x16xf32> to vector<8x16xf32>
    %1277 = vector.shape_cast %1274 : vector<8x16xf32> to vector<1x1x8x16xf32>
    tpu.vector_store %arg5[%c0_81, %c7_82, %c0_83, %c0_84], %1277 {strides = array<i32>} : memref<1x8x8x16xf32, #tpu.memory_space<vmem>>, vector<1x1x8x16xf32>,
    return
  }
  func.func @transform_0(%arg0: i32, %arg1: i32) -> (i32, i32, i32, i32) {
    %c0_i32 = arith.constant 0 : i32
    %c0_i32_0 = arith.constant 0 : i32
    %c0_i32_1 = arith.constant 0 : i32
    %c0_i32_2 = arith.constant 0 : i32
    return %arg0, %c0_i32, %c0_i32_0, %c0_i32_1 : i32, i32, i32, i32
  }
  func.func @transform_1(%arg0: i32, %arg1: i32) -> i32 {
    %c0_i32 = arith.constant 0 : i32
    %c0_i32_0 = arith.constant 0 : i32
    return %c0_i32 : i32
  }
  func.func @transform_2(%arg0: i32, %arg1: i32) -> i32 {
    %c0_i32 = arith.constant 0 : i32
    %c0_i32_0 = arith.constant 0 : i32
    return %c0_i32 : i32
  }
  func.func @transform_3(%arg0: i32, %arg1: i32) -> (i32, i32, i32, i32) {
    %c0_i32 = arith.constant 0 : i32
    %c0_i32_0 = arith.constant 0 : i32
    %c0_i32_1 = arith.constant 0 : i32
    return %arg0, %c0_i32, %arg1, %c0_i32_0 : i32, i32, i32, i32
  }
}

</mosaic_0001>

<llo_original>
// kernel: tpu_custom_call.1
$region0: #{tpu_custom_call.1}
  #allocation0 [shape = 'u32[]', space=smem, size = 0x4, offset = 0x4, fixed_abs, tag = 'smem constant byte address 0x4 - core index']
  #allocation1 [shape = 'u32[144,128]{1,0:T(1,128)}', space=vmem, size = 0x12000, scoped, tag = 'internal scratch']
  %s0 = inlined_call_operand.vmem [shape: f32[2,4,18,18], index: 0, kind: input, shape index: {}]
  %s1 = inlined_call_operand.vmem [shape: f32[288], index: 1, kind: input, shape index: {}]
  %s2 = inlined_call_operand.vmem [shape: f32[8], index: 2, kind: input, shape index: {}]
  %s3 = inlined_call_operand.hbm [shape: f32[2,8,16,16], index: 3, kind: output, shape index: {}]
  %s4 = sld [smem:[#allocation0]]
  $region53: #{tpu_custom_call.1} parent=0
    _
  %s6 = ssub.s32 1, %s4
  %s7 = scalar_select 0, %s6, %s4
  $region1: #{tpu_custom_call.1} parent=0
    #allocation2 [shape = 'u8[1536]{0}', space=smem, size = 0x600, scoped, tag = 'input window, operand 1, single buffered']
    #allocation3 [shape = 's32[2]{0}', space=sflag, size = 0x8, scoped, tag = 'scoped memory for tpu_custom_call.1']
    #allocation4 [shape = 's32[2]{0}', space=sflag, size = 0x8, scoped, tag = 'scoped memory for tpu_custom_call.1']
    #allocation5 [shape = 'u8[512]{0}', space=smem, size = 0x200, scoped, tag = 'input window, operand 2, single buffered']
    #allocation6 [shape = 's32[1]{0}', space=sflag, size = 0x4, scoped, tag = 'scoped memory for tpu_custom_call.1']
    #allocation7 [shape = 'u8[65536]{0}', space=vmem, size = 0x10000, scoped, tag = 'output window, operand 0']
    %8 = vsyncpa [#allocation4], 0
    %9 = vsyncpa [#allocation6], 0
    %10 = vsyncpa [#allocation3], 0
    %s11 = scalar_lea.sflag [#allocation3], 1
    %12 = vsyncpa %s11, 0
    loop: start=0, step=1, limit=6
    $region2: #{tpu_custom_call.1} parent=1 // loop_pre_header
      _
    $region3: #{tpu_custom_call.1} parent=1 // loop_header
      %s14 = sphi 0, %s18
      %p15 = scmp.ge.s32.totalorder %s14, 6
      %s21 = sphi 0, %s33
      %s22 = sphi 0, %s29
      %s23 = sphi 0, %s21
      %s24 = sphi 0, %s22
      %s25 = sphi 0, %s23
      %s26 = sphi 0, %s24
      %s36 = sphi 0, %s38
      %s39 = sphi 0, %s36
      %s40 = sphi 0, %s39
      %s56 = sphi 0, %s40
      %s60 = sphi 0, %s60
      %s62 = sphi 0, %s60
      %s63 = sphi 0, %s62
      %s77 = sphi 0, %s63
      %s81 = sphi 0, %s81
      %s83 = sphi 0, %s81
      %s84 = sphi 0, %s83
      %s98 = sphi 0, %s84
      %s106 = sphi 0, %s108
      %s109 = sphi 0, %s106
      %s110 = sphi 0, %s109
      %s126 = sphi 0, %s110
    $region4: #{tpu_custom_call.1} parent=1 // loop_header_branch
      %17 = sbr.rel (%p15) target = $region8
    $region5: #{tpu_custom_call.1} parent=1 // loop_body
      %s19 = ssub.s32 %s14, 1
      %s20 = ssub.s32 %s14, 2
      %s27 = sadd.s32 1, %s22
      %p28 = scmp.ge.s32.totalorder %s27, 2
      %s29 = scalar_select %p28, 0, %s27
      %s30 = sadd.s32 1, %s21
      %s31 = scalar_select %p28, %s30, %s21
      %p32 = scmp.ge.s32.totalorder %s31, 2
      %s33 = scalar_select %p32, 0, %s31
      %s34 = ssub.s32 %s21, %s33
      %p35 = scmp.eq.s32.totalorder %s34, 0
      %s37 = sadd.s32 %s36, 1
      %s38 = scalar_select %p35, %s36, %s37
      %p41 = pneg %p35
      %p42 = scmp.eq.s32.totalorder %s14, 3
      %p43 = por %p41, %p42
      %p44 = scmp.ne.s32.totalorder %s36, %s39
      %p45 = scmp.eq.s32.totalorder %s14, 0
      %p46 = por %p44, %p45
      %p47 = scmp.ne.s32.totalorder %s36, %s39
      %p48 = scmp.eq.s32.totalorder %s19, 3
      %p49 = por %p47, %p48
      %p50 = scmp.ne.s32.totalorder %s39, %s40
      %p51 = scmp.eq.s32.totalorder %s19, 0
      %p52 = por %p50, %p51
      %p53 = scmp.ne.s32.totalorder %s39, %s40
      %p54 = scmp.eq.s32.totalorder %s20, 3
      %p55 = por %p53, %p54
      %p57 = scmp.ne.s32.totalorder %s40, %s56
      %p58 = scmp.eq.s32.totalorder %s20, 0
      %p59 = por %p57, %p58
      %s61 = sadd.s32 %s60, 1
      %p64 = scmp.eq.s32.totalorder %s14, 3
      %p65 = scmp.ne.s32.totalorder %s60, %s62
      %p66 = scmp.eq.s32.totalorder %s14, 0
      %p67 = por %p65, %p66
      %p68 = scmp.ne.s32.totalorder %s60, %s62
      %p69 = scmp.eq.s32.totalorder %s19, 3
      %p70 = por %p68, %p69
      %p71 = scmp.ne.s32.totalorder %s62, %s63
      %p72 = scmp.eq.s32.totalorder %s19, 0
      %p73 = por %p71, %p72
      %p74 = scmp.ne.s32.totalorder %s62, %s63
      %p75 = scmp.eq.s32.totalorder %s20, 3
      %p76 = por %p74, %p75
      %p78 = scmp.ne.s32.totalorder %s63, %s77
      %p79 = scmp.eq.s32.totalorder %s20, 0
      %p80 = por %p78, %p79
      %s82 = sadd.s32 %s81, 1
      %p85 = scmp.eq.s32.totalorder %s14, 3
      %p86 = scmp.ne.s32.totalorder %s81, %s83
      %p87 = scmp.eq.s32.totalorder %s14, 0
      %p88 = por %p86, %p87
      %p89 = scmp.ne.s32.totalorder %s81, %s83
      %p90 = scmp.eq.s32.totalorder %s19, 3
      %p91 = por %p89, %p90
      %p92 = scmp.ne.s32.totalorder %s83, %s84
      %p93 = scmp.eq.s32.totalorder %s19, 0
      %p94 = por %p92, %p93
      %p95 = scmp.ne.s32.totalorder %s83, %s84
      %p96 = scmp.eq.s32.totalorder %s20, 3
      %p97 = por %p95, %p96
      %p99 = scmp.ne.s32.totalorder %s84, %s98
      %p100 = scmp.eq.s32.totalorder %s20, 0
      %p101 = por %p99, %p100
      %s102 = ssub.s32 %s21, %s33
      %s103 = ssub.s32 %s22, %s29
      %s104 = sor.u32 %s102, %s103
      %p105 = scmp.eq.s32.totalorder %s104, 0
      %s107 = sadd.s32 %s106, 1
      %s108 = scalar_select %p105, %s106, %s107
      %p111 = pneg %p105
      %p112 = scmp.eq.s32.totalorder %s14, 3
      %p113 = por %p111, %p112
      %p114 = scmp.ne.s32.totalorder %s106, %s109
      %p115 = scmp.eq.s32.totalorder %s14, 0
      %p116 = por %p114, %p115
      %p117 = scmp.ne.s32.totalorder %s106, %s109
      %p118 = scmp.eq.s32.totalorder %s19, 3
      %p119 = por %p117, %p118
      %p120 = scmp.ne.s32.totalorder %s109, %s110
      %p121 = scmp.eq.s32.totalorder %s19, 0
      %p122 = por %p120, %p121
      %p123 = scmp.ne.s32.totalorder %s109, %s110
      %p124 = scmp.eq.s32.totalorder %s20, 3
      %p125 = por %p123, %p124
      %p127 = scmp.ne.s32.totalorder %s110, %s126
      %p128 = scmp.eq.s32.totalorder %s20, 0
      %p129 = por %p127, %p128
      %p130 = scmp.le.s32.totalorder 1, %s14
      %p131 = scmp.lt.s32.totalorder %s14, 5
      %p132 = pnand %p130, %p131
      %p133 = pneg %p132
      // Predicated region
      $region9: #{tpu_custom_call.1} parent=5 // pred_check
        _
      $region10: #{tpu_custom_call.1} parent=5 // pred_check_branch
        %135 = sbr.rel (%p132) target = $region12
      $region11: #{tpu_custom_call.1} parent=5 // pred_region
        %s136 = ssub.s32 %s14, 1
        // Predicated region
        $region13: #{tpu_custom_call.1} parent=11 // pred_check
          %p137 = pneg %p73
        $region14: #{tpu_custom_call.1} parent=11 // pred_check_branch
          %139 = sbr.rel (%p137) target = $region16
        $region15: #{tpu_custom_call.1} parent=11 // pred_region
          %s141 = ssub.s32 48, 48
          %142 = vsyncadd [#allocation4], %s141
          %s144 = sshll.u32 %s1, 4
          %s145 = int_to_ptr.vmem [resolvable:$true] %s144
          %147 = dma.vmem_to_smem %s145, 48, [#allocation2], [#allocation4]
        $region16: #{tpu_custom_call.1} parent=11 // pred_fallthru
          _
        // Predicated region
        $region17: #{tpu_custom_call.1} parent=11 // pred_check
          %p148 = pneg %p94
        $region18: #{tpu_custom_call.1} parent=11 // pred_check_branch
          %150 = sbr.rel (%p148) target = $region20
        $region19: #{tpu_custom_call.1} parent=11 // pred_region
          %s152 = ssub.s32 16, 16
          %153 = vsyncadd [#allocation6], %s152
          %s155 = sshll.u32 %s2, 4
          %s156 = int_to_ptr.vmem [resolvable:$true] %s155
          %158 = dma.vmem_to_smem %s156, 16, [#allocation5], [#allocation6]
        $region20: #{tpu_custom_call.1} parent=11 // pred_fallthru
          _
      $region12: #{tpu_custom_call.1} parent=5 // pred_fallthru
        _
      %p159 = scmp.lt.s32.totalorder %s14, 4
      // Predicated region
      $region21: #{tpu_custom_call.1} parent=5 // pred_check
        %p160 = pneg %p159
      $region22: #{tpu_custom_call.1} parent=5 // pred_check_branch
        %162 = sbr.rel (%p160) target = $region24
      $region23: #{tpu_custom_call.1} parent=5 // pred_region
        // Predicated region
        $region25: #{tpu_custom_call.1} parent=23 // pred_check
          %p163 = pneg %p46
        $region26: #{tpu_custom_call.1} parent=23 // pred_check_branch
          %165 = sbr.rel (%p163) target = $region28
        $region27: #{tpu_custom_call.1} parent=23 // pred_region
          %p166 = scmp.lt.s32.totalorder %s21, 1
          %s167 = scalar_select %p166, %s21, 1
          %s168 = smul.addr %s167, 12
          %s169 = smul.addr %s168, 8
          %s170 = scalar_lea.vmem %s0, %s169
        $region28: #{tpu_custom_call.1} parent=23 // pred_fallthru
          _
      $region24: #{tpu_custom_call.1} parent=5 // pred_fallthru
        _
      %p171 = scmp.le.s32.totalorder 1, %s14
      %p172 = scmp.lt.s32.totalorder %s14, 5
      %p173 = pnand %p171, %p172
      %p174 = pneg %p173
      // Predicated region
      $region29: #{tpu_custom_call.1} parent=5 // pred_check
        _
      $region30: #{tpu_custom_call.1} parent=5 // pred_check_branch
        %176 = sbr.rel (%p173) target = $region32
      $region31: #{tpu_custom_call.1} parent=5 // pred_region
        %s177 = ssub.s32 %s14, 1
        // Predicated region
        $region33: #{tpu_custom_call.1} parent=31 // pred_check
          %p178 = pneg %p73
        $region34: #{tpu_custom_call.1} parent=31 // pred_check_branch
          %180 = sbr.rel (%p178) target = $region36
        $region35: #{tpu_custom_call.1} parent=31 // pred_region
          %181 = dma.done [#allocation4], 48
        $region36: #{tpu_custom_call.1} parent=31 // pred_fallthru
          _
        // Predicated region
        $region37: #{tpu_custom_call.1} parent=31 // pred_check
          %p182 = pneg %p94
        $region38: #{tpu_custom_call.1} parent=31 // pred_check_branch
          %184 = sbr.rel (%p182) target = $region40
        $region39: #{tpu_custom_call.1} parent=31 // pred_region
          %185 = dma.done [#allocation6], 16
        $region40: #{tpu_custom_call.1} parent=31 // pred_fallthru
          _
        %186 = sfence
        %p187 = scmp.lt.s32.totalorder %s23, 1
        %s188 = scalar_select %p187, %s23, 1
        %s189 = smul.addr %s188, 12
        %s190 = smul.addr %s189, 8
        %s191 = scalar_lea.vmem %s0, %s190
        %p192 = pneg %p52
        %p193 = pneg %p49
        %p194 = pneg %p73
        %p195 = pneg %p70
        %p196 = pneg %p94
        %p197 = pneg %p91
        %p198 = pneg %p122
        %p199 = pneg %p119
        %s200 = sand.u32 %s109, 1
        %s201 = scalar_lea.sflag [#allocation3], %s200
        %s202 = sand.u32 %s109, 1
        %s203 = smul.addr %s202, 64
        %s204 = scalar_lea.vmem [#allocation7], %s203
        %p205 = scmp.lt.s32.totalorder %s23, 1
        %s206 = scalar_select %p205, %s23, 1
        %s207 = smul.addr %s206, 12
        %s208 = smul.addr %s207, 8
        %s209 = scalar_lea.vmem %s0, %s208
        %s210 = smul.u32 %s24, 8
        %s211 = scalar_lea.vmem %s209, %s210
        %v212 = vld [vmem:[%s211] sm:$0xff]
        %s213 = sadd.s32 %s210, 1
        %s214 = scalar_lea.vmem %s209, %s213
        %v215 = vld [vmem:[%s214] sm:$0xff]
        %s216 = sadd.s32 %s210, 2
        %s217 = scalar_lea.vmem %s209, %s216
        %v218 = vld [vmem:[%s217] sm:$0xff]
        %s219 = sadd.s32 %s210, 24
        %s220 = scalar_lea.vmem %s209, %s219
        %v221 = vld [vmem:[%s220] sm:$0xff]
        %s222 = sadd.s32 %s213, 24
        %s223 = scalar_lea.vmem %s209, %s222
        %v224 = vld [vmem:[%s223] sm:$0xff]
        %s225 = sadd.s32 %s216, 24
        %s226 = scalar_lea.vmem %s209, %s225
        %v227 = vld [vmem:[%s226] sm:$0xff]
        %s228 = sadd.s32 %s210, 48
        %s229 = scalar_lea.vmem %s209, %s228
        %v230 = vld [vmem:[%s229] sm:$0xff]
        %s231 = sadd.s32 %s213, 48
        %s232 = scalar_lea.vmem %s209, %s231
        %v233 = vld [vmem:[%s232] sm:$0xff]
        %s234 = sadd.s32 %s216, 48
        %s235 = scalar_lea.vmem %s209, %s234
        %v236 = vld [vmem:[%s235] sm:$0xff]
        %s237 = sadd.s32 %s210, 72
        %s238 = scalar_lea.vmem %s209, %s237
        %v239 = vld [vmem:[%s238] sm:$0xff]
        %s240 = sadd.s32 %s213, 72
        %s241 = scalar_lea.vmem %s209, %s240
        %v242 = vld [vmem:[%s241] sm:$0xff]
        %s243 = sadd.s32 %s216, 72
        %s244 = scalar_lea.vmem %s209, %s243
        %v245 = vld [vmem:[%s244] sm:$0xff]
        %s246 = sld [smem:[#allocation5]]
        %v247 = vstv %s246
        %s248 = sld [smem:[#allocation2]]
        %v249 = vstv %s248
        %v250 = vmul.f32 %v249, %v212
        %v251 = vadd.f32 %v247, %v250
        %s252 = sld [smem:[#allocation2 + $0x1]]
        %v253 = vstv %s252
        %v254 = vmul.f32 %v253, %v212
        %256 = vrot.lane.b32.xlu0 %v254, 127
        %v257 = vpop.permute.xlu0 %256
        %v259 = vadd.f32 %v251, %v257
        %s260 = sld [smem:[#allocation2 + $0x2]]
        %v261 = vstv %s260
        %v262 = vmul.f32 %v261, %v212
        %264 = vrot.lane.b32.xlu0 %v262, 126
        %v265 = vpop.permute.xlu0 %264
        %v267 = vadd.f32 %v259, %v265
        %s268 = sld [smem:[#allocation2 + $0x3]]
        %v269 = vstv %s268
        %v270 = vmul.f32 %v269, %v215
        %v271 = vadd.f32 %v267, %v270
        %s272 = sld [smem:[#allocation2 + $0x4]]
        %v273 = vstv %s272
        %v274 = vmul.f32 %v273, %v215
        %276 = vrot.lane.b32.xlu0 %v274, 127
        %v277 = vpop.permute.xlu0 %276
        %v279 = vadd.f32 %v271, %v277
        %s280 = sld [smem:[#allocation2 + $0x5]]
        %v281 = vstv %s280
        %v282 = vmul.f32 %v281, %v215
        %284 = vrot.lane.b32.xlu0 %v282, 126
        %v285 = vpop.permute.xlu0 %284
        %v287 = vadd.f32 %v279, %v285
        %s288 = sld [smem:[#allocation2 + $0x6]]
        %v289 = vstv %s288
        %v290 = vmul.f32 %v289, %v218
        %v291 = vadd.f32 %v287, %v290
        %s292 = sld [smem:[#allocation2 + $0x7]]
        %v293 = vstv %s292
        %v294 = vmul.f32 %v293, %v218
        %296 = vrot.lane.b32.xlu0 %v294, 127
        %v297 = vpop.permute.xlu0 %296
        %v299 = vadd.f32 %v291, %v297
        %s300 = sld [smem:[#allocation2 + $0x8]]
        %v301 = vstv %s300
        %v302 = vmul.f32 %v301, %v218
        %304 = vrot.lane.b32.xlu0 %v302, 126
        %v305 = vpop.permute.xlu0 %304
        %v307 = vadd.f32 %v299, %v305
        %s308 = sld [smem:[#allocation2 + $0x9]]
        %v309 = vstv %s308
        %v310 = vmul.f32 %v309, %v221
        %v311 = vadd.f32 %v307, %v310
        %s312 = sld [smem:[#allocation2 + $0xa]]
        %v313 = vstv %s312
        %v314 = vmul.f32 %v313, %v221
        %316 = vrot.lane.b32.xlu0 %v314, 127
        %v317 = vpop.permute.xlu0 %316
        %v319 = vadd.f32 %v311, %v317
        %s320 = sld [smem:[#allocation2 + $0xb]]
        %v321 = vstv %s320
        %v322 = vmul.f32 %v321, %v221
        %324 = vrot.lane.b32.xlu0 %v322, 126
        %v325 = vpop.permute.xlu0 %324
        %v327 = vadd.f32 %v319, %v325
        %s328 = sld [smem:[#allocation2 + $0xc]]
        %v329 = vstv %s328
        %v330 = vmul.f32 %v329, %v224
        %v331 = vadd.f32 %v327, %v330
        %s332 = sld [smem:[#allocation2 + $0xd]]
        %v333 = vstv %s332
        %v334 = vmul.f32 %v333, %v224
        %336 = vrot.lane.b32.xlu0 %v334, 127
        %v337 = vpop.permute.xlu0 %336
        %v339 = vadd.f32 %v331, %v337
        %s340 = sld [smem:[#allocation2 + $0xe]]
        %v341 = vstv %s340
        %v342 = vmul.f32 %v341, %v224
        %344 = vrot.lane.b32.xlu0 %v342, 126
        %v345 = vpop.permute.xlu0 %344
        %v347 = vadd.f32 %v339, %v345
        %s348 = sld [smem:[#allocation2 + $0xf]]
        %v349 = vstv %s348
        %v350 = vmul.f32 %v349, %v227
        %v351 = vadd.f32 %v347, %v350
        %s352 = sld [smem:[#allocation2 + $0x10]]
        %v353 = vstv %s352
        %v354 = vmul.f32 %v353, %v227
        %356 = vrot.lane.b32.xlu0 %v354, 127
        %v357 = vpop.permute.xlu0 %356
        %v359 = vadd.f32 %v351, %v357
        %s360 = sld [smem:[#allocation2 + $0x11]]
        %v361 = vstv %s360
        %v362 = vmul.f32 %v361, %v227
        %364 = vrot.lane.b32.xlu0 %v362, 126
        %v365 = vpop.permute.xlu0 %364
        %v367 = vadd.f32 %v359, %v365
        %s368 = sld [smem:[#allocation2 + $0x12]]
        %v369 = vstv %s368
        %v370 = vmul.f32 %v369, %v230
        %v371 = vadd.f32 %v367, %v370
        %s372 = sld [smem:[#allocation2 + $0x13]]
        %v373 = vstv %s372
        %v374 = vmul.f32 %v373, %v230
        %376 = vrot.lane.b32.xlu0 %v374, 127
        %v377 = vpop.permute.xlu0 %376
        %v379 = vadd.f32 %v371, %v377
        %s380 = sld [smem:[#allocation2 + $0x14]]
        %v381 = vstv %s380
        %v382 = vmul.f32 %v381, %v230
        %384 = vrot.lane.b32.xlu0 %v382, 126
        %v385 = vpop.permute.xlu0 %384
        %v387 = vadd.f32 %v379, %v385
        %s388 = sld [smem:[#allocation2 + $0x15]]
        %v389 = vstv %s388
        %v390 = vmul.f32 %v389, %v233
        %v391 = vadd.f32 %v387, %v390
        %s392 = sld [smem:[#allocation2 + $0x16]]
        %v393 = vstv %s392
        %v394 = vmul.f32 %v393, %v233
        %396 = vrot.lane.b32.xlu0 %v394, 127
        %v397 = vpop.permute.xlu0 %396
        %v399 = vadd.f32 %v391, %v397
        %s400 = sld [smem:[#allocation2 + $0x17]]
        %v401 = vstv %s400
        %v402 = vmul.f32 %v401, %v233
        %404 = vrot.lane.b32.xlu0 %v402, 126
        %v405 = vpop.permute.xlu0 %404
        %v407 = vadd.f32 %v399, %v405
        %s408 = sld [smem:[#allocation2 + $0x18]]
        %v409 = vstv %s408
        %v410 = vmul.f32 %v409, %v236
        %v411 = vadd.f32 %v407, %v410
        %s412 = sld [smem:[#allocation2 + $0x19]]
        %v413 = vstv %s412
        %v414 = vmul.f32 %v413, %v236
        %416 = vrot.lane.b32.xlu0 %v414, 127
        %v417 = vpop.permute.xlu0 %416
        %v419 = vadd.f32 %v411, %v417
        %s420 = sld [smem:[#allocation2 + $0x1a]]
        %v421 = vstv %s420
        %v422 = vmul.f32 %v421, %v236
        %424 = vrot.lane.b32.xlu0 %v422, 126
        %v425 = vpop.permute.xlu0 %424
        %v427 = vadd.f32 %v419, %v425
        %s428 = sld [smem:[#allocation2 + $0x1b]]
        %v429 = vstv %s428
        %v430 = vmul.f32 %v429, %v239
        %v431 = vadd.f32 %v427, %v430
        %s432 = sld [smem:[#allocation2 + $0x1c]]
        %v433 = vstv %s432
        %v434 = vmul.f32 %v433, %v239
        %436 = vrot.lane.b32.xlu0 %v434, 127
        %v437 = vpop.permute.xlu0 %436
        %v439 = vadd.f32 %v431, %v437
        %s440 = sld [smem:[#allocation2 + $0x1d]]
        %v441 = vstv %s440
        %v442 = vmul.f32 %v441, %v239
        %444 = vrot.lane.b32.xlu0 %v442, 126
        %v445 = vpop.permute.xlu0 %444
        %v447 = vadd.f32 %v439, %v445
        %s448 = sld [smem:[#allocation2 + $0x1e]]
        %v449 = vstv %s448
        %v450 = vmul.f32 %v449, %v242
        %v451 = vadd.f32 %v447, %v450
        %s452 = sld [smem:[#allocation2 + $0x1f]]
        %v453 = vstv %s452
        %v454 = vmul.f32 %v453, %v242
        %456 = vrot.lane.b32.xlu0 %v454, 127
        %v457 = vpop.permute.xlu0 %456
        %v459 = vadd.f32 %v451, %v457
        %s460 = sld [smem:[#allocation2 + $0x20]]
        %v461 = vstv %s460
        %v462 = vmul.f32 %v461, %v242
        %464 = vrot.lane.b32.xlu0 %v462, 126
        %v465 = vpop.permute.xlu0 %464
        %v467 = vadd.f32 %v459, %v465
        %s468 = sld [smem:[#allocation2 + $0x21]]
        %v469 = vstv %s468
        %v470 = vmul.f32 %v469, %v245
        %v471 = vadd.f32 %v467, %v470
        %s472 = sld [smem:[#allocation2 + $0x22]]
        %v473 = vstv %s472
        %v474 = vmul.f32 %v473, %v245
        %476 = vrot.lane.b32.xlu0 %v474, 127
        %v477 = vpop.permute.xlu0 %476
        %v479 = vadd.f32 %v471, %v477
        %s480 = sld [smem:[#allocation2 + $0x23]]
        %v481 = vstv %s480
        %v482 = vmul.f32 %v481, %v245
        %484 = vrot.lane.b32.xlu0 %v482, 126
        %v485 = vpop.permute.xlu0 %484
        %v487 = vadd.f32 %v479, %v485
        %vm488 = vcmask 130048
        %489 = vst.msk [vmem:[%s204] sm:$0xff] %vm488, %v487
        %s490 = sld [smem:[#allocation5 + $0x1]]
        %v491 = vstv %s490
        %s492 = sld [smem:[#allocation2 + $0x24]]
        %v493 = vstv %s492
        %v494 = vmul.f32 %v493, %v212
        %v495 = vadd.f32 %v491, %v494
        %s496 = sld [smem:[#allocation2 + $0x25]]
        %v497 = vstv %s496
        %v498 = vmul.f32 %v497, %v212
        %500 = vrot.lane.b32.xlu0 %v498, 127
        %v501 = vpop.permute.xlu0 %500
        %v503 = vadd.f32 %v495, %v501
        %s504 = sld [smem:[#allocation2 + $0x26]]
        %v505 = vstv %s504
        %v506 = vmul.f32 %v505, %v212
        %508 = vrot.lane.b32.xlu0 %v506, 126
        %v509 = vpop.permute.xlu0 %508
        %v511 = vadd.f32 %v503, %v509
        %s512 = sld [smem:[#allocation2 + $0x27]]
        %v513 = vstv %s512
        %v514 = vmul.f32 %v513, %v215
        %v515 = vadd.f32 %v511, %v514
        %s516 = sld [smem:[#allocation2 + $0x28]]
        %v517 = vstv %s516
        %v518 = vmul.f32 %v517, %v215
        %520 = vrot.lane.b32.xlu0 %v518, 127
        %v521 = vpop.permute.xlu0 %520
        %v523 = vadd.f32 %v515, %v521
        %s524 = sld [smem:[#allocation2 + $0x29]]
        %v525 = vstv %s524
        %v526 = vmul.f32 %v525, %v215
        %528 = vrot.lane.b32.xlu0 %v526, 126
        %v529 = vpop.permute.xlu0 %528
        %v531 = vadd.f32 %v523, %v529
        %s532 = sld [smem:[#allocation2 + $0x2a]]
        %v533 = vstv %s532
        %v534 = vmul.f32 %v533, %v218
        %v535 = vadd.f32 %v531, %v534
        %s536 = sld [smem:[#allocation2 + $0x2b]]
        %v537 = vstv %s536
        %v538 = vmul.f32 %v537, %v218
        %540 = vrot.lane.b32.xlu0 %v538, 127
        %v541 = vpop.permute.xlu0 %540
        %v543 = vadd.f32 %v535, %v541
        %s544 = sld [smem:[#allocation2 + $0x2c]]
        %v545 = vstv %s544
        %v546 = vmul.f32 %v545, %v218
        %548 = vrot.lane.b32.xlu0 %v546, 126
        %v549 = vpop.permute.xlu0 %548
        %v551 = vadd.f32 %v543, %v549
        %s552 = sld [smem:[#allocation2 + $0x2d]]
        %v553 = vstv %s552
        %v554 = vmul.f32 %v553, %v221
        %v555 = vadd.f32 %v551, %v554
        %s556 = sld [smem:[#allocation2 + $0x2e]]
        %v557 = vstv %s556
        %v558 = vmul.f32 %v557, %v221
        %560 = vrot.lane.b32.xlu0 %v558, 127
        %v561 = vpop.permute.xlu0 %560
        %v563 = vadd.f32 %v555, %v561
        %s564 = sld [smem:[#allocation2 + $0x2f]]
        %v565 = vstv %s564
        %v566 = vmul.f32 %v565, %v221
        %568 = vrot.lane.b32.xlu0 %v566, 126
        %v569 = vpop.permute.xlu0 %568
        %v571 = vadd.f32 %v563, %v569
        %s572 = sld [smem:[#allocation2 + $0x30]]
        %v573 = vstv %s572
        %v574 = vmul.f32 %v573, %v224
        %v575 = vadd.f32 %v571, %v574
        %s576 = sld [smem:[#allocation2 + $0x31]]
        %v577 = vstv %s576
        %v578 = vmul.f32 %v577, %v224
        %580 = vrot.lane.b32.xlu0 %v578, 127
        %v581 = vpop.permute.xlu0 %580
        %v583 = vadd.f32 %v575, %v581
        %s584 = sld [smem:[#allocation2 + $0x32]]
        %v585 = vstv %s584
        %v586 = vmul.f32 %v585, %v224
        %588 = vrot.lane.b32.xlu0 %v586, 126
        %v589 = vpop.permute.xlu0 %588
        %v591 = vadd.f32 %v583, %v589
        %s592 = sld [smem:[#allocation2 + $0x33]]
        %v593 = vstv %s592
        %v594 = vmul.f32 %v593, %v227
        %v595 = vadd.f32 %v591, %v594
        %s596 = sld [smem:[#allocation2 + $0x34]]
        %v597 = vstv %s596
        %v598 = vmul.f32 %v597, %v227
        %600 = vrot.lane.b32.xlu0 %v598, 127
        %v601 = vpop.permute.xlu0 %600
        %v603 = vadd.f32 %v595, %v601
        %s604 = sld [smem:[#allocation2 + $0x35]]
        %v605 = vstv %s604
        %v606 = vmul.f32 %v605, %v227
        %608 = vrot.lane.b32.xlu0 %v606, 126
        %v609 = vpop.permute.xlu0 %608
        %v611 = vadd.f32 %v603, %v609
        %s612 = sld [smem:[#allocation2 + $0x36]]
        %v613 = vstv %s612
        %v614 = vmul.f32 %v613, %v230
        %v615 = vadd.f32 %v611, %v614
        %s616 = sld [smem:[#allocation2 + $0x37]]
        %v617 = vstv %s616
        %v618 = vmul.f32 %v617, %v230
        %620 = vrot.lane.b32.xlu0 %v618, 127
        %v621 = vpop.permute.xlu0 %620
        %v623 = vadd.f32 %v615, %v621
        %s624 = sld [smem:[#allocation2 + $0x38]]
        %v625 = vstv %s624
        %v626 = vmul.f32 %v625, %v230
        %628 = vrot.lane.b32.xlu0 %v626, 126
        %v629 = vpop.permute.xlu0 %628
        %v631 = vadd.f32 %v623, %v629
        %s632 = sld [smem:[#allocation2 + $0x39]]
        %v633 = vstv %s632
        %v634 = vmul.f32 %v633, %v233
        %v635 = vadd.f32 %v631, %v634
        %s636 = sld [smem:[#allocation2 + $0x3a]]
        %v637 = vstv %s636
        %v638 = vmul.f32 %v637, %v233
        %640 = vrot.lane.b32.xlu0 %v638, 127
        %v641 = vpop.permute.xlu0 %640
        %v643 = vadd.f32 %v635, %v641
        %s644 = sld [smem:[#allocation2 + $0x3b]]
        %v645 = vstv %s644
        %v646 = vmul.f32 %v645, %v233
        %648 = vrot.lane.b32.xlu0 %v646, 126
        %v649 = vpop.permute.xlu0 %648
        %v651 = vadd.f32 %v643, %v649
        %s652 = sld [smem:[#allocation2 + $0x3c]]
        %v653 = vstv %s652
        %v654 = vmul.f32 %v653, %v236
        %v655 = vadd.f32 %v651, %v654
        %s656 = sld [smem:[#allocation2 + $0x3d]]
        %v657 = vstv %s656
        %v658 = vmul.f32 %v657, %v236
        %660 = vrot.lane.b32.xlu0 %v658, 127
        %v661 = vpop.permute.xlu0 %660
        %v663 = vadd.f32 %v655, %v661
        %s664 = sld [smem:[#allocation2 + $0x3e]]
        %v665 = vstv %s664
        %v666 = vmul.f32 %v665, %v236
        %668 = vrot.lane.b32.xlu0 %v666, 126
        %v669 = vpop.permute.xlu0 %668
        %v671 = vadd.f32 %v663, %v669
        %s672 = sld [smem:[#allocation2 + $0x3f]]
        %v673 = vstv %s672
        %v674 = vmul.f32 %v673, %v239
        %v675 = vadd.f32 %v671, %v674
        %s676 = sld [smem:[#allocation2 + $0x40]]
        %v677 = vstv %s676
        %v678 = vmul.f32 %v677, %v239
        %680 = vrot.lane.b32.xlu0 %v678, 127
        %v681 = vpop.permute.xlu0 %680
        %v683 = vadd.f32 %v675, %v681
        %s684 = sld [smem:[#allocation2 + $0x41]]
        %v685 = vstv %s684
        %v686 = vmul.f32 %v685, %v239
        %688 = vrot.lane.b32.xlu0 %v686, 126
        %v689 = vpop.permute.xlu0 %688
        %v691 = vadd.f32 %v683, %v689
        %s692 = sld [smem:[#allocation2 + $0x42]]
        %v693 = vstv %s692
        %v694 = vmul.f32 %v693, %v242
        %v695 = vadd.f32 %v691, %v694
        %s696 = sld [smem:[#allocation2 + $0x43]]
        %v697 = vstv %s696
        %v698 = vmul.f32 %v697, %v242
        %700 = vrot.lane.b32.xlu0 %v698, 127
        %v701 = vpop.permute.xlu0 %700
        %v703 = vadd.f32 %v695, %v701
        %s704 = sld [smem:[#allocation2 + $0x44]]
        %v705 = vstv %s704
        %v706 = vmul.f32 %v705, %v242
        %708 = vrot.lane.b32.xlu0 %v706, 126
        %v709 = vpop.permute.xlu0 %708
        %v711 = vadd.f32 %v703, %v709
        %s712 = sld [smem:[#allocation2 + $0x45]]
        %v713 = vstv %s712
        %v714 = vmul.f32 %v713, %v245
        %v715 = vadd.f32 %v711, %v714
        %s716 = sld [smem:[#allocation2 + $0x46]]
        %v717 = vstv %s716
        %v718 = vmul.f32 %v717, %v245
        %720 = vrot.lane.b32.xlu0 %v718, 127
        %v721 = vpop.permute.xlu0 %720
        %v723 = vadd.f32 %v715, %v721
        %s724 = sld [smem:[#allocation2 + $0x47]]
        %v725 = vstv %s724
        %v726 = vmul.f32 %v725, %v245
        %728 = vrot.lane.b32.xlu0 %v726, 126
        %v729 = vpop.permute.xlu0 %728
        %v731 = vadd.f32 %v723, %v729
        %s732 = scalar_lea.vmem %s204, 8 [#allocation7]
        %733 = vst.msk [vmem:[%s732] sm:$0xff] %vm488, %v731
        %s734 = sld [smem:[#allocation5 + $0x2]]
        %v735 = vstv %s734
        %s736 = sld [smem:[#allocation2 + $0x48]]
        %v737 = vstv %s736
        %v738 = vmul.f32 %v737, %v212
        %v739 = vadd.f32 %v735, %v738
        %s740 = sld [smem:[#allocation2 + $0x49]]
        %v741 = vstv %s740
        %v742 = vmul.f32 %v741, %v212
        %744 = vrot.lane.b32.xlu0 %v742, 127
        %v745 = vpop.permute.xlu0 %744
        %v747 = vadd.f32 %v739, %v745
        %s748 = sld [smem:[#allocation2 + $0x4a]]
        %v749 = vstv %s748
        %v750 = vmul.f32 %v749, %v212
        %752 = vrot.lane.b32.xlu0 %v750, 126
        %v753 = vpop.permute.xlu0 %752
        %v755 = vadd.f32 %v747, %v753
        %s756 = sld [smem:[#allocation2 + $0x4b]]
        %v757 = vstv %s756
        %v758 = vmul.f32 %v757, %v215
        %v759 = vadd.f32 %v755, %v758
        %s760 = sld [smem:[#allocation2 + $0x4c]]
        %v761 = vstv %s760
        %v762 = vmul.f32 %v761, %v215
        %764 = vrot.lane.b32.xlu0 %v762, 127
        %v765 = vpop.permute.xlu0 %764
        %v767 = vadd.f32 %v759, %v765
        %s768 = sld [smem:[#allocation2 + $0x4d]]
        %v769 = vstv %s768
        %v770 = vmul.f32 %v769, %v215
        %772 = vrot.lane.b32.xlu0 %v770, 126
        %v773 = vpop.permute.xlu0 %772
        %v775 = vadd.f32 %v767, %v773
        %s776 = sld [smem:[#allocation2 + $0x4e]]
        %v777 = vstv %s776
        %v778 = vmul.f32 %v777, %v218
        %v779 = vadd.f32 %v775, %v778
        %s780 = sld [smem:[#allocation2 + $0x4f]]
        %v781 = vstv %s780
        %v782 = vmul.f32 %v781, %v218
        %784 = vrot.lane.b32.xlu0 %v782, 127
        %v785 = vpop.permute.xlu0 %784
        %v787 = vadd.f32 %v779, %v785
        %s788 = sld [smem:[#allocation2 + $0x50]]
        %v789 = vstv %s788
        %v790 = vmul.f32 %v789, %v218
        %792 = vrot.lane.b32.xlu0 %v790, 126
        %v793 = vpop.permute.xlu0 %792
        %v795 = vadd.f32 %v787, %v793
        %s796 = sld [smem:[#allocation2 + $0x51]]
        %v797 = vstv %s796
        %v798 = vmul.f32 %v797, %v221
        %v799 = vadd.f32 %v795, %v798
        %s800 = sld [smem:[#allocation2 + $0x52]]
        %v801 = vstv %s800
        %v802 = vmul.f32 %v801, %v221
        %804 = vrot.lane.b32.xlu0 %v802, 127
        %v805 = vpop.permute.xlu0 %804
        %v807 = vadd.f32 %v799, %v805
        %s808 = sld [smem:[#allocation2 + $0x53]]
        %v809 = vstv %s808
        %v810 = vmul.f32 %v809, %v221
        %812 = vrot.lane.b32.xlu0 %v810, 126
        %v813 = vpop.permute.xlu0 %812
        %v815 = vadd.f32 %v807, %v813
        %s816 = sld [smem:[#allocation2 + $0x54]]
        %v817 = vstv %s816
        %v818 = vmul.f32 %v817, %v224
        %v819 = vadd.f32 %v815, %v818
        %s820 = sld [smem:[#allocation2 + $0x55]]
        %v821 = vstv %s820
        %v822 = vmul.f32 %v821, %v224
        %824 = vrot.lane.b32.xlu0 %v822, 127
        %v825 = vpop.permute.xlu0 %824
        %v827 = vadd.f32 %v819, %v825
        %s828 = sld [smem:[#allocation2 + $0x56]]
        %v829 = vstv %s828
        %v830 = vmul.f32 %v829, %v224
        %832 = vrot.lane.b32.xlu0 %v830, 126
        %v833 = vpop.permute.xlu0 %832
        %v835 = vadd.f32 %v827, %v833
        %s836 = sld [smem:[#allocation2 + $0x57]]
        %v837 = vstv %s836
        %v838 = vmul.f32 %v837, %v227
        %v839 = vadd.f32 %v835, %v838
        %s840 = sld [smem:[#allocation2 + $0x58]]
        %v841 = vstv %s840
        %v842 = vmul.f32 %v841, %v227
        %844 = vrot.lane.b32.xlu0 %v842, 127
        %v845 = vpop.permute.xlu0 %844
        %v847 = vadd.f32 %v839, %v845
        %s848 = sld [smem:[#allocation2 + $0x59]]
        %v849 = vstv %s848
        %v850 = vmul.f32 %v849, %v227
        %852 = vrot.lane.b32.xlu0 %v850, 126
        %v853 = vpop.permute.xlu0 %852
        %v855 = vadd.f32 %v847, %v853
        %s856 = sld [smem:[#allocation2 + $0x5a]]
        %v857 = vstv %s856
        %v858 = vmul.f32 %v857, %v230
        %v859 = vadd.f32 %v855, %v858
        %s860 = sld [smem:[#allocation2 + $0x5b]]
        %v861 = vstv %s860
        %v862 = vmul.f32 %v861, %v230
        %864 = vrot.lane.b32.xlu0 %v862, 127
        %v865 = vpop.permute.xlu0 %864
        %v867 = vadd.f32 %v859, %v865
        %s868 = sld [smem:[#allocation2 + $0x5c]]
        %v869 = vstv %s868
        %v870 = vmul.f32 %v869, %v230
        %872 = vrot.lane.b32.xlu0 %v870, 126
        %v873 = vpop.permute.xlu0 %872
        %v875 = vadd.f32 %v867, %v873
        %s876 = sld [smem:[#allocation2 + $0x5d]]
        %v877 = vstv %s876
        %v878 = vmul.f32 %v877, %v233
        %v879 = vadd.f32 %v875, %v878
        %s880 = sld [smem:[#allocation2 + $0x5e]]
        %v881 = vstv %s880
        %v882 = vmul.f32 %v881, %v233
        %884 = vrot.lane.b32.xlu0 %v882, 127
        %v885 = vpop.permute.xlu0 %884
        %v887 = vadd.f32 %v879, %v885
        %s888 = sld [smem:[#allocation2 + $0x5f]]
        %v889 = vstv %s888
        %v890 = vmul.f32 %v889, %v233
        %892 = vrot.lane.b32.xlu0 %v890, 126
        %v893 = vpop.permute.xlu0 %892
        %v895 = vadd.f32 %v887, %v893
        %s896 = sld [smem:[#allocation2 + $0x60]]
        %v897 = vstv %s896
        %v898 = vmul.f32 %v897, %v236
        %v899 = vadd.f32 %v895, %v898
        %s900 = sld [smem:[#allocation2 + $0x61]]
        %v901 = vstv %s900
        %v902 = vmul.f32 %v901, %v236
        %904 = vrot.lane.b32.xlu0 %v902, 127
        %v905 = vpop.permute.xlu0 %904
        %v907 = vadd.f32 %v899, %v905
        %s908 = sld [smem:[#allocation2 + $0x62]]
        %v909 = vstv %s908
        %v910 = vmul.f32 %v909, %v236
        %912 = vrot.lane.b32.xlu0 %v910, 126
        %v913 = vpop.permute.xlu0 %912
        %v915 = vadd.f32 %v907, %v913
        %s916 = sld [smem:[#allocation2 + $0x63]]
        %v917 = vstv %s916
        %v918 = vmul.f32 %v917, %v239
        %v919 = vadd.f32 %v915, %v918
        %s920 = sld [smem:[#allocation2 + $0x64]]
        %v921 = vstv %s920
        %v922 = vmul.f32 %v921, %v239
        %924 = vrot.lane.b32.xlu0 %v922, 127
        %v925 = vpop.permute.xlu0 %924
        %v927 = vadd.f32 %v919, %v925
        %s928 = sld [smem:[#allocation2 + $0x65]]
        %v929 = vstv %s928
        %v930 = vmul.f32 %v929, %v239
        %932 = vrot.lane.b32.xlu0 %v930, 126
        %v933 = vpop.permute.xlu0 %932
        %v935 = vadd.f32 %v927, %v933
        %s936 = sld [smem:[#allocation2 + $0x66]]
        %v937 = vstv %s936
        %v938 = vmul.f32 %v937, %v242
        %v939 = vadd.f32 %v935, %v938
        %s940 = sld [smem:[#allocation2 + $0x67]]
        %v941 = vstv %s940
        %v942 = vmul.f32 %v941, %v242
        %944 = vrot.lane.b32.xlu0 %v942, 127
        %v945 = vpop.permute.xlu0 %944
        %v947 = vadd.f32 %v939, %v945
        %s948 = sld [smem:[#allocation2 + $0x68]]
        %v949 = vstv %s948
        %v950 = vmul.f32 %v949, %v242
        %952 = vrot.lane.b32.xlu0 %v950, 126
        %v953 = vpop.permute.xlu0 %952
        %v955 = vadd.f32 %v947, %v953
        %s956 = sld [smem:[#allocation2 + $0x69]]
        %v957 = vstv %s956
        %v958 = vmul.f32 %v957, %v245
        %v959 = vadd.f32 %v955, %v958
        %s960 = sld [smem:[#allocation2 + $0x6a]]
        %v961 = vstv %s960
        %v962 = vmul.f32 %v961, %v245
        %964 = vrot.lane.b32.xlu0 %v962, 127
        %v965 = vpop.permute.xlu0 %964
        %v967 = vadd.f32 %v959, %v965
        %s968 = sld [smem:[#allocation2 + $0x6b]]
        %v969 = vstv %s968
        %v970 = vmul.f32 %v969, %v245
        %972 = vrot.lane.b32.xlu0 %v970, 126
        %v973 = vpop.permute.xlu0 %972
        %v975 = vadd.f32 %v967, %v973
        %s976 = scalar_lea.vmem %s204, 16 [#allocation7]
        %977 = vst.msk [vmem:[%s976] sm:$0xff] %vm488, %v975
        %s978 = sld [smem:[#allocation5 + $0x3]]
        %v979 = vstv %s978
        %s980 = sld [smem:[#allocation2 + $0x6c]]
        %v981 = vstv %s980
        %v982 = vmul.f32 %v981, %v212
        %v983 = vadd.f32 %v979, %v982
        %s984 = sld [smem:[#allocation2 + $0x6d]]
        %v985 = vstv %s984
        %v986 = vmul.f32 %v985, %v212
        %988 = vrot.lane.b32.xlu0 %v986, 127
        %v989 = vpop.permute.xlu0 %988
        %v991 = vadd.f32 %v983, %v989
        %s992 = sld [smem:[#allocation2 + $0x6e]]
        %v993 = vstv %s992
        %v994 = vmul.f32 %v993, %v212
        %996 = vrot.lane.b32.xlu0 %v994, 126
        %v997 = vpop.permute.xlu0 %996
        %v999 = vadd.f32 %v991, %v997
        %s1000 = sld [smem:[#allocation2 + $0x6f]]
        %v1001 = vstv %s1000
        %v1002 = vmul.f32 %v1001, %v215
        %v1003 = vadd.f32 %v999, %v1002
        %s1004 = sld [smem:[#allocation2 + $0x70]]
        %v1005 = vstv %s1004
        %v1006 = vmul.f32 %v1005, %v215
        %1008 = vrot.lane.b32.xlu0 %v1006, 127
        %v1009 = vpop.permute.xlu0 %1008
        %v1011 = vadd.f32 %v1003, %v1009
        %s1012 = sld [smem:[#allocation2 + $0x71]]
        %v1013 = vstv %s1012
        %v1014 = vmul.f32 %v1013, %v215
        %1016 = vrot.lane.b32.xlu0 %v1014, 126
        %v1017 = vpop.permute.xlu0 %1016
        %v1019 = vadd.f32 %v1011, %v1017
        %s1020 = sld [smem:[#allocation2 + $0x72]]
        %v1021 = vstv %s1020
        %v1022 = vmul.f32 %v1021, %v218
        %v1023 = vadd.f32 %v1019, %v1022
        %s1024 = sld [smem:[#allocation2 + $0x73]]
        %v1025 = vstv %s1024
        %v1026 = vmul.f32 %v1025, %v218
        %1028 = vrot.lane.b32.xlu0 %v1026, 127
        %v1029 = vpop.permute.xlu0 %1028
        %v1031 = vadd.f32 %v1023, %v1029
        %s1032 = sld [smem:[#allocation2 + $0x74]]
        %v1033 = vstv %s1032
        %v1034 = vmul.f32 %v1033, %v218
        %1036 = vrot.lane.b32.xlu0 %v1034, 126
        %v1037 = vpop.permute.xlu0 %1036
        %v1039 = vadd.f32 %v1031, %v1037
        %s1040 = sld [smem:[#allocation2 + $0x75]]
        %v1041 = vstv %s1040
        %v1042 = vmul.f32 %v1041, %v221
        %v1043 = vadd.f32 %v1039, %v1042
        %s1044 = sld [smem:[#allocation2 + $0x76]]
        %v1045 = vstv %s1044
        %v1046 = vmul.f32 %v1045, %v221
        %1048 = vrot.lane.b32.xlu0 %v1046, 127
        %v1049 = vpop.permute.xlu0 %1048
        %v1051 = vadd.f32 %v1043, %v1049
        %s1052 = sld [smem:[#allocation2 + $0x77]]
        %v1053 = vstv %s1052
        %v1054 = vmul.f32 %v1053, %v221
        %1056 = vrot.lane.b32.xlu0 %v1054, 126
        %v1057 = vpop.permute.xlu0 %1056
        %v1059 = vadd.f32 %v1051, %v1057
        %s1060 = sld [smem:[#allocation2 + $0x78]]
        %v1061 = vstv %s1060
        %v1062 = vmul.f32 %v1061, %v224
        %v1063 = vadd.f32 %v1059, %v1062
        %s1064 = sld [smem:[#allocation2 + $0x79]]
        %v1065 = vstv %s1064
        %v1066 = vmul.f32 %v1065, %v224
        %1068 = vrot.lane.b32.xlu0 %v1066, 127
        %v1069 = vpop.permute.xlu0 %1068
        %v1071 = vadd.f32 %v1063, %v1069
        %s1072 = sld [smem:[#allocation2 + $0x7a]]
        %v1073 = vstv %s1072
        %v1074 = vmul.f32 %v1073, %v224
        %1076 = vrot.lane.b32.xlu0 %v1074, 126
        %v1077 = vpop.permute.xlu0 %1076
        %v1079 = vadd.f32 %v1071, %v1077
        %s1080 = sld [smem:[#allocation2 + $0x7b]]
        %v1081 = vstv %s1080
        %v1082 = vmul.f32 %v1081, %v227
        %v1083 = vadd.f32 %v1079, %v1082
        %s1084 = sld [smem:[#allocation2 + $0x7c]]
        %v1085 = vstv %s1084
        %v1086 = vmul.f32 %v1085, %v227
        %1088 = vrot.lane.b32.xlu0 %v1086, 127
        %v1089 = vpop.permute.xlu0 %1088
        %v1091 = vadd.f32 %v1083, %v1089
        %s1092 = sld [smem:[#allocation2 + $0x7d]]
        %v1093 = vstv %s1092
        %v1094 = vmul.f32 %v1093, %v227
        %1096 = vrot.lane.b32.xlu0 %v1094, 126
        %v1097 = vpop.permute.xlu0 %1096
        %v1099 = vadd.f32 %v1091, %v1097
        %s1100 = sld [smem:[#allocation2 + $0x7e]]
        %v1101 = vstv %s1100
        %v1102 = vmul.f32 %v1101, %v230
        %v1103 = vadd.f32 %v1099, %v1102
        %s1104 = sld [smem:[#allocation2 + $0x7f]]
        %v1105 = vstv %s1104
        %v1106 = vmul.f32 %v1105, %v230
        %1108 = vrot.lane.b32.xlu0 %v1106, 127
        %v1109 = vpop.permute.xlu0 %1108
        %v1111 = vadd.f32 %v1103, %v1109
        %s1112 = sld [smem:[#allocation2 + $0x80]]
        %v1113 = vstv %s1112
        %v1114 = vmul.f32 %v1113, %v230
        %1116 = vrot.lane.b32.xlu0 %v1114, 126
        %v1117 = vpop.permute.xlu0 %1116
        %v1119 = vadd.f32 %v1111, %v1117
        %s1120 = sld [smem:[#allocation2 + $0x81]]
        %v1121 = vstv %s1120
        %v1122 = vmul.f32 %v1121, %v233
        %v1123 = vadd.f32 %v1119, %v1122
        %s1124 = sld [smem:[#allocation2 + $0x82]]
        %v1125 = vstv %s1124
        %v1126 = vmul.f32 %v1125, %v233
        %1128 = vrot.lane.b32.xlu0 %v1126, 127
        %v1129 = vpop.permute.xlu0 %1128
        %v1131 = vadd.f32 %v1123, %v1129
        %s1132 = sld [smem:[#allocation2 + $0x83]]
        %v1133 = vstv %s1132
        %v1134 = vmul.f32 %v1133, %v233
        %1136 = vrot.lane.b32.xlu0 %v1134, 126
        %v1137 = vpop.permute.xlu0 %1136
        %v1139 = vadd.f32 %v1131, %v1137
        %s1140 = sld [smem:[#allocation2 + $0x84]]
        %v1141 = vstv %s1140
        %v1142 = vmul.f32 %v1141, %v236
        %v1143 = vadd.f32 %v1139, %v1142
        %s1144 = sld [smem:[#allocation2 + $0x85]]
        %v1145 = vstv %s1144
        %v1146 = vmul.f32 %v1145, %v236
        %1148 = vrot.lane.b32.xlu0 %v1146, 127
        %v1149 = vpop.permute.xlu0 %1148
        %v1151 = vadd.f32 %v1143, %v1149
        %s1152 = sld [smem:[#allocation2 + $0x86]]
        %v1153 = vstv %s1152
        %v1154 = vmul.f32 %v1153, %v236
        %1156 = vrot.lane.b32.xlu0 %v1154, 126
        %v1157 = vpop.permute.xlu0 %1156
        %v1159 = vadd.f32 %v1151, %v1157
        %s1160 = sld [smem:[#allocation2 + $0x87]]
        %v1161 = vstv %s1160
        %v1162 = vmul.f32 %v1161, %v239
        %v1163 = vadd.f32 %v1159, %v1162
        %s1164 = sld [smem:[#allocation2 + $0x88]]
        %v1165 = vstv %s1164
        %v1166 = vmul.f32 %v1165, %v239
        %1168 = vrot.lane.b32.xlu0 %v1166, 127
        %v1169 = vpop.permute.xlu0 %1168
        %v1171 = vadd.f32 %v1163, %v1169
        %s1172 = sld [smem:[#allocation2 + $0x89]]
        %v1173 = vstv %s1172
        %v1174 = vmul.f32 %v1173, %v239
        %1176 = vrot.lane.b32.xlu0 %v1174, 126
        %v1177 = vpop.permute.xlu0 %1176
        %v1179 = vadd.f32 %v1171, %v1177
        %s1180 = sld [smem:[#allocation2 + $0x8a]]
        %v1181 = vstv %s1180
        %v1182 = vmul.f32 %v1181, %v242
        %v1183 = vadd.f32 %v1179, %v1182
        %s1184 = sld [smem:[#allocation2 + $0x8b]]
        %v1185 = vstv %s1184
        %v1186 = vmul.f32 %v1185, %v242
        %1188 = vrot.lane.b32.xlu0 %v1186, 127
        %v1189 = vpop.permute.xlu0 %1188
        %v1191 = vadd.f32 %v1183, %v1189
        %s1192 = sld [smem:[#allocation2 + $0x8c]]
        %v1193 = vstv %s1192
        %v1194 = vmul.f32 %v1193, %v242
        %1196 = vrot.lane.b32.xlu0 %v1194, 126
        %v1197 = vpop.permute.xlu0 %1196
        %v1199 = vadd.f32 %v1191, %v1197
        %s1200 = sld [smem:[#allocation2 + $0x8d]]
        %v1201 = vstv %s1200
        %v1202 = vmul.f32 %v1201, %v245
        %v1203 = vadd.f32 %v1199, %v1202
        %s1204 = sld [smem:[#allocation2 + $0x8e]]
        %v1205 = vstv %s1204
        %v1206 = vmul.f32 %v1205, %v245
        %1208 = vrot.lane.b32.xlu0 %v1206, 127
        %v1209 = vpop.permute.xlu0 %1208
        %v1211 = vadd.f32 %v1203, %v1209
        %s1212 = sld [smem:[#allocation2 + $0x8f]]
        %v1213 = vstv %s1212
        %v1214 = vmul.f32 %v1213, %v245
        %1216 = vrot.lane.b32.xlu0 %v1214, 126
        %v1217 = vpop.permute.xlu0 %1216
        %v1219 = vadd.f32 %v1211, %v1217
        %s1220 = scalar_lea.vmem %s204, 24 [#allocation7]
        %1221 = vst.msk [vmem:[%s1220] sm:$0xff] %vm488, %v1219
        %s1222 = sld [smem:[#allocation5 + $0x4]]
        %v1223 = vstv %s1222
        %s1224 = sld [smem:[#allocation2 + $0x90]]
        %v1225 = vstv %s1224
        %v1226 = vmul.f32 %v1225, %v212
        %v1227 = vadd.f32 %v1223, %v1226
        %s1228 = sld [smem:[#allocation2 + $0x91]]
        %v1229 = vstv %s1228
        %v1230 = vmul.f32 %v1229, %v212
        %1232 = vrot.lane.b32.xlu0 %v1230, 127
        %v1233 = vpop.permute.xlu0 %1232
        %v1235 = vadd.f32 %v1227, %v1233
        %s1236 = sld [smem:[#allocation2 + $0x92]]
        %v1237 = vstv %s1236
        %v1238 = vmul.f32 %v1237, %v212
        %1240 = vrot.lane.b32.xlu0 %v1238, 126
        %v1241 = vpop.permute.xlu0 %1240
        %v1243 = vadd.f32 %v1235, %v1241
        %s1244 = sld [smem:[#allocation2 + $0x93]]
        %v1245 = vstv %s1244
        %v1246 = vmul.f32 %v1245, %v215
        %v1247 = vadd.f32 %v1243, %v1246
        %s1248 = sld [smem:[#allocation2 + $0x94]]
        %v1249 = vstv %s1248
        %v1250 = vmul.f32 %v1249, %v215
        %1252 = vrot.lane.b32.xlu0 %v1250, 127
        %v1253 = vpop.permute.xlu0 %1252
        %v1255 = vadd.f32 %v1247, %v1253
        %s1256 = sld [smem:[#allocation2 + $0x95]]
        %v1257 = vstv %s1256
        %v1258 = vmul.f32 %v1257, %v215
        %1260 = vrot.lane.b32.xlu0 %v1258, 126
        %v1261 = vpop.permute.xlu0 %1260
        %v1263 = vadd.f32 %v1255, %v1261
        %s1264 = sld [smem:[#allocation2 + $0x96]]
        %v1265 = vstv %s1264
        %v1266 = vmul.f32 %v1265, %v218
        %v1267 = vadd.f32 %v1263, %v1266
        %s1268 = sld [smem:[#allocation2 + $0x97]]
        %v1269 = vstv %s1268
        %v1270 = vmul.f32 %v1269, %v218
        %1272 = vrot.lane.b32.xlu0 %v1270, 127
        %v1273 = vpop.permute.xlu0 %1272
        %v1275 = vadd.f32 %v1267, %v1273
        %s1276 = sld [smem:[#allocation2 + $0x98]]
        %v1277 = vstv %s1276
        %v1278 = vmul.f32 %v1277, %v218
        %1280 = vrot.lane.b32.xlu0 %v1278, 126
        %v1281 = vpop.permute.xlu0 %1280
        %v1283 = vadd.f32 %v1275, %v1281
        %s1284 = sld [smem:[#allocation2 + $0x99]]
        %v1285 = vstv %s1284
        %v1286 = vmul.f32 %v1285, %v221
        %v1287 = vadd.f32 %v1283, %v1286
        %s1288 = sld [smem:[#allocation2 + $0x9a]]
        %v1289 = vstv %s1288
        %v1290 = vmul.f32 %v1289, %v221
        %1292 = vrot.lane.b32.xlu0 %v1290, 127
        %v1293 = vpop.permute.xlu0 %1292
        %v1295 = vadd.f32 %v1287, %v1293
        %s1296 = sld [smem:[#allocation2 + $0x9b]]
        %v1297 = vstv %s1296
        %v1298 = vmul.f32 %v1297, %v221
        %1300 = vrot.lane.b32.xlu0 %v1298, 126
        %v1301 = vpop.permute.xlu0 %1300
        %v1303 = vadd.f32 %v1295, %v1301
        %s1304 = sld [smem:[#allocation2 + $0x9c]]
        %v1305 = vstv %s1304
        %v1306 = vmul.f32 %v1305, %v224
        %v1307 = vadd.f32 %v1303, %v1306
        %s1308 = sld [smem:[#allocation2 + $0x9d]]
        %v1309 = vstv %s1308
        %v1310 = vmul.f32 %v1309, %v224
        %1312 = vrot.lane.b32.xlu0 %v1310, 127
        %v1313 = vpop.permute.xlu0 %1312
        %v1315 = vadd.f32 %v1307, %v1313
        %s1316 = sld [smem:[#allocation2 + $0x9e]]
        %v1317 = vstv %s1316
        %v1318 = vmul.f32 %v1317, %v224
        %1320 = vrot.lane.b32.xlu0 %v1318, 126
        %v1321 = vpop.permute.xlu0 %1320
        %v1323 = vadd.f32 %v1315, %v1321
        %s1324 = sld [smem:[#allocation2 + $0x9f]]
        %v1325 = vstv %s1324
        %v1326 = vmul.f32 %v1325, %v227
        %v1327 = vadd.f32 %v1323, %v1326
        %s1328 = sld [smem:[#allocation2 + $0xa0]]
        %v1329 = vstv %s1328
        %v1330 = vmul.f32 %v1329, %v227
        %1332 = vrot.lane.b32.xlu0 %v1330, 127
        %v1333 = vpop.permute.xlu0 %1332
        %v1335 = vadd.f32 %v1327, %v1333
        %s1336 = sld [smem:[#allocation2 + $0xa1]]
        %v1337 = vstv %s1336
        %v1338 = vmul.f32 %v1337, %v227
        %1340 = vrot.lane.b32.xlu0 %v1338, 126
        %v1341 = vpop.permute.xlu0 %1340
        %v1343 = vadd.f32 %v1335, %v1341
        %s1344 = sld [smem:[#allocation2 + $0xa2]]
        %v1345 = vstv %s1344
        %v1346 = vmul.f32 %v1345, %v230
        %v1347 = vadd.f32 %v1343, %v1346
        %s1348 = sld [smem:[#allocation2 + $0xa3]]
        %v1349 = vstv %s1348
        %v1350 = vmul.f32 %v1349, %v230
        %1352 = vrot.lane.b32.xlu0 %v1350, 127
        %v1353 = vpop.permute.xlu0 %1352
        %v1355 = vadd.f32 %v1347, %v1353
        %s1356 = sld [smem:[#allocation2 + $0xa4]]
        %v1357 = vstv %s1356
        %v1358 = vmul.f32 %v1357, %v230
        %1360 = vrot.lane.b32.xlu0 %v1358, 126
        %v1361 = vpop.permute.xlu0 %1360
        %v1363 = vadd.f32 %v1355, %v1361
        %s1364 = sld [smem:[#allocation2 + $0xa5]]
        %v1365 = vstv %s1364
        %v1366 = vmul.f32 %v1365, %v233
        %v1367 = vadd.f32 %v1363, %v1366
        %s1368 = sld [smem:[#allocation2 + $0xa6]]
        %v1369 = vstv %s1368
        %v1370 = vmul.f32 %v1369, %v233
        %1372 = vrot.lane.b32.xlu0 %v1370, 127
        %v1373 = vpop.permute.xlu0 %1372
        %v1375 = vadd.f32 %v1367, %v1373
        %s1376 = sld [smem:[#allocation2 + $0xa7]]
        %v1377 = vstv %s1376
        %v1378 = vmul.f32 %v1377, %v233
        %1380 = vrot.lane.b32.xlu0 %v1378, 126
        %v1381 = vpop.permute.xlu0 %1380
        %v1383 = vadd.f32 %v1375, %v1381
        %s1384 = sld [smem:[#allocation2 + $0xa8]]
        %v1385 = vstv %s1384
        %v1386 = vmul.f32 %v1385, %v236
        %v1387 = vadd.f32 %v1383, %v1386
        %s1388 = sld [smem:[#allocation2 + $0xa9]]
        %v1389 = vstv %s1388
        %v1390 = vmul.f32 %v1389, %v236
        %1392 = vrot.lane.b32.xlu0 %v1390, 127
        %v1393 = vpop.permute.xlu0 %1392
        %v1395 = vadd.f32 %v1387, %v1393
        %s1396 = sld [smem:[#allocation2 + $0xaa]]
        %v1397 = vstv %s1396
        %v1398 = vmul.f32 %v1397, %v236
        %1400 = vrot.lane.b32.xlu0 %v1398, 126
        %v1401 = vpop.permute.xlu0 %1400
        %v1403 = vadd.f32 %v1395, %v1401
        %s1404 = sld [smem:[#allocation2 + $0xab]]
        %v1405 = vstv %s1404
        %v1406 = vmul.f32 %v1405, %v239
        %v1407 = vadd.f32 %v1403, %v1406
        %s1408 = sld [smem:[#allocation2 + $0xac]]
        %v1409 = vstv %s1408
        %v1410 = vmul.f32 %v1409, %v239
        %1412 = vrot.lane.b32.xlu0 %v1410, 127
        %v1413 = vpop.permute.xlu0 %1412
        %v1415 = vadd.f32 %v1407, %v1413
        %s1416 = sld [smem:[#allocation2 + $0xad]]
        %v1417 = vstv %s1416
        %v1418 = vmul.f32 %v1417, %v239
        %1420 = vrot.lane.b32.xlu0 %v1418, 126
        %v1421 = vpop.permute.xlu0 %1420
        %v1423 = vadd.f32 %v1415, %v1421
        %s1424 = sld [smem:[#allocation2 + $0xae]]
        %v1425 = vstv %s1424
        %v1426 = vmul.f32 %v1425, %v242
        %v1427 = vadd.f32 %v1423, %v1426
        %s1428 = sld [smem:[#allocation2 + $0xaf]]
        %v1429 = vstv %s1428
        %v1430 = vmul.f32 %v1429, %v242
        %1432 = vrot.lane.b32.xlu0 %v1430, 127
        %v1433 = vpop.permute.xlu0 %1432
        %v1435 = vadd.f32 %v1427, %v1433
        %s1436 = sld [smem:[#allocation2 + $0xb0]]
        %v1437 = vstv %s1436
        %v1438 = vmul.f32 %v1437, %v242
        %1440 = vrot.lane.b32.xlu0 %v1438, 126
        %v1441 = vpop.permute.xlu0 %1440
        %v1443 = vadd.f32 %v1435, %v1441
        %s1444 = sld [smem:[#allocation2 + $0xb1]]
        %v1445 = vstv %s1444
        %v1446 = vmul.f32 %v1445, %v245
        %v1447 = vadd.f32 %v1443, %v1446
        %s1448 = sld [smem:[#allocation2 + $0xb2]]
        %v1449 = vstv %s1448
        %v1450 = vmul.f32 %v1449, %v245
        %1452 = vrot.lane.b32.xlu0 %v1450, 127
        %v1453 = vpop.permute.xlu0 %1452
        %v1455 = vadd.f32 %v1447, %v1453
        %s1456 = sld [smem:[#allocation2 + $0xb3]]
        %v1457 = vstv %s1456
        %v1458 = vmul.f32 %v1457, %v245
        %1460 = vrot.lane.b32.xlu0 %v1458, 126
        %v1461 = vpop.permute.xlu0 %1460
        %v1463 = vadd.f32 %v1455, %v1461
        %s1464 = scalar_lea.vmem %s204, 32 [#allocation7]
        %1465 = vst.msk [vmem:[%s1464] sm:$0xff] %vm488, %v1463
        %s1466 = sld [smem:[#allocation5 + $0x5]]
        %v1467 = vstv %s1466
        %s1468 = sld [smem:[#allocation2 + $0xb4]]
        %v1469 = vstv %s1468
        %v1470 = vmul.f32 %v1469, %v212
        %v1471 = vadd.f32 %v1467, %v1470
        %s1472 = sld [smem:[#allocation2 + $0xb5]]
        %v1473 = vstv %s1472
        %v1474 = vmul.f32 %v1473, %v212
        %1476 = vrot.lane.b32.xlu0 %v1474, 127
        %v1477 = vpop.permute.xlu0 %1476
        %v1479 = vadd.f32 %v1471, %v1477
        %s1480 = sld [smem:[#allocation2 + $0xb6]]
        %v1481 = vstv %s1480
        %v1482 = vmul.f32 %v1481, %v212
        %1484 = vrot.lane.b32.xlu0 %v1482, 126
        %v1485 = vpop.permute.xlu0 %1484
        %v1487 = vadd.f32 %v1479, %v1485
        %s1488 = sld [smem:[#allocation2 + $0xb7]]
        %v1489 = vstv %s1488
        %v1490 = vmul.f32 %v1489, %v215
        %v1491 = vadd.f32 %v1487, %v1490
        %s1492 = sld [smem:[#allocation2 + $0xb8]]
        %v1493 = vstv %s1492
        %v1494 = vmul.f32 %v1493, %v215
        %1496 = vrot.lane.b32.xlu0 %v1494, 127
        %v1497 = vpop.permute.xlu0 %1496
        %v1499 = vadd.f32 %v1491, %v1497
        %s1500 = sld [smem:[#allocation2 + $0xb9]]
        %v1501 = vstv %s1500
        %v1502 = vmul.f32 %v1501, %v215
        %1504 = vrot.lane.b32.xlu0 %v1502, 126
        %v1505 = vpop.permute.xlu0 %1504
        %v1507 = vadd.f32 %v1499, %v1505
        %s1508 = sld [smem:[#allocation2 + $0xba]]
        %v1509 = vstv %s1508
        %v1510 = vmul.f32 %v1509, %v218
        %v1511 = vadd.f32 %v1507, %v1510
        %s1512 = sld [smem:[#allocation2 + $0xbb]]
        %v1513 = vstv %s1512
        %v1514 = vmul.f32 %v1513, %v218
        %1516 = vrot.lane.b32.xlu0 %v1514, 127
        %v1517 = vpop.permute.xlu0 %1516
        %v1519 = vadd.f32 %v1511, %v1517
        %s1520 = sld [smem:[#allocation2 + $0xbc]]
        %v1521 = vstv %s1520
        %v1522 = vmul.f32 %v1521, %v218
        %1524 = vrot.lane.b32.xlu0 %v1522, 126
        %v1525 = vpop.permute.xlu0 %1524
        %v1527 = vadd.f32 %v1519, %v1525
        %s1528 = sld [smem:[#allocation2 + $0xbd]]
        %v1529 = vstv %s1528
        %v1530 = vmul.f32 %v1529, %v221
        %v1531 = vadd.f32 %v1527, %v1530
        %s1532 = sld [smem:[#allocation2 + $0xbe]]
        %v1533 = vstv %s1532
        %v1534 = vmul.f32 %v1533, %v221
        %1536 = vrot.lane.b32.xlu0 %v1534, 127
        %v1537 = vpop.permute.xlu0 %1536
        %v1539 = vadd.f32 %v1531, %v1537
        %s1540 = sld [smem:[#allocation2 + $0xbf]]
        %v1541 = vstv %s1540
        %v1542 = vmul.f32 %v1541, %v221
        %1544 = vrot.lane.b32.xlu0 %v1542, 126
        %v1545 = vpop.permute.xlu0 %1544
        %v1547 = vadd.f32 %v1539, %v1545
        %s1548 = sld [smem:[#allocation2 + $0xc0]]
        %v1549 = vstv %s1548
        %v1550 = vmul.f32 %v1549, %v224
        %v1551 = vadd.f32 %v1547, %v1550
        %s1552 = sld [smem:[#allocation2 + $0xc1]]
        %v1553 = vstv %s1552
        %v1554 = vmul.f32 %v1553, %v224
        %1556 = vrot.lane.b32.xlu0 %v1554, 127
        %v1557 = vpop.permute.xlu0 %1556
        %v1559 = vadd.f32 %v1551, %v1557
        %s1560 = sld [smem:[#allocation2 + $0xc2]]
        %v1561 = vstv %s1560
        %v1562 = vmul.f32 %v1561, %v224
        %1564 = vrot.lane.b32.xlu0 %v1562, 126
        %v1565 = vpop.permute.xlu0 %1564
        %v1567 = vadd.f32 %v1559, %v1565
        %s1568 = sld [smem:[#allocation2 + $0xc3]]
        %v1569 = vstv %s1568
        %v1570 = vmul.f32 %v1569, %v227
        %v1571 = vadd.f32 %v1567, %v1570
        %s1572 = sld [smem:[#allocation2 + $0xc4]]
        %v1573 = vstv %s1572
        %v1574 = vmul.f32 %v1573, %v227
        %1576 = vrot.lane.b32.xlu0 %v1574, 127
        %v1577 = vpop.permute.xlu0 %1576
        %v1579 = vadd.f32 %v1571, %v1577
        %s1580 = sld [smem:[#allocation2 + $0xc5]]
        %v1581 = vstv %s1580
        %v1582 = vmul.f32 %v1581, %v227
        %1584 = vrot.lane.b32.xlu0 %v1582, 126
        %v1585 = vpop.permute.xlu0 %1584
        %v1587 = vadd.f32 %v1579, %v1585
        %s1588 = sld [smem:[#allocation2 + $0xc6]]
        %v1589 = vstv %s1588
        %v1590 = vmul.f32 %v1589, %v230
        %v1591 = vadd.f32 %v1587, %v1590
        %s1592 = sld [smem:[#allocation2 + $0xc7]]
        %v1593 = vstv %s1592
        %v1594 = vmul.f32 %v1593, %v230
        %1596 = vrot.lane.b32.xlu0 %v1594, 127
        %v1597 = vpop.permute.xlu0 %1596
        %v1599 = vadd.f32 %v1591, %v1597
        %s1600 = sld [smem:[#allocation2 + $0xc8]]
        %v1601 = vstv %s1600
        %v1602 = vmul.f32 %v1601, %v230
        %1604 = vrot.lane.b32.xlu0 %v1602, 126
        %v1605 = vpop.permute.xlu0 %1604
        %v1607 = vadd.f32 %v1599, %v1605
        %s1608 = sld [smem:[#allocation2 + $0xc9]]
        %v1609 = vstv %s1608
        %v1610 = vmul.f32 %v1609, %v233
        %v1611 = vadd.f32 %v1607, %v1610
        %s1612 = sld [smem:[#allocation2 + $0xca]]
        %v1613 = vstv %s1612
        %v1614 = vmul.f32 %v1613, %v233
        %1616 = vrot.lane.b32.xlu0 %v1614, 127
        %v1617 = vpop.permute.xlu0 %1616
        %v1619 = vadd.f32 %v1611, %v1617
        %s1620 = sld [smem:[#allocation2 + $0xcb]]
        %v1621 = vstv %s1620
        %v1622 = vmul.f32 %v1621, %v233
        %1624 = vrot.lane.b32.xlu0 %v1622, 126
        %v1625 = vpop.permute.xlu0 %1624
        %v1627 = vadd.f32 %v1619, %v1625
        %s1628 = sld [smem:[#allocation2 + $0xcc]]
        %v1629 = vstv %s1628
        %v1630 = vmul.f32 %v1629, %v236
        %v1631 = vadd.f32 %v1627, %v1630
        %s1632 = sld [smem:[#allocation2 + $0xcd]]
        %v1633 = vstv %s1632
        %v1634 = vmul.f32 %v1633, %v236
        %1636 = vrot.lane.b32.xlu0 %v1634, 127
        %v1637 = vpop.permute.xlu0 %1636
        %v1639 = vadd.f32 %v1631, %v1637
        %s1640 = sld [smem:[#allocation2 + $0xce]]
        %v1641 = vstv %s1640
        %v1642 = vmul.f32 %v1641, %v236
        %1644 = vrot.lane.b32.xlu0 %v1642, 126
        %v1645 = vpop.permute.xlu0 %1644
        %v1647 = vadd.f32 %v1639, %v1645
        %s1648 = sld [smem:[#allocation2 + $0xcf]]
        %v1649 = vstv %s1648
        %v1650 = vmul.f32 %v1649, %v239
        %v1651 = vadd.f32 %v1647, %v1650
        %s1652 = sld [smem:[#allocation2 + $0xd0]]
        %v1653 = vstv %s1652
        %v1654 = vmul.f32 %v1653, %v239
        %1656 = vrot.lane.b32.xlu0 %v1654, 127
        %v1657 = vpop.permute.xlu0 %1656
        %v1659 = vadd.f32 %v1651, %v1657
        %s1660 = sld [smem:[#allocation2 + $0xd1]]
        %v1661 = vstv %s1660
        %v1662 = vmul.f32 %v1661, %v239
        %1664 = vrot.lane.b32.xlu0 %v1662, 126
        %v1665 = vpop.permute.xlu0 %1664
        %v1667 = vadd.f32 %v1659, %v1665
        %s1668 = sld [smem:[#allocation2 + $0xd2]]
        %v1669 = vstv %s1668
        %v1670 = vmul.f32 %v1669, %v242
        %v1671 = vadd.f32 %v1667, %v1670
        %s1672 = sld [smem:[#allocation2 + $0xd3]]
        %v1673 = vstv %s1672
        %v1674 = vmul.f32 %v1673, %v242
        %1676 = vrot.lane.b32.xlu0 %v1674, 127
        %v1677 = vpop.permute.xlu0 %1676
        %v1679 = vadd.f32 %v1671, %v1677
        %s1680 = sld [smem:[#allocation2 + $0xd4]]
        %v1681 = vstv %s1680
        %v1682 = vmul.f32 %v1681, %v242
        %1684 = vrot.lane.b32.xlu0 %v1682, 126
        %v1685 = vpop.permute.xlu0 %1684
        %v1687 = vadd.f32 %v1679, %v1685
        %s1688 = sld [smem:[#allocation2 + $0xd5]]
        %v1689 = vstv %s1688
        %v1690 = vmul.f32 %v1689, %v245
        %v1691 = vadd.f32 %v1687, %v1690
        %s1692 = sld [smem:[#allocation2 + $0xd6]]
        %v1693 = vstv %s1692
        %v1694 = vmul.f32 %v1693, %v245
        %1696 = vrot.lane.b32.xlu0 %v1694, 127
        %v1697 = vpop.permute.xlu0 %1696
        %v1699 = vadd.f32 %v1691, %v1697
        %s1700 = sld [smem:[#allocation2 + $0xd7]]
        %v1701 = vstv %s1700
        %v1702 = vmul.f32 %v1701, %v245
        %1704 = vrot.lane.b32.xlu0 %v1702, 126
        %v1705 = vpop.permute.xlu0 %1704
        %v1707 = vadd.f32 %v1699, %v1705
        %s1708 = scalar_lea.vmem %s204, 40 [#allocation7]
        %1709 = vst.msk [vmem:[%s1708] sm:$0xff] %vm488, %v1707
        %s1710 = sld [smem:[#allocation5 + $0x6]]
        %v1711 = vstv %s1710
        %s1712 = sld [smem:[#allocation2 + $0xd8]]
        %v1713 = vstv %s1712
        %v1714 = vmul.f32 %v1713, %v212
        %v1715 = vadd.f32 %v1711, %v1714
        %s1716 = sld [smem:[#allocation2 + $0xd9]]
        %v1717 = vstv %s1716
        %v1718 = vmul.f32 %v1717, %v212
        %1720 = vrot.lane.b32.xlu0 %v1718, 127
        %v1721 = vpop.permute.xlu0 %1720
        %v1723 = vadd.f32 %v1715, %v1721
        %s1724 = sld [smem:[#allocation2 + $0xda]]
        %v1725 = vstv %s1724
        %v1726 = vmul.f32 %v1725, %v212
        %1728 = vrot.lane.b32.xlu0 %v1726, 126
        %v1729 = vpop.permute.xlu0 %1728
        %v1731 = vadd.f32 %v1723, %v1729
        %s1732 = sld [smem:[#allocation2 + $0xdb]]
        %v1733 = vstv %s1732
        %v1734 = vmul.f32 %v1733, %v215
        %v1735 = vadd.f32 %v1731, %v1734
        %s1736 = sld [smem:[#allocation2 + $0xdc]]
        %v1737 = vstv %s1736
        %v1738 = vmul.f32 %v1737, %v215
        %1740 = vrot.lane.b32.xlu0 %v1738, 127
        %v1741 = vpop.permute.xlu0 %1740
        %v1743 = vadd.f32 %v1735, %v1741
        %s1744 = sld [smem:[#allocation2 + $0xdd]]
        %v1745 = vstv %s1744
        %v1746 = vmul.f32 %v1745, %v215
        %1748 = vrot.lane.b32.xlu0 %v1746, 126
        %v1749 = vpop.permute.xlu0 %1748
        %v1751 = vadd.f32 %v1743, %v1749
        %s1752 = sld [smem:[#allocation2 + $0xde]]
        %v1753 = vstv %s1752
        %v1754 = vmul.f32 %v1753, %v218
        %v1755 = vadd.f32 %v1751, %v1754
        %s1756 = sld [smem:[#allocation2 + $0xdf]]
        %v1757 = vstv %s1756
        %v1758 = vmul.f32 %v1757, %v218
        %1760 = vrot.lane.b32.xlu0 %v1758, 127
        %v1761 = vpop.permute.xlu0 %1760
        %v1763 = vadd.f32 %v1755, %v1761
        %s1764 = sld [smem:[#allocation2 + $0xe0]]
        %v1765 = vstv %s1764
        %v1766 = vmul.f32 %v1765, %v218
        %1768 = vrot.lane.b32.xlu0 %v1766, 126
        %v1769 = vpop.permute.xlu0 %1768
        %v1771 = vadd.f32 %v1763, %v1769
        %s1772 = sld [smem:[#allocation2 + $0xe1]]
        %v1773 = vstv %s1772
        %v1774 = vmul.f32 %v1773, %v221
        %v1775 = vadd.f32 %v1771, %v1774
        %s1776 = sld [smem:[#allocation2 + $0xe2]]
        %v1777 = vstv %s1776
        %v1778 = vmul.f32 %v1777, %v221
        %1780 = vrot.lane.b32.xlu0 %v1778, 127
        %v1781 = vpop.permute.xlu0 %1780
        %v1783 = vadd.f32 %v1775, %v1781
        %s1784 = sld [smem:[#allocation2 + $0xe3]]
        %v1785 = vstv %s1784
        %v1786 = vmul.f32 %v1785, %v221
        %1788 = vrot.lane.b32.xlu0 %v1786, 126
        %v1789 = vpop.permute.xlu0 %1788
        %v1791 = vadd.f32 %v1783, %v1789
        %s1792 = sld [smem:[#allocation2 + $0xe4]]
        %v1793 = vstv %s1792
        %v1794 = vmul.f32 %v1793, %v224
        %v1795 = vadd.f32 %v1791, %v1794
        %s1796 = sld [smem:[#allocation2 + $0xe5]]
        %v1797 = vstv %s1796
        %v1798 = vmul.f32 %v1797, %v224
        %1800 = vrot.lane.b32.xlu0 %v1798, 127
        %v1801 = vpop.permute.xlu0 %1800
        %v1803 = vadd.f32 %v1795, %v1801
        %s1804 = sld [smem:[#allocation2 + $0xe6]]
        %v1805 = vstv %s1804
        %v1806 = vmul.f32 %v1805, %v224
        %1808 = vrot.lane.b32.xlu0 %v1806, 126
        %v1809 = vpop.permute.xlu0 %1808
        %v1811 = vadd.f32 %v1803, %v1809
        %s1812 = sld [smem:[#allocation2 + $0xe7]]
        %v1813 = vstv %s1812
        %v1814 = vmul.f32 %v1813, %v227
        %v1815 = vadd.f32 %v1811, %v1814
        %s1816 = sld [smem:[#allocation2 + $0xe8]]
        %v1817 = vstv %s1816
        %v1818 = vmul.f32 %v1817, %v227
        %1820 = vrot.lane.b32.xlu0 %v1818, 127
        %v1821 = vpop.permute.xlu0 %1820
        %v1823 = vadd.f32 %v1815, %v1821
        %s1824 = sld [smem:[#allocation2 + $0xe9]]
        %v1825 = vstv %s1824
        %v1826 = vmul.f32 %v1825, %v227
        %1828 = vrot.lane.b32.xlu0 %v1826, 126
        %v1829 = vpop.permute.xlu0 %1828
        %v1831 = vadd.f32 %v1823, %v1829
        %s1832 = sld [smem:[#allocation2 + $0xea]]
        %v1833 = vstv %s1832
        %v1834 = vmul.f32 %v1833, %v230
        %v1835 = vadd.f32 %v1831, %v1834
        %s1836 = sld [smem:[#allocation2 + $0xeb]]
        %v1837 = vstv %s1836
        %v1838 = vmul.f32 %v1837, %v230
        %1840 = vrot.lane.b32.xlu0 %v1838, 127
        %v1841 = vpop.permute.xlu0 %1840
        %v1843 = vadd.f32 %v1835, %v1841
        %s1844 = sld [smem:[#allocation2 + $0xec]]
        %v1845 = vstv %s1844
        %v1846 = vmul.f32 %v1845, %v230
        %1848 = vrot.lane.b32.xlu0 %v1846, 126
        %v1849 = vpop.permute.xlu0 %1848
        %v1851 = vadd.f32 %v1843, %v1849
        %s1852 = sld [smem:[#allocation2 + $0xed]]
        %v1853 = vstv %s1852
        %v1854 = vmul.f32 %v1853, %v233
        %v1855 = vadd.f32 %v1851, %v1854
        %s1856 = sld [smem:[#allocation2 + $0xee]]
        %v1857 = vstv %s1856
        %v1858 = vmul.f32 %v1857, %v233
        %1860 = vrot.lane.b32.xlu0 %v1858, 127
        %v1861 = vpop.permute.xlu0 %1860
        %v1863 = vadd.f32 %v1855, %v1861
        %s1864 = sld [smem:[#allocation2 + $0xef]]
        %v1865 = vstv %s1864
        %v1866 = vmul.f32 %v1865, %v233
        %1868 = vrot.lane.b32.xlu0 %v1866, 126
        %v1869 = vpop.permute.xlu0 %1868
        %v1871 = vadd.f32 %v1863, %v1869
        %s1872 = sld [smem:[#allocation2 + $0xf0]]
        %v1873 = vstv %s1872
        %v1874 = vmul.f32 %v1873, %v236
        %v1875 = vadd.f32 %v1871, %v1874
        %s1876 = sld [smem:[#allocation2 + $0xf1]]
        %v1877 = vstv %s1876
        %v1878 = vmul.f32 %v1877, %v236
        %1880 = vrot.lane.b32.xlu0 %v1878, 127
        %v1881 = vpop.permute.xlu0 %1880
        %v1883 = vadd.f32 %v1875, %v1881
        %s1884 = sld [smem:[#allocation2 + $0xf2]]
        %v1885 = vstv %s1884
        %v1886 = vmul.f32 %v1885, %v236
        %1888 = vrot.lane.b32.xlu0 %v1886, 126
        %v1889 = vpop.permute.xlu0 %1888
        %v1891 = vadd.f32 %v1883, %v1889
        %s1892 = sld [smem:[#allocation2 + $0xf3]]
        %v1893 = vstv %s1892
        %v1894 = vmul.f32 %v1893, %v239
        %v1895 = vadd.f32 %v1891, %v1894
        %s1896 = sld [smem:[#allocation2 + $0xf4]]
        %v1897 = vstv %s1896
        %v1898 = vmul.f32 %v1897, %v239
        %1900 = vrot.lane.b32.xlu0 %v1898, 127
        %v1901 = vpop.permute.xlu0 %1900
        %v1903 = vadd.f32 %v1895, %v1901
        %s1904 = sld [smem:[#allocation2 + $0xf5]]
        %v1905 = vstv %s1904
        %v1906 = vmul.f32 %v1905, %v239
        %1908 = vrot.lane.b32.xlu0 %v1906, 126
        %v1909 = vpop.permute.xlu0 %1908
        %v1911 = vadd.f32 %v1903, %v1909
        %s1912 = sld [smem:[#allocation2 + $0xf6]]
        %v1913 = vstv %s1912
        %v1914 = vmul.f32 %v1913, %v242
        %v1915 = vadd.f32 %v1911, %v1914
        %s1916 = sld [smem:[#allocation2 + $0xf7]]
        %v1917 = vstv %s1916
        %v1918 = vmul.f32 %v1917, %v242
        %1920 = vrot.lane.b32.xlu0 %v1918, 127
        %v1921 = vpop.permute.xlu0 %1920
        %v1923 = vadd.f32 %v1915, %v1921
        %s1924 = sld [smem:[#allocation2 + $0xf8]]
        %v1925 = vstv %s1924
        %v1926 = vmul.f32 %v1925, %v242
        %1928 = vrot.lane.b32.xlu0 %v1926, 126
        %v1929 = vpop.permute.xlu0 %1928
        %v1931 = vadd.f32 %v1923, %v1929
        %s1932 = sld [smem:[#allocation2 + $0xf9]]
        %v1933 = vstv %s1932
        %v1934 = vmul.f32 %v1933, %v245
        %v1935 = vadd.f32 %v1931, %v1934
        %s1936 = sld [smem:[#allocation2 + $0xfa]]
        %v1937 = vstv %s1936
        %v1938 = vmul.f32 %v1937, %v245
        %1940 = vrot.lane.b32.xlu0 %v1938, 127
        %v1941 = vpop.permute.xlu0 %1940
        %v1943 = vadd.f32 %v1935, %v1941
        %s1944 = sld [smem:[#allocation2 + $0xfb]]
        %v1945 = vstv %s1944
        %v1946 = vmul.f32 %v1945, %v245
        %1948 = vrot.lane.b32.xlu0 %v1946, 126
        %v1949 = vpop.permute.xlu0 %1948
        %v1951 = vadd.f32 %v1943, %v1949
        %s1952 = scalar_lea.vmem %s204, 48 [#allocation7]
        %1953 = vst.msk [vmem:[%s1952] sm:$0xff] %vm488, %v1951
        %s1954 = sld [smem:[#allocation5 + $0x7]]
        %v1955 = vstv %s1954
        %s1956 = sld [smem:[#allocation2 + $0xfc]]
        %v1957 = vstv %s1956
        %v1958 = vmul.f32 %v1957, %v212
        %v1959 = vadd.f32 %v1955, %v1958
        %s1960 = sld [smem:[#allocation2 + $0xfd]]
        %v1961 = vstv %s1960
        %v1962 = vmul.f32 %v1961, %v212
        %1964 = vrot.lane.b32.xlu0 %v1962, 127
        %v1965 = vpop.permute.xlu0 %1964
        %v1967 = vadd.f32 %v1959, %v1965
        %s1968 = sld [smem:[#allocation2 + $0xfe]]
        %v1969 = vstv %s1968
        %v1970 = vmul.f32 %v1969, %v212
        %1972 = vrot.lane.b32.xlu0 %v1970, 126
        %v1973 = vpop.permute.xlu0 %1972
        %v1975 = vadd.f32 %v1967, %v1973
        %s1976 = sld [smem:[#allocation2 + $0xff]]
        %v1977 = vstv %s1976
        %v1978 = vmul.f32 %v1977, %v215
        %v1979 = vadd.f32 %v1975, %v1978
        %s1980 = sld [smem:[#allocation2 + $0x100]]
        %v1981 = vstv %s1980
        %v1982 = vmul.f32 %v1981, %v215
        %1984 = vrot.lane.b32.xlu0 %v1982, 127
        %v1985 = vpop.permute.xlu0 %1984
        %v1987 = vadd.f32 %v1979, %v1985
        %s1988 = sld [smem:[#allocation2 + $0x101]]
        %v1989 = vstv %s1988
        %v1990 = vmul.f32 %v1989, %v215
        %1992 = vrot.lane.b32.xlu0 %v1990, 126
        %v1993 = vpop.permute.xlu0 %1992
        %v1995 = vadd.f32 %v1987, %v1993
        %s1996 = sld [smem:[#allocation2 + $0x102]]
        %v1997 = vstv %s1996
        %v1998 = vmul.f32 %v1997, %v218
        %v1999 = vadd.f32 %v1995, %v1998
        %s2000 = sld [smem:[#allocation2 + $0x103]]
        %v2001 = vstv %s2000
        %v2002 = vmul.f32 %v2001, %v218
        %2004 = vrot.lane.b32.xlu0 %v2002, 127
        %v2005 = vpop.permute.xlu0 %2004
        %v2007 = vadd.f32 %v1999, %v2005
        %s2008 = sld [smem:[#allocation2 + $0x104]]
        %v2009 = vstv %s2008
        %v2010 = vmul.f32 %v2009, %v218
        %2012 = vrot.lane.b32.xlu0 %v2010, 126
        %v2013 = vpop.permute.xlu0 %2012
        %v2015 = vadd.f32 %v2007, %v2013
        %s2016 = sld [smem:[#allocation2 + $0x105]]
        %v2017 = vstv %s2016
        %v2018 = vmul.f32 %v2017, %v221
        %v2019 = vadd.f32 %v2015, %v2018
        %s2020 = sld [smem:[#allocation2 + $0x106]]
        %v2021 = vstv %s2020
        %v2022 = vmul.f32 %v2021, %v221
        %2024 = vrot.lane.b32.xlu0 %v2022, 127
        %v2025 = vpop.permute.xlu0 %2024
        %v2027 = vadd.f32 %v2019, %v2025
        %s2028 = sld [smem:[#allocation2 + $0x107]]
        %v2029 = vstv %s2028
        %v2030 = vmul.f32 %v2029, %v221
        %2032 = vrot.lane.b32.xlu0 %v2030, 126
        %v2033 = vpop.permute.xlu0 %2032
        %v2035 = vadd.f32 %v2027, %v2033
        %s2036 = sld [smem:[#allocation2 + $0x108]]
        %v2037 = vstv %s2036
        %v2038 = vmul.f32 %v2037, %v224
        %v2039 = vadd.f32 %v2035, %v2038
        %s2040 = sld [smem:[#allocation2 + $0x109]]
        %v2041 = vstv %s2040
        %v2042 = vmul.f32 %v2041, %v224
        %2044 = vrot.lane.b32.xlu0 %v2042, 127
        %v2045 = vpop.permute.xlu0 %2044
        %v2047 = vadd.f32 %v2039, %v2045
        %s2048 = sld [smem:[#allocation2 + $0x10a]]
        %v2049 = vstv %s2048
        %v2050 = vmul.f32 %v2049, %v224
        %2052 = vrot.lane.b32.xlu0 %v2050, 126
        %v2053 = vpop.permute.xlu0 %2052
        %v2055 = vadd.f32 %v2047, %v2053
        %s2056 = sld [smem:[#allocation2 + $0x10b]]
        %v2057 = vstv %s2056
        %v2058 = vmul.f32 %v2057, %v227
        %v2059 = vadd.f32 %v2055, %v2058
        %s2060 = sld [smem:[#allocation2 + $0x10c]]
        %v2061 = vstv %s2060
        %v2062 = vmul.f32 %v2061, %v227
        %2064 = vrot.lane.b32.xlu0 %v2062, 127
        %v2065 = vpop.permute.xlu0 %2064
        %v2067 = vadd.f32 %v2059, %v2065
        %s2068 = sld [smem:[#allocation2 + $0x10d]]
        %v2069 = vstv %s2068
        %v2070 = vmul.f32 %v2069, %v227
        %2072 = vrot.lane.b32.xlu0 %v2070, 126
        %v2073 = vpop.permute.xlu0 %2072
        %v2075 = vadd.f32 %v2067, %v2073
        %s2076 = sld [smem:[#allocation2 + $0x10e]]
        %v2077 = vstv %s2076
        %v2078 = vmul.f32 %v2077, %v230
        %v2079 = vadd.f32 %v2075, %v2078
        %s2080 = sld [smem:[#allocation2 + $0x10f]]
        %v2081 = vstv %s2080
        %v2082 = vmul.f32 %v2081, %v230
        %2084 = vrot.lane.b32.xlu0 %v2082, 127
        %v2085 = vpop.permute.xlu0 %2084
        %v2087 = vadd.f32 %v2079, %v2085
        %s2088 = sld [smem:[#allocation2 + $0x110]]
        %v2089 = vstv %s2088
        %v2090 = vmul.f32 %v2089, %v230
        %2092 = vrot.lane.b32.xlu0 %v2090, 126
        %v2093 = vpop.permute.xlu0 %2092
        %v2095 = vadd.f32 %v2087, %v2093
        %s2096 = sld [smem:[#allocation2 + $0x111]]
        %v2097 = vstv %s2096
        %v2098 = vmul.f32 %v2097, %v233
        %v2099 = vadd.f32 %v2095, %v2098
        %s2100 = sld [smem:[#allocation2 + $0x112]]
        %v2101 = vstv %s2100
        %v2102 = vmul.f32 %v2101, %v233
        %2104 = vrot.lane.b32.xlu0 %v2102, 127
        %v2105 = vpop.permute.xlu0 %2104
        %v2107 = vadd.f32 %v2099, %v2105
        %s2108 = sld [smem:[#allocation2 + $0x113]]
        %v2109 = vstv %s2108
        %v2110 = vmul.f32 %v2109, %v233
        %2112 = vrot.lane.b32.xlu0 %v2110, 126
        %v2113 = vpop.permute.xlu0 %2112
        %v2115 = vadd.f32 %v2107, %v2113
        %s2116 = sld [smem:[#allocation2 + $0x114]]
        %v2117 = vstv %s2116
        %v2118 = vmul.f32 %v2117, %v236
        %v2119 = vadd.f32 %v2115, %v2118
        %s2120 = sld [smem:[#allocation2 + $0x115]]
        %v2121 = vstv %s2120
        %v2122 = vmul.f32 %v2121, %v236
        %2124 = vrot.lane.b32.xlu0 %v2122, 127
        %v2125 = vpop.permute.xlu0 %2124
        %v2127 = vadd.f32 %v2119, %v2125
        %s2128 = sld [smem:[#allocation2 + $0x116]]
        %v2129 = vstv %s2128
        %v2130 = vmul.f32 %v2129, %v236
        %2132 = vrot.lane.b32.xlu0 %v2130, 126
        %v2133 = vpop.permute.xlu0 %2132
        %v2135 = vadd.f32 %v2127, %v2133
        %s2136 = sld [smem:[#allocation2 + $0x117]]
        %v2137 = vstv %s2136
        %v2138 = vmul.f32 %v2137, %v239
        %v2139 = vadd.f32 %v2135, %v2138
        %s2140 = sld [smem:[#allocation2 + $0x118]]
        %v2141 = vstv %s2140
        %v2142 = vmul.f32 %v2141, %v239
        %2144 = vrot.lane.b32.xlu0 %v2142, 127
        %v2145 = vpop.permute.xlu0 %2144
        %v2147 = vadd.f32 %v2139, %v2145
        %s2148 = sld [smem:[#allocation2 + $0x119]]
        %v2149 = vstv %s2148
        %v2150 = vmul.f32 %v2149, %v239
        %2152 = vrot.lane.b32.xlu0 %v2150, 126
        %v2153 = vpop.permute.xlu0 %2152
        %v2155 = vadd.f32 %v2147, %v2153
        %s2156 = sld [smem:[#allocation2 + $0x11a]]
        %v2157 = vstv %s2156
        %v2158 = vmul.f32 %v2157, %v242
        %v2159 = vadd.f32 %v2155, %v2158
        %s2160 = sld [smem:[#allocation2 + $0x11b]]
        %v2161 = vstv %s2160
        %v2162 = vmul.f32 %v2161, %v242
        %2164 = vrot.lane.b32.xlu0 %v2162, 127
        %v2165 = vpop.permute.xlu0 %2164
        %v2167 = vadd.f32 %v2159, %v2165
        %s2168 = sld [smem:[#allocation2 + $0x11c]]
        %v2169 = vstv %s2168
        %v2170 = vmul.f32 %v2169, %v242
        %2172 = vrot.lane.b32.xlu0 %v2170, 126
        %v2173 = vpop.permute.xlu0 %2172
        %v2175 = vadd.f32 %v2167, %v2173
        %s2176 = sld [smem:[#allocation2 + $0x11d]]
        %v2177 = vstv %s2176
        %v2178 = vmul.f32 %v2177, %v245
        %v2179 = vadd.f32 %v2175, %v2178
        %s2180 = sld [smem:[#allocation2 + $0x11e]]
        %v2181 = vstv %s2180
        %v2182 = vmul.f32 %v2181, %v245
        %2184 = vrot.lane.b32.xlu0 %v2182, 127
        %v2185 = vpop.permute.xlu0 %2184
        %v2187 = vadd.f32 %v2179, %v2185
        %s2188 = sld [smem:[#allocation2 + $0x11f]]
        %v2189 = vstv %s2188
        %v2190 = vmul.f32 %v2189, %v245
        %2192 = vrot.lane.b32.xlu0 %v2190, 126
        %v2193 = vpop.permute.xlu0 %2192
        %v2195 = vadd.f32 %v2187, %v2193
        %s2196 = scalar_lea.vmem %s204, 56 [#allocation7]
        %2197 = vst.msk [vmem:[%s2196] sm:$0xff] %vm488, %v2195
        %s2198 = sand.u32 %s109, 1
        %s2199 = scalar_lea.sflag [#allocation3], %s2198
        %s2200 = sand.u32 %s109, 1
        %s2201 = smul.addr %s2200, 64
        %s2202 = scalar_lea.vmem [#allocation7], %s2201
        // Predicated region
        $region41: #{tpu_custom_call.1} parent=31 // pred_check
          %p2203 = pneg %p119
        $region42: #{tpu_custom_call.1} parent=31 // pred_check_branch
          %2205 = sbr.rel (%p2203) target = $region44
        $region43: #{tpu_custom_call.1} parent=31 // pred_region
          %s2207 = ssub.s32 1024, 1024
          %2208 = vsyncadd %s2199, %s2207
          %s2209 = smul.addr %s23, 16
          %s2210 = sadd.s32 %s24, %s2209
          %s2211 = smul.addr %s2210, 128
          %s2212 = scalar_lea.hbm %s3, %s2211
          %s2213 = sshll.u32 %s2202, 4
          %s2214 = int_to_ptr.vmem [resolvable:$true] %s2213
          %2219 = dma.vmem_to_hbm [thread:$0]  %s2214, 1024, %s2212, %s2199, 128, 256, 8
        $region44: #{tpu_custom_call.1} parent=31 // pred_fallthru
          _
      $region32: #{tpu_custom_call.1} parent=5 // pred_fallthru
        _
      %p2220 = scmp.le.s32.totalorder 2, %s14
      // Predicated region
      $region45: #{tpu_custom_call.1} parent=5 // pred_check
        %p2221 = pneg %p2220
      $region46: #{tpu_custom_call.1} parent=5 // pred_check_branch
        %2223 = sbr.rel (%p2221) target = $region48
      $region47: #{tpu_custom_call.1} parent=5 // pred_region
        %s2224 = ssub.s32 %s14, 2
        // Predicated region
        $region49: #{tpu_custom_call.1} parent=47 // pred_check
          %p2225 = pneg %p125
        $region50: #{tpu_custom_call.1} parent=47 // pred_check_branch
          %2227 = sbr.rel (%p2225) target = $region52
        $region51: #{tpu_custom_call.1} parent=47 // pred_region
          %s2228 = sand.u32 %s110, 1
          %s2229 = scalar_lea.sflag [#allocation3], %s2228
          %s2230 = sand.u32 %s110, 1
          %s2231 = smul.addr %s2230, 64
          %s2232 = scalar_lea.vmem [#allocation7], %s2231
          %2233 = dma.done %s2229, 1024
        $region52: #{tpu_custom_call.1} parent=47 // pred_fallthru
          _
      $region48: #{tpu_custom_call.1} parent=5 // pred_fallthru
        _
    $region6: #{tpu_custom_call.1} parent=1 // loop_footer
      %s18 = sadd.s32 1, %s14
    $region7: #{tpu_custom_call.1} parent=1 // loop_footer_branch
      %13 = sbr.rel target = $region3
    $region8: #{tpu_custom_call.1} parent=1 // loop_exit
      _
    %2234 = vsyncpa [#allocation3], 1
    %s2235 = scalar_lea.sflag [#allocation3], 1
    %2236 = vsyncpa %s2235, 1
    %2237 = vsyncpa [#allocation4], 1
    %s2238 = scalar_lea.sflag [#allocation4], 1
    %2239 = vsyncpa %s2238, 1
    %2240 = vsyncpa [#allocation6], 1

</llo_original>
